<compile_context>
chip_gen: v7x
topology: tpu7x:2x2x1
jax: 0.10.0
libtpu: 0.0.40
codegen_flags: <defaults>
</compile_context>

<pallas_src>
import functools

import jax
import jax.numpy as jnp
from jax.experimental import pallas as pl
from jax.experimental.pallas import tpu as pltpu


# ----------------------------- Pallas kernel ------------------------------- #
def gnn_kernel(x_ref,
               w1t_ref, as1_ref, ad1_ref, b1_ref,
               w2t_ref, as2_ref, ad2_ref, b2_ref,
               w3t_ref, as3_ref, ad3_ref, b3_ref,
               wl1t_ref, bl1_ref, wl2t_ref, bl2_ref,
               out_ref):
    f32 = jnp.float32
    A = x_ref.shape[0]                       # number of agents (static)

    # Per-agent node features, each (Fin, TB): batch on lanes.
    xs = [x_ref[a].astype(f32) for a in range(A)]

    def gat_layer(hs_in, wt_ref, asrc_ref, adst_ref, b_ref):
        wt = wt_ref[...]                     # (H, Fprev)
        asrc = asrc_ref[...]                 # (1, H)
        adst = adst_ref[...]                 # (1, H)
        bias = b_ref[...]                    # (H, 1)

        # Shared linear transform; MXU-friendly (H, Fprev) @ (Fprev, TB).
        h = [jnp.dot(wt, hs_in[a], preferred_element_type=f32) for a in range(A)]
        # Attention score halves, each (1, TB).
        s_src = [jnp.dot(asrc, h[a], preferred_element_type=f32) for a in range(A)]
        s_dst = [jnp.dot(adst, h[a], preferred_element_type=f32) for a in range(A)]

        out = []
        for i in range(A):
            # Neighbours of i: every other agent (self loop excluded by
            # construction -> no masking ops needed at all).
            js = [j for j in range(A) if j != i]
            e = []
            for j in js:
                eij = s_dst[i] + s_src[j]
                eij = jnp.where(eij > 0, eij, 0.2 * eij)   # LeakyReLU(0.2), PyG default
                e.append(eij)
            m = e[0]
            for eij in e[1:]:
                m = jnp.maximum(m, eij)                    # row max (stability)
            p = [jnp.exp(eij - m) for eij in e]
            denom = p[0]
            for pj in p[1:]:
                denom = denom + pj
            inv = pl.reciprocal(denom, approx=True)        # EUP, off the VALU

            # Weighted aggregation: (1, TB) broadcast over H sublanes * (H, TB).
            acc = (p[0] * inv) * h[js[0]]
            for pj, j in zip(p[1:], js[1:]):
                acc = acc + (pj * inv) * h[j]
            out.append(acc + bias)                          # (H, TB)
        return out

    hs = [jnp.maximum(v, 0.0) for v in gat_layer(xs, w1t_ref, as1_ref, ad1_ref, b1_ref)]
    hs = [jnp.maximum(v, 0.0) for v in gat_layer(hs, w2t_ref, as2_ref, ad2_ref, b2_ref)]
    hs = [jnp.maximum(v, 0.0) for v in gat_layer(hs, w3t_ref, as3_ref, ad3_ref, b3_ref)]

    wl1t = wl1t_ref[...]                     # (H, H)
    bl1 = bl1_ref[...]                       # (H, 1)
    wl2t = wl2t_ref[...]                     # (Dout, H)
    bl2 = bl2_ref[...]                       # (Dout, 1)
    for a in range(A):
        z = jnp.maximum(jnp.dot(wl1t, hs[a], preferred_element_type=f32) + bl1, 0.0)
        y = jnp.dot(wl2t, z, preferred_element_type=f32) + bl2       # (Dout, TB)
        out_ref[a] = y.astype(out_ref.dtype)                          # lane-dense store


# ------------------------------- wrapper ------------------------------------ #
def _round_up(x, m):
    return ((x + m - 1) // m) * m


def _kernel_params(params):
    """Re-orient parameters for the (feature, batch-on-lanes) kernel layout."""
    f32 = jnp.float32
    t = lambda x: jnp.asarray(x, f32).T
    row = lambda x: jnp.asarray(x, f32).reshape(1, -1)
    col = lambda x: jnp.asarray(x, f32).reshape(-1, 1)
    # TODO(synk): the ten tiny (1,H)/(H,1) vectors could be consolidated into a
    # single parameter array to cut DMA descriptor count further (minor).
    return [
        t(params["w1"]), row(params["as1"]), row(params["ad1"]), col(params["b1"]),
        t(params["w2"]), row(params["as2"]), row(params["ad2"]), col(params["b2"]),
        t(params["w3"]), row(params["as3"]), row(params["ad3"]), col(params["b3"]),
        t(params["wl1"]), col(params["bl1"]),
        t(params["wl2"]), col(params["bl2"]),
    ]


@functools.partial(jax.jit, static_argnames=("tb",))
def custom_gnn_forward(obs, params, tb=256):
    """obs: (num_agents A, batch B, input_dim) — same layout as torch.stack(obs).
    Returns logits of shape (B, A * output_dim)."""
    A, B, Fin = obs.shape
    assert A >= 2, "fully-connected graph without self loops needs >= 2 agents"
    assert tb % 128 == 0, "batch-chunk size must be a multiple of 128"
    Dout = params["wl2"].shape[1]

    plist = _kernel_params(params)

    # (A, B, Fin) -> (A, Fin, B): put the batch dimension on lanes.
    x = jnp.transpose(obs.astype(jnp.float32), (0, 2, 1))
    TB = min(tb, _round_up(B, 128))
    Bp = _round_up(B, TB)
    if Bp != B:
        x = jnp.pad(x, ((0, 0), (0, 0), (0, Bp - B)))
    grid = (Bp // TB,)

    in_specs = [pl.BlockSpec((A, Fin, TB), lambda b: (0, 0, b))]
    # Parameters: full blocks, constant index_map -> fetched once, reused.
    in_specs += [pl.BlockSpec(p.shape, lambda b: (0, 0)) for p in plist]

    out = pl.pallas_call(
        gnn_kernel,
        out_shape=jax.ShapeDtypeStruct((A, Dout, Bp), jnp.float32),
        grid=grid,
        in_specs=in_specs,
        out_specs=pl.BlockSpec((A, Dout, TB), lambda b: (0, 0, b)),
        compiler_params=pltpu.CompilerParams(dimension_semantics=("parallel",)),
    )(x, *plist)

    # (A, Dout, Bp) -> (B, A*Dout): matches logits.view(batch, agents, -1).view(batch, -1)
    return jnp.transpose(out[:, :, :B], (2, 0, 1)).reshape(B, A * Dout)


# -------------------------- pure-JAX reference ------------------------------ #
def _gat_ref(x, W, a_src, a_dst, bias):
    h = x @ W
    s_src = (h * a_src).sum(-1)
    s_dst = (h * a_dst).sum(-1)
    e = s_dst[:, None] + s_src[None, :]
    e = jnp.where(e > 0, e, 0.2 * e)
    e = jnp.where(jnp.eye(x.shape[0], dtype=bool), -jnp.inf, e)
    attn = jax.nn.softmax(e, axis=-1)
    return attn @ h + bias


def _forward_ref(obs, p):
    x = jnp.transpose(obs, (1, 0, 2)).astype(jnp.float32)   # (B, A, Fin)

    def per_batch(xb):
        h = jax.nn.relu(_gat_ref(xb, p["w1"], p["as1"], p["ad1"], p["b1"]))
        h = jax.nn.relu(_gat_ref(h, p["w2"], p["as2"], p["ad2"], p["b2"]))
        h = jax.nn.relu(_gat_ref(h, p["w3"], p["as3"], p["ad3"], p["b3"]))
        h = jax.nn.relu(h @ p["wl1"] + p["bl1"])
        return h @ p["wl2"] + p["bl2"]

    y = jax.vmap(per_batch)(x)                               # (B, A, Dout)
    return y.reshape(x.shape[0], -1)


# --------------------------------- main ------------------------------------- #
def _init_params(key, input_dim, hidden_dim, output_dim):
    ks = jax.random.split(key, 16)
    n = lambda k, s: (jax.random.normal(k, s, jnp.float32) * 0.1)
    return {
        # GATConv 1/2/3: shared lin weight, att_src, att_dst, bias
        "w1": n(ks[0], (input_dim, hidden_dim)),
        "as1": n(ks[1], (1, hidden_dim)), "ad1": n(ks[2], (1, hidden_dim)),
        "b1": n(ks[3], (1, hidden_dim)),
        "w2": n(ks[4], (hidden_dim, hidden_dim)),
        "as2": n(ks[5], (1, hidden_dim)), "ad2": n(ks[6], (1, hidden_dim)),
        "b2": n(ks[7], (1, hidden_dim)),
        "w3": n(ks[8], (hidden_dim, hidden_dim)),
        "as3": n(ks[9], (1, hidden_dim)), "ad3": n(ks[10], (1, hidden_dim)),
        "b3": n(ks[11], (1, hidden_dim)),
        # lin1, lin2
        "wl1": n(ks[12], (hidden_dim, hidden_dim)), "bl1": n(ks[13], (1, hidden_dim)),
        "wl2": n(ks[14], (hidden_dim, output_dim)), "bl2": n(ks[15], (1, output_dim)),
    }


if __name__ == "__main__":
    num_agents, batch_size = 4, 2
    input_dim, hidden_dim, output_dim = 6, 32, 9

    key = jax.random.PRNGKey(0)
    k_obs, k_par, k_obs2 = jax.random.split(key, 3)
    obs = jax.random.normal(k_obs, (num_agents, batch_size, input_dim), jnp.float32)
    params = _init_params(k_par, input_dim, hidden_dim, output_dim)

    logits = jax.block_until_ready(custom_gnn_forward(obs, params))
    assert logits.shape == (batch_size, num_agents * output_dim)
    ref = _forward_ref(obs, params)
    # approx reciprocal (EUP) in the softmax -> slightly relaxed tolerance
    assert jnp.allclose(logits, ref, atol=5e-3, rtol=1e-2), "mismatch vs JAX reference"

    # Exercise the multi-chunk grid + batch-padding path (B not a multiple of TB).
    obs2 = jax.random.normal(k_obs2, (num_agents, 300, input_dim), jnp.float32)
    logits2 = jax.block_until_ready(custom_gnn_forward(obs2, params, tb=256))
    assert logits2.shape == (300, num_agents * output_dim)
    ref2 = _forward_ref(obs2, params)
    assert jnp.allclose(logits2, ref2, atol=5e-3, rtol=1e-2), "mismatch vs JAX reference (large B)"

    print("KERNEL_OK")
</pallas_src>

<mosaic_0001>
module attributes {stable_mosaic.version = 11 : i64} {
  func.func @gnn_kernel(%arg0: i32, %arg1: memref<4x6x128xf32, #tpu.memory_space<vmem>>, %arg2: memref<32x6xf32, #tpu.memory_space<vmem>>, %arg3: memref<1x32xf32, #tpu.memory_space<vmem>>, %arg4: memref<1x32xf32, #tpu.memory_space<vmem>>, %arg5: memref<32x1xf32, #tpu.memory_space<vmem>>, %arg6: memref<32x32xf32, #tpu.memory_space<vmem>>, %arg7: memref<1x32xf32, #tpu.memory_space<vmem>>, %arg8: memref<1x32xf32, #tpu.memory_space<vmem>>, %arg9: memref<32x1xf32, #tpu.memory_space<vmem>>, %arg10: memref<32x32xf32, #tpu.memory_space<vmem>>, %arg11: memref<1x32xf32, #tpu.memory_space<vmem>>, %arg12: memref<1x32xf32, #tpu.memory_space<vmem>>, %arg13: memref<32x1xf32, #tpu.memory_space<vmem>>, %arg14: memref<32x32xf32, #tpu.memory_space<vmem>>, %arg15: memref<32x1xf32, #tpu.memory_space<vmem>>, %arg16: memref<9x32xf32, #tpu.memory_space<vmem>>, %arg17: memref<9x1xf32, #tpu.memory_space<vmem>>, %arg18: memref<4x9x128xf32, #tpu.memory_space<vmem>>) attributes {dimension_semantics = [#tpu.dimension_semantics<parallel>], iteration_bounds = array<i64: 1>, scalar_prefetch = 0 : i64, scratch_operands = 0 : i64, tpu.core_type = #tpu.core_type<tc>, window_params = [{transform_indices = @transform_0, window_bounds = array<i64: 4, 6, 128>}, {pipeline_mode = #tpu.pipeline_mode<synchronous>, transform_indices = @transform_1, window_bounds = array<i64: 32, 6>}, {pipeline_mode = #tpu.pipeline_mode<synchronous>, transform_indices = @transform_2, window_bounds = array<i64: 1, 32>}, {pipeline_mode = #tpu.pipeline_mode<synchronous>, transform_indices = @transform_3, window_bounds = array<i64: 1, 32>}, {pipeline_mode = #tpu.pipeline_mode<synchronous>, transform_indices = @transform_4, window_bounds = array<i64: 32, 1>}, {pipeline_mode = #tpu.pipeline_mode<synchronous>, transform_indices = @transform_5, window_bounds = array<i64: 32, 32>}, {pipeline_mode = #tpu.pipeline_mode<synchronous>, transform_indices = @transform_6, window_bounds = array<i64: 1, 32>}, {pipeline_mode = #tpu.pipeline_mode<synchronous>, transform_indices = @transform_7, window_bounds = array<i64: 1, 32>}, {pipeline_mode = #tpu.pipeline_mode<synchronous>, transform_indices = @transform_8, window_bounds = array<i64: 32, 1>}, {pipeline_mode = #tpu.pipeline_mode<synchronous>, transform_indices = @transform_9, window_bounds = array<i64: 32, 32>}, {pipeline_mode = #tpu.pipeline_mode<synchronous>, transform_indices = @transform_10, window_bounds = array<i64: 1, 32>}, {pipeline_mode = #tpu.pipeline_mode<synchronous>, transform_indices = @transform_11, window_bounds = array<i64: 1, 32>}, {pipeline_mode = #tpu.pipeline_mode<synchronous>, transform_indices = @transform_12, window_bounds = array<i64: 32, 1>}, {pipeline_mode = #tpu.pipeline_mode<synchronous>, transform_indices = @transform_13, window_bounds = array<i64: 32, 32>}, {pipeline_mode = #tpu.pipeline_mode<synchronous>, transform_indices = @transform_14, window_bounds = array<i64: 32, 1>}, {pipeline_mode = #tpu.pipeline_mode<synchronous>, transform_indices = @transform_15, window_bounds = array<i64: 9, 32>}, {pipeline_mode = #tpu.pipeline_mode<synchronous>, transform_indices = @transform_16, window_bounds = array<i64: 9, 1>}, {transform_indices = @transform_17, window_bounds = array<i64: 4, 9, 128>}]} {
    %c0 = arith.constant 0 : index
    %c0_0 = arith.constant 0 : index
    %c0_1 = arith.constant 0 : index
    %0 = vector.load %arg1[%c0, %c0_0, %c0_1] : memref<4x6x128xf32, #tpu.memory_space<vmem>>, vector<1x6x128xf32>
    %1 = vector.shape_cast %0 : vector<1x6x128xf32> to vector<6x128xf32>
    %c1 = arith.constant 1 : index
    %c0_2 = arith.constant 0 : index
    %c0_3 = arith.constant 0 : index
    %2 = vector.load %arg1[%c1, %c0_2, %c0_3] : memref<4x6x128xf32, #tpu.memory_space<vmem>>, vector<1x6x128xf32>
    %3 = vector.shape_cast %2 : vector<1x6x128xf32> to vector<6x128xf32>
    %c2 = arith.constant 2 : index
    %c0_4 = arith.constant 0 : index
    %c0_5 = arith.constant 0 : index
    %4 = vector.load %arg1[%c2, %c0_4, %c0_5] : memref<4x6x128xf32, #tpu.memory_space<vmem>>, vector<1x6x128xf32>
    %5 = vector.shape_cast %4 : vector<1x6x128xf32> to vector<6x128xf32>
    %c3 = arith.constant 3 : index
    %c0_6 = arith.constant 0 : index
    %c0_7 = arith.constant 0 : index
    %6 = vector.load %arg1[%c3, %c0_6, %c0_7] : memref<4x6x128xf32, #tpu.memory_space<vmem>>, vector<1x6x128xf32>
    %7 = vector.shape_cast %6 : vector<1x6x128xf32> to vector<6x128xf32>
    %c0_8 = arith.constant 0 : index
    %c0_9 = arith.constant 0 : index
    %8 = vector.load %arg2[%c0_8, %c0_9] : memref<32x6xf32, #tpu.memory_space<vmem>>, vector<32x6xf32>
    %c0_10 = arith.constant 0 : index
    %c0_11 = arith.constant 0 : index
    %9 = vector.load %arg3[%c0_10, %c0_11] : memref<1x32xf32, #tpu.memory_space<vmem>>, vector<1x32xf32>
    %c0_12 = arith.constant 0 : index
    %c0_13 = arith.constant 0 : index
    %10 = vector.load %arg4[%c0_12, %c0_13] : memref<1x32xf32, #tpu.memory_space<vmem>>, vector<1x32xf32>
    %c0_14 = arith.constant 0 : index
    %c0_15 = arith.constant 0 : index
    %11 = vector.load %arg5[%c0_14, %c0_15] : memref<32x1xf32, #tpu.memory_space<vmem>>, vector<32x1xf32>
    %cst = arith.constant dense<0.000000e+00> : vector<32x128xf32>
    %12 = tpu.matmul %8, %1, %cst {dimension_numbers = #tpu.dot_dimension_numbers<[1], [0], [0], [1], [0, 0, 1, 1], [], []>} : vector<32x6xf32>, vector<6x128xf32>, vector<32x128xf32> -> vector<32x128xf32>
    %cst_16 = arith.constant dense<0.000000e+00> : vector<32x128xf32>
    %13 = tpu.matmul %8, %3, %cst_16 {dimension_numbers = #tpu.dot_dimension_numbers<[1], [0], [0], [1], [0, 0, 1, 1], [], []>} : vector<32x6xf32>, vector<6x128xf32>, vector<32x128xf32> -> vector<32x128xf32>
    %cst_17 = arith.constant dense<0.000000e+00> : vector<32x128xf32>
    %14 = tpu.matmul %8, %5, %cst_17 {dimension_numbers = #tpu.dot_dimension_numbers<[1], [0], [0], [1], [0, 0, 1, 1], [], []>} : vector<32x6xf32>, vector<6x128xf32>, vector<32x128xf32> -> vector<32x128xf32>
    %cst_18 = arith.constant dense<0.000000e+00> : vector<32x128xf32>
    %15 = tpu.matmul %8, %7, %cst_18 {dimension_numbers = #tpu.dot_dimension_numbers<[1], [0], [0], [1], [0, 0, 1, 1], [], []>} : vector<32x6xf32>, vector<6x128xf32>, vector<32x128xf32> -> vector<32x128xf32>
    %cst_19 = arith.constant dense<0.000000e+00> : vector<1x128xf32>
    %16 = tpu.matmul %9, %12, %cst_19 {dimension_numbers = #tpu.dot_dimension_numbers<[1], [0], [0], [1], [0, 0, 1, 1], [], []>} : vector<1x32xf32>, vector<32x128xf32>, vector<1x128xf32> -> vector<1x128xf32>
    %cst_20 = arith.constant dense<0.000000e+00> : vector<1x128xf32>
    %17 = tpu.matmul %9, %13, %cst_20 {dimension_numbers = #tpu.dot_dimension_numbers<[1], [0], [0], [1], [0, 0, 1, 1], [], []>} : vector<1x32xf32>, vector<32x128xf32>, vector<1x128xf32> -> vector<1x128xf32>
    %cst_21 = arith.constant dense<0.000000e+00> : vector<1x128xf32>
    %18 = tpu.matmul %9, %14, %cst_21 {dimension_numbers = #tpu.dot_dimension_numbers<[1], [0], [0], [1], [0, 0, 1, 1], [], []>} : vector<1x32xf32>, vector<32x128xf32>, vector<1x128xf32> -> vector<1x128xf32>
    %cst_22 = arith.constant dense<0.000000e+00> : vector<1x128xf32>
    %19 = tpu.matmul %9, %15, %cst_22 {dimension_numbers = #tpu.dot_dimension_numbers<[1], [0], [0], [1], [0, 0, 1, 1], [], []>} : vector<1x32xf32>, vector<32x128xf32>, vector<1x128xf32> -> vector<1x128xf32>
    %cst_23 = arith.constant dense<0.000000e+00> : vector<1x128xf32>
    %20 = tpu.matmul %10, %12, %cst_23 {dimension_numbers = #tpu.dot_dimension_numbers<[1], [0], [0], [1], [0, 0, 1, 1], [], []>} : vector<1x32xf32>, vector<32x128xf32>, vector<1x128xf32> -> vector<1x128xf32>
    %cst_24 = arith.constant dense<0.000000e+00> : vector<1x128xf32>
    %21 = tpu.matmul %10, %13, %cst_24 {dimension_numbers = #tpu.dot_dimension_numbers<[1], [0], [0], [1], [0, 0, 1, 1], [], []>} : vector<1x32xf32>, vector<32x128xf32>, vector<1x128xf32> -> vector<1x128xf32>
    %cst_25 = arith.constant dense<0.000000e+00> : vector<1x128xf32>
    %22 = tpu.matmul %10, %14, %cst_25 {dimension_numbers = #tpu.dot_dimension_numbers<[1], [0], [0], [1], [0, 0, 1, 1], [], []>} : vector<1x32xf32>, vector<32x128xf32>, vector<1x128xf32> -> vector<1x128xf32>
    %cst_26 = arith.constant dense<0.000000e+00> : vector<1x128xf32>
    %23 = tpu.matmul %10, %15, %cst_26 {dimension_numbers = #tpu.dot_dimension_numbers<[1], [0], [0], [1], [0, 0, 1, 1], [], []>} : vector<1x32xf32>, vector<32x128xf32>, vector<1x128xf32> -> vector<1x128xf32>
    %24 = arith.addf %20, %17 : vector<1x128xf32>
    %cst_27 = arith.constant 0.000000e+00 : f32
    %25 = vector.broadcast %cst_27 : f32 to vector<1x128xf32>
    %26 = arith.cmpf ogt, %24, %25 : vector<1x128xf32>
    %cst_28 = arith.constant 2.000000e-01 : f32
    %27 = vector.broadcast %cst_28 : f32 to vector<1x128xf32>
    %28 = arith.mulf %27, %24 : vector<1x128xf32>
    %29 = arith.select %26, %24, %28 : vector<1x128xi1>, vector<1x128xf32>
    %30 = arith.addf %20, %18 : vector<1x128xf32>
    %cst_29 = arith.constant 0.000000e+00 : f32
    %31 = vector.broadcast %cst_29 : f32 to vector<1x128xf32>
    %32 = arith.cmpf ogt, %30, %31 : vector<1x128xf32>
    %cst_30 = arith.constant 2.000000e-01 : f32
    %33 = vector.broadcast %cst_30 : f32 to vector<1x128xf32>
    %34 = arith.mulf %33, %30 : vector<1x128xf32>
    %35 = arith.select %32, %30, %34 : vector<1x128xi1>, vector<1x128xf32>
    %36 = arith.addf %20, %19 : vector<1x128xf32>
    %cst_31 = arith.constant 0.000000e+00 : f32
    %37 = vector.broadcast %cst_31 : f32 to vector<1x128xf32>
    %38 = arith.cmpf ogt, %36, %37 : vector<1x128xf32>
    %cst_32 = arith.constant 2.000000e-01 : f32
    %39 = vector.broadcast %cst_32 : f32 to vector<1x128xf32>
    %40 = arith.mulf %39, %36 : vector<1x128xf32>
    %41 = arith.select %38, %36, %40 : vector<1x128xi1>, vector<1x128xf32>
    %42 = arith.maximumf %29, %35 : vector<1x128xf32>
    %43 = arith.maximumf %42, %41 : vector<1x128xf32>
    %44 = arith.subf %29, %43 : vector<1x128xf32>
    %45 = math.exp %44 : vector<1x128xf32>
    %46 = arith.subf %35, %43 : vector<1x128xf32>
    %47 = math.exp %46 : vector<1x128xf32>
    %48 = arith.subf %41, %43 : vector<1x128xf32>
    %49 = math.exp %48 : vector<1x128xf32>
    %50 = arith.addf %45, %47 : vector<1x128xf32>
    %51 = arith.addf %50, %49 : vector<1x128xf32>
    %52 = tpu.reciprocal %51 {approx = true} : vector<1x128xf32> -> vector<1x128xf32>
    %53 = arith.mulf %45, %52 : vector<1x128xf32>
    %54 = vector.broadcast %53 : vector<1x128xf32> to vector<32x128xf32>
    %55 = arith.mulf %54, %13 : vector<32x128xf32>
    %56 = arith.mulf %47, %52 : vector<1x128xf32>
    %57 = vector.broadcast %56 : vector<1x128xf32> to vector<32x128xf32>
    %58 = arith.mulf %57, %14 : vector<32x128xf32>
    %59 = arith.addf %55, %58 : vector<32x128xf32>
    %60 = arith.mulf %49, %52 : vector<1x128xf32>
    %61 = vector.broadcast %60 : vector<1x128xf32> to vector<32x128xf32>
    %62 = arith.mulf %61, %15 : vector<32x128xf32>
    %63 = arith.addf %59, %62 : vector<32x128xf32>
    %64 = vector.broadcast %11 : vector<32x1xf32> to vector<32x128xf32>
    %65 = arith.addf %63, %64 : vector<32x128xf32>
    %66 = arith.addf %21, %16 : vector<1x128xf32>
    %cst_33 = arith.constant 0.000000e+00 : f32
    %67 = vector.broadcast %cst_33 : f32 to vector<1x128xf32>
    %68 = arith.cmpf ogt, %66, %67 : vector<1x128xf32>
    %cst_34 = arith.constant 2.000000e-01 : f32
    %69 = vector.broadcast %cst_34 : f32 to vector<1x128xf32>
    %70 = arith.mulf %69, %66 : vector<1x128xf32>
    %71 = arith.select %68, %66, %70 : vector<1x128xi1>, vector<1x128xf32>
    %72 = arith.addf %21, %18 : vector<1x128xf32>
    %cst_35 = arith.constant 0.000000e+00 : f32
    %73 = vector.broadcast %cst_35 : f32 to vector<1x128xf32>
    %74 = arith.cmpf ogt, %72, %73 : vector<1x128xf32>
    %cst_36 = arith.constant 2.000000e-01 : f32
    %75 = vector.broadcast %cst_36 : f32 to vector<1x128xf32>
    %76 = arith.mulf %75, %72 : vector<1x128xf32>
    %77 = arith.select %74, %72, %76 : vector<1x128xi1>, vector<1x128xf32>
    %78 = arith.addf %21, %19 : vector<1x128xf32>
    %cst_37 = arith.constant 0.000000e+00 : f32
    %79 = vector.broadcast %cst_37 : f32 to vector<1x128xf32>
    %80 = arith.cmpf ogt, %78, %79 : vector<1x128xf32>
    %cst_38 = arith.constant 2.000000e-01 : f32
    %81 = vector.broadcast %cst_38 : f32 to vector<1x128xf32>
    %82 = arith.mulf %81, %78 : vector<1x128xf32>
    %83 = arith.select %80, %78, %82 : vector<1x128xi1>, vector<1x128xf32>
    %84 = arith.maximumf %71, %77 : vector<1x128xf32>
    %85 = arith.maximumf %84, %83 : vector<1x128xf32>
    %86 = arith.subf %71, %85 : vector<1x128xf32>
    %87 = math.exp %86 : vector<1x128xf32>
    %88 = arith.subf %77, %85 : vector<1x128xf32>
    %89 = math.exp %88 : vector<1x128xf32>
    %90 = arith.subf %83, %85 : vector<1x128xf32>
    %91 = math.exp %90 : vector<1x128xf32>
    %92 = arith.addf %87, %89 : vector<1x128xf32>
    %93 = arith.addf %92, %91 : vector<1x128xf32>
    %94 = tpu.reciprocal %93 {approx = true} : vector<1x128xf32> -> vector<1x128xf32>
    %95 = arith.mulf %87, %94 : vector<1x128xf32>
    %96 = vector.broadcast %95 : vector<1x128xf32> to vector<32x128xf32>
    %97 = arith.mulf %96, %12 : vector<32x128xf32>
    %98 = arith.mulf %89, %94 : vector<1x128xf32>
    %99 = vector.broadcast %98 : vector<1x128xf32> to vector<32x128xf32>
    %100 = arith.mulf %99, %14 : vector<32x128xf32>
    %101 = arith.addf %97, %100 : vector<32x128xf32>
    %102 = arith.mulf %91, %94 : vector<1x128xf32>
    %103 = vector.broadcast %102 : vector<1x128xf32> to vector<32x128xf32>
    %104 = arith.mulf %103, %15 : vector<32x128xf32>
    %105 = arith.addf %101, %104 : vector<32x128xf32>
    %106 = vector.broadcast %11 : vector<32x1xf32> to vector<32x128xf32>
    %107 = arith.addf %105, %106 : vector<32x128xf32>
    %108 = arith.addf %22, %16 : vector<1x128xf32>
    %cst_39 = arith.constant 0.000000e+00 : f32
    %109 = vector.broadcast %cst_39 : f32 to vector<1x128xf32>
    %110 = arith.cmpf ogt, %108, %109 : vector<1x128xf32>
    %cst_40 = arith.constant 2.000000e-01 : f32
    %111 = vector.broadcast %cst_40 : f32 to vector<1x128xf32>
    %112 = arith.mulf %111, %108 : vector<1x128xf32>
    %113 = arith.select %110, %108, %112 : vector<1x128xi1>, vector<1x128xf32>
    %114 = arith.addf %22, %17 : vector<1x128xf32>
    %cst_41 = arith.constant 0.000000e+00 : f32
    %115 = vector.broadcast %cst_41 : f32 to vector<1x128xf32>
    %116 = arith.cmpf ogt, %114, %115 : vector<1x128xf32>
    %cst_42 = arith.constant 2.000000e-01 : f32
    %117 = vector.broadcast %cst_42 : f32 to vector<1x128xf32>
    %118 = arith.mulf %117, %114 : vector<1x128xf32>
    %119 = arith.select %116, %114, %118 : vector<1x128xi1>, vector<1x128xf32>
    %120 = arith.addf %22, %19 : vector<1x128xf32>
    %cst_43 = arith.constant 0.000000e+00 : f32
    %121 = vector.broadcast %cst_43 : f32 to vector<1x128xf32>
    %122 = arith.cmpf ogt, %120, %121 : vector<1x128xf32>
    %cst_44 = arith.constant 2.000000e-01 : f32
    %123 = vector.broadcast %cst_44 : f32 to vector<1x128xf32>
    %124 = arith.mulf %123, %120 : vector<1x128xf32>
    %125 = arith.select %122, %120, %124 : vector<1x128xi1>, vector<1x128xf32>
    %126 = arith.maximumf %113, %119 : vector<1x128xf32>
    %127 = arith.maximumf %126, %125 : vector<1x128xf32>
    %128 = arith.subf %113, %127 : vector<1x128xf32>
    %129 = math.exp %128 : vector<1x128xf32>
    %130 = arith.subf %119, %127 : vector<1x128xf32>
    %131 = math.exp %130 : vector<1x128xf32>
    %132 = arith.subf %125, %127 : vector<1x128xf32>
    %133 = math.exp %132 : vector<1x128xf32>
    %134 = arith.addf %129, %131 : vector<1x128xf32>
    %135 = arith.addf %134, %133 : vector<1x128xf32>
    %136 = tpu.reciprocal %135 {approx = true} : vector<1x128xf32> -> vector<1x128xf32>
    %137 = arith.mulf %129, %136 : vector<1x128xf32>
    %138 = vector.broadcast %137 : vector<1x128xf32> to vector<32x128xf32>
    %139 = arith.mulf %138, %12 : vector<32x128xf32>
    %140 = arith.mulf %131, %136 : vector<1x128xf32>
    %141 = vector.broadcast %140 : vector<1x128xf32> to vector<32x128xf32>
    %142 = arith.mulf %141, %13 : vector<32x128xf32>
    %143 = arith.addf %139, %142 : vector<32x128xf32>
    %144 = arith.mulf %133, %136 : vector<1x128xf32>
    %145 = vector.broadcast %144 : vector<1x128xf32> to vector<32x128xf32>
    %146 = arith.mulf %145, %15 : vector<32x128xf32>
    %147 = arith.addf %143, %146 : vector<32x128xf32>
    %148 = vector.broadcast %11 : vector<32x1xf32> to vector<32x128xf32>
    %149 = arith.addf %147, %148 : vector<32x128xf32>
    %150 = arith.addf %23, %16 : vector<1x128xf32>
    %cst_45 = arith.constant 0.000000e+00 : f32
    %151 = vector.broadcast %cst_45 : f32 to vector<1x128xf32>
    %152 = arith.cmpf ogt, %150, %151 : vector<1x128xf32>
    %cst_46 = arith.constant 2.000000e-01 : f32
    %153 = vector.broadcast %cst_46 : f32 to vector<1x128xf32>
    %154 = arith.mulf %153, %150 : vector<1x128xf32>
    %155 = arith.select %152, %150, %154 : vector<1x128xi1>, vector<1x128xf32>
    %156 = arith.addf %23, %17 : vector<1x128xf32>
    %cst_47 = arith.constant 0.000000e+00 : f32
    %157 = vector.broadcast %cst_47 : f32 to vector<1x128xf32>
    %158 = arith.cmpf ogt, %156, %157 : vector<1x128xf32>
    %cst_48 = arith.constant 2.000000e-01 : f32
    %159 = vector.broadcast %cst_48 : f32 to vector<1x128xf32>
    %160 = arith.mulf %159, %156 : vector<1x128xf32>
    %161 = arith.select %158, %156, %160 : vector<1x128xi1>, vector<1x128xf32>
    %162 = arith.addf %23, %18 : vector<1x128xf32>
    %cst_49 = arith.constant 0.000000e+00 : f32
    %163 = vector.broadcast %cst_49 : f32 to vector<1x128xf32>
    %164 = arith.cmpf ogt, %162, %163 : vector<1x128xf32>
    %cst_50 = arith.constant 2.000000e-01 : f32
    %165 = vector.broadcast %cst_50 : f32 to vector<1x128xf32>
    %166 = arith.mulf %165, %162 : vector<1x128xf32>
    %167 = arith.select %164, %162, %166 : vector<1x128xi1>, vector<1x128xf32>
    %168 = arith.maximumf %155, %161 : vector<1x128xf32>
    %169 = arith.maximumf %168, %167 : vector<1x128xf32>
    %170 = arith.subf %155, %169 : vector<1x128xf32>
    %171 = math.exp %170 : vector<1x128xf32>
    %172 = arith.subf %161, %169 : vector<1x128xf32>
    %173 = math.exp %172 : vector<1x128xf32>
    %174 = arith.subf %167, %169 : vector<1x128xf32>
    %175 = math.exp %174 : vector<1x128xf32>
    %176 = arith.addf %171, %173 : vector<1x128xf32>
    %177 = arith.addf %176, %175 : vector<1x128xf32>
    %178 = tpu.reciprocal %177 {approx = true} : vector<1x128xf32> -> vector<1x128xf32>
    %179 = arith.mulf %171, %178 : vector<1x128xf32>
    %180 = vector.broadcast %179 : vector<1x128xf32> to vector<32x128xf32>
    %181 = arith.mulf %180, %12 : vector<32x128xf32>
    %182 = arith.mulf %173, %178 : vector<1x128xf32>
    %183 = vector.broadcast %182 : vector<1x128xf32> to vector<32x128xf32>
    %184 = arith.mulf %183, %13 : vector<32x128xf32>
    %185 = arith.addf %181, %184 : vector<32x128xf32>
    %186 = arith.mulf %175, %178 : vector<1x128xf32>
    %187 = vector.broadcast %186 : vector<1x128xf32> to vector<32x128xf32>
    %188 = arith.mulf %187, %14 : vector<32x128xf32>
    %189 = arith.addf %185, %188 : vector<32x128xf32>
    %190 = vector.broadcast %11 : vector<32x1xf32> to vector<32x128xf32>
    %191 = arith.addf %189, %190 : vector<32x128xf32>
    %cst_51 = arith.constant 0.000000e+00 : f32
    %192 = vector.broadcast %cst_51 : f32 to vector<32x128xf32>
    %193 = arith.maximumf %65, %192 : vector<32x128xf32>
    %cst_52 = arith.constant 0.000000e+00 : f32
    %194 = vector.broadcast %cst_52 : f32 to vector<32x128xf32>
    %195 = arith.maximumf %107, %194 : vector<32x128xf32>
    %cst_53 = arith.constant 0.000000e+00 : f32
    %196 = vector.broadcast %cst_53 : f32 to vector<32x128xf32>
    %197 = arith.maximumf %149, %196 : vector<32x128xf32>
    %cst_54 = arith.constant 0.000000e+00 : f32
    %198 = vector.broadcast %cst_54 : f32 to vector<32x128xf32>
    %199 = arith.maximumf %191, %198 : vector<32x128xf32>
    %c0_55 = arith.constant 0 : index
    %c0_56 = arith.constant 0 : index
    %200 = vector.load %arg6[%c0_55, %c0_56] : memref<32x32xf32, #tpu.memory_space<vmem>>, vector<32x32xf32>
    %c0_57 = arith.constant 0 : index
    %c0_58 = arith.constant 0 : index
    %201 = vector.load %arg7[%c0_57, %c0_58] : memref<1x32xf32, #tpu.memory_space<vmem>>, vector<1x32xf32>
    %c0_59 = arith.constant 0 : index
    %c0_60 = arith.constant 0 : index
    %202 = vector.load %arg8[%c0_59, %c0_60] : memref<1x32xf32, #tpu.memory_space<vmem>>, vector<1x32xf32>
    %c0_61 = arith.constant 0 : index
    %c0_62 = arith.constant 0 : index
    %203 = vector.load %arg9[%c0_61, %c0_62] : memref<32x1xf32, #tpu.memory_space<vmem>>, vector<32x1xf32>
    %cst_63 = arith.constant dense<0.000000e+00> : vector<32x128xf32>
    %204 = tpu.matmul %200, %193, %cst_63 {dimension_numbers = #tpu.dot_dimension_numbers<[1], [0], [0], [1], [0, 0, 1, 1], [], []>} : vector<32x32xf32>, vector<32x128xf32>, vector<32x128xf32> -> vector<32x128xf32>
    %cst_64 = arith.constant dense<0.000000e+00> : vector<32x128xf32>
    %205 = tpu.matmul %200, %195, %cst_64 {dimension_numbers = #tpu.dot_dimension_numbers<[1], [0], [0], [1], [0, 0, 1, 1], [], []>} : vector<32x32xf32>, vector<32x128xf32>, vector<32x128xf32> -> vector<32x128xf32>
    %cst_65 = arith.constant dense<0.000000e+00> : vector<32x128xf32>
    %206 = tpu.matmul %200, %197, %cst_65 {dimension_numbers = #tpu.dot_dimension_numbers<[1], [0], [0], [1], [0, 0, 1, 1], [], []>} : vector<32x32xf32>, vector<32x128xf32>, vector<32x128xf32> -> vector<32x128xf32>
    %cst_66 = arith.constant dense<0.000000e+00> : vector<32x128xf32>
    %207 = tpu.matmul %200, %199, %cst_66 {dimension_numbers = #tpu.dot_dimension_numbers<[1], [0], [0], [1], [0, 0, 1, 1], [], []>} : vector<32x32xf32>, vector<32x128xf32>, vector<32x128xf32> -> vector<32x128xf32>
    %cst_67 = arith.constant dense<0.000000e+00> : vector<1x128xf32>
    %208 = tpu.matmul %201, %204, %cst_67 {dimension_numbers = #tpu.dot_dimension_numbers<[1], [0], [0], [1], [0, 0, 1, 1], [], []>} : vector<1x32xf32>, vector<32x128xf32>, vector<1x128xf32> -> vector<1x128xf32>
    %cst_68 = arith.constant dense<0.000000e+00> : vector<1x128xf32>
    %209 = tpu.matmul %201, %205, %cst_68 {dimension_numbers = #tpu.dot_dimension_numbers<[1], [0], [0], [1], [0, 0, 1, 1], [], []>} : vector<1x32xf32>, vector<32x128xf32>, vector<1x128xf32> -> vector<1x128xf32>
    %cst_69 = arith.constant dense<0.000000e+00> : vector<1x128xf32>
    %210 = tpu.matmul %201, %206, %cst_69 {dimension_numbers = #tpu.dot_dimension_numbers<[1], [0], [0], [1], [0, 0, 1, 1], [], []>} : vector<1x32xf32>, vector<32x128xf32>, vector<1x128xf32> -> vector<1x128xf32>
    %cst_70 = arith.constant dense<0.000000e+00> : vector<1x128xf32>
    %211 = tpu.matmul %201, %207, %cst_70 {dimension_numbers = #tpu.dot_dimension_numbers<[1], [0], [0], [1], [0, 0, 1, 1], [], []>} : vector<1x32xf32>, vector<32x128xf32>, vector<1x128xf32> -> vector<1x128xf32>
    %cst_71 = arith.constant dense<0.000000e+00> : vector<1x128xf32>
    %212 = tpu.matmul %202, %204, %cst_71 {dimension_numbers = #tpu.dot_dimension_numbers<[1], [0], [0], [1], [0, 0, 1, 1], [], []>} : vector<1x32xf32>, vector<32x128xf32>, vector<1x128xf32> -> vector<1x128xf32>
    %cst_72 = arith.constant dense<0.000000e+00> : vector<1x128xf32>
    %213 = tpu.matmul %202, %205, %cst_72 {dimension_numbers = #tpu.dot_dimension_numbers<[1], [0], [0], [1], [0, 0, 1, 1], [], []>} : vector<1x32xf32>, vector<32x128xf32>, vector<1x128xf32> -> vector<1x128xf32>
    %cst_73 = arith.constant dense<0.000000e+00> : vector<1x128xf32>
    %214 = tpu.matmul %202, %206, %cst_73 {dimension_numbers = #tpu.dot_dimension_numbers<[1], [0], [0], [1], [0, 0, 1, 1], [], []>} : vector<1x32xf32>, vector<32x128xf32>, vector<1x128xf32> -> vector<1x128xf32>
    %cst_74 = arith.constant dense<0.000000e+00> : vector<1x128xf32>
    %215 = tpu.matmul %202, %207, %cst_74 {dimension_numbers = #tpu.dot_dimension_numbers<[1], [0], [0], [1], [0, 0, 1, 1], [], []>} : vector<1x32xf32>, vector<32x128xf32>, vector<1x128xf32> -> vector<1x128xf32>
    %216 = arith.addf %212, %209 : vector<1x128xf32>
    %cst_75 = arith.constant 0.000000e+00 : f32
    %217 = vector.broadcast %cst_75 : f32 to vector<1x128xf32>
    %218 = arith.cmpf ogt, %216, %217 : vector<1x128xf32>
    %cst_76 = arith.constant 2.000000e-01 : f32
    %219 = vector.broadcast %cst_76 : f32 to vector<1x128xf32>
    %220 = arith.mulf %219, %216 : vector<1x128xf32>
    %221 = arith.select %218, %216, %220 : vector<1x128xi1>, vector<1x128xf32>
    %222 = arith.addf %212, %210 : vector<1x128xf32>
    %cst_77 = arith.constant 0.000000e+00 : f32
    %223 = vector.broadcast %cst_77 : f32 to vector<1x128xf32>
    %224 = arith.cmpf ogt, %222, %223 : vector<1x128xf32>
    %cst_78 = arith.constant 2.000000e-01 : f32
    %225 = vector.broadcast %cst_78 : f32 to vector<1x128xf32>
    %226 = arith.mulf %225, %222 : vector<1x128xf32>
    %227 = arith.select %224, %222, %226 : vector<1x128xi1>, vector<1x128xf32>
    %228 = arith.addf %212, %211 : vector<1x128xf32>
    %cst_79 = arith.constant 0.000000e+00 : f32
    %229 = vector.broadcast %cst_79 : f32 to vector<1x128xf32>
    %230 = arith.cmpf ogt, %228, %229 : vector<1x128xf32>
    %cst_80 = arith.constant 2.000000e-01 : f32
    %231 = vector.broadcast %cst_80 : f32 to vector<1x128xf32>
    %232 = arith.mulf %231, %228 : vector<1x128xf32>
    %233 = arith.select %230, %228, %232 : vector<1x128xi1>, vector<1x128xf32>
    %234 = arith.maximumf %221, %227 : vector<1x128xf32>
    %235 = arith.maximumf %234, %233 : vector<1x128xf32>
    %236 = arith.subf %221, %235 : vector<1x128xf32>
    %237 = math.exp %236 : vector<1x128xf32>
    %238 = arith.subf %227, %235 : vector<1x128xf32>
    %239 = math.exp %238 : vector<1x128xf32>
    %240 = arith.subf %233, %235 : vector<1x128xf32>
    %241 = math.exp %240 : vector<1x128xf32>
    %242 = arith.addf %237, %239 : vector<1x128xf32>
    %243 = arith.addf %242, %241 : vector<1x128xf32>
    %244 = tpu.reciprocal %243 {approx = true} : vector<1x128xf32> -> vector<1x128xf32>
    %245 = arith.mulf %237, %244 : vector<1x128xf32>
    %246 = vector.broadcast %245 : vector<1x128xf32> to vector<32x128xf32>
    %247 = arith.mulf %246, %205 : vector<32x128xf32>
    %248 = arith.mulf %239, %244 : vector<1x128xf32>
    %249 = vector.broadcast %248 : vector<1x128xf32> to vector<32x128xf32>
    %250 = arith.mulf %249, %206 : vector<32x128xf32>
    %251 = arith.addf %247, %250 : vector<32x128xf32>
    %252 = arith.mulf %241, %244 : vector<1x128xf32>
    %253 = vector.broadcast %252 : vector<1x128xf32> to vector<32x128xf32>
    %254 = arith.mulf %253, %207 : vector<32x128xf32>
    %255 = arith.addf %251, %254 : vector<32x128xf32>
    %256 = vector.broadcast %203 : vector<32x1xf32> to vector<32x128xf32>
    %257 = arith.addf %255, %256 : vector<32x128xf32>
    %258 = arith.addf %213, %208 : vector<1x128xf32>
    %cst_81 = arith.constant 0.000000e+00 : f32
    %259 = vector.broadcast %cst_81 : f32 to vector<1x128xf32>
    %260 = arith.cmpf ogt, %258, %259 : vector<1x128xf32>
    %cst_82 = arith.constant 2.000000e-01 : f32
    %261 = vector.broadcast %cst_82 : f32 to vector<1x128xf32>
    %262 = arith.mulf %261, %258 : vector<1x128xf32>
    %263 = arith.select %260, %258, %262 : vector<1x128xi1>, vector<1x128xf32>
    %264 = arith.addf %213, %210 : vector<1x128xf32>
    %cst_83 = arith.constant 0.000000e+00 : f32
    %265 = vector.broadcast %cst_83 : f32 to vector<1x128xf32>
    %266 = arith.cmpf ogt, %264, %265 : vector<1x128xf32>
    %cst_84 = arith.constant 2.000000e-01 : f32
    %267 = vector.broadcast %cst_84 : f32 to vector<1x128xf32>
    %268 = arith.mulf %267, %264 : vector<1x128xf32>
    %269 = arith.select %266, %264, %268 : vector<1x128xi1>, vector<1x128xf32>
    %270 = arith.addf %213, %211 : vector<1x128xf32>
    %cst_85 = arith.constant 0.000000e+00 : f32
    %271 = vector.broadcast %cst_85 : f32 to vector<1x128xf32>
    %272 = arith.cmpf ogt, %270, %271 : vector<1x128xf32>
    %cst_86 = arith.constant 2.000000e-01 : f32
    %273 = vector.broadcast %cst_86 : f32 to vector<1x128xf32>
    %274 = arith.mulf %273, %270 : vector<1x128xf32>
    %275 = arith.select %272, %270, %274 : vector<1x128xi1>, vector<1x128xf32>
    %276 = arith.maximumf %263, %269 : vector<1x128xf32>
    %277 = arith.maximumf %276, %275 : vector<1x128xf32>
    %278 = arith.subf %263, %277 : vector<1x128xf32>
    %279 = math.exp %278 : vector<1x128xf32>
    %280 = arith.subf %269, %277 : vector<1x128xf32>
    %281 = math.exp %280 : vector<1x128xf32>
    %282 = arith.subf %275, %277 : vector<1x128xf32>
    %283 = math.exp %282 : vector<1x128xf32>
    %284 = arith.addf %279, %281 : vector<1x128xf32>
    %285 = arith.addf %284, %283 : vector<1x128xf32>
    %286 = tpu.reciprocal %285 {approx = true} : vector<1x128xf32> -> vector<1x128xf32>
    %287 = arith.mulf %279, %286 : vector<1x128xf32>
    %288 = vector.broadcast %287 : vector<1x128xf32> to vector<32x128xf32>
    %289 = arith.mulf %288, %204 : vector<32x128xf32>
    %290 = arith.mulf %281, %286 : vector<1x128xf32>
    %291 = vector.broadcast %290 : vector<1x128xf32> to vector<32x128xf32>
    %292 = arith.mulf %291, %206 : vector<32x128xf32>
    %293 = arith.addf %289, %292 : vector<32x128xf32>
    %294 = arith.mulf %283, %286 : vector<1x128xf32>
    %295 = vector.broadcast %294 : vector<1x128xf32> to vector<32x128xf32>
    %296 = arith.mulf %295, %207 : vector<32x128xf32>
    %297 = arith.addf %293, %296 : vector<32x128xf32>
    %298 = vector.broadcast %203 : vector<32x1xf32> to vector<32x128xf32>
    %299 = arith.addf %297, %298 : vector<32x128xf32>
    %300 = arith.addf %214, %208 : vector<1x128xf32>
    %cst_87 = arith.constant 0.000000e+00 : f32
    %301 = vector.broadcast %cst_87 : f32 to vector<1x128xf32>
    %302 = arith.cmpf ogt, %300, %301 : vector<1x128xf32>
    %cst_88 = arith.constant 2.000000e-01 : f32
    %303 = vector.broadcast %cst_88 : f32 to vector<1x128xf32>
    %304 = arith.mulf %303, %300 : vector<1x128xf32>
    %305 = arith.select %302, %300, %304 : vector<1x128xi1>, vector<1x128xf32>
    %306 = arith.addf %214, %209 : vector<1x128xf32>
    %cst_89 = arith.constant 0.000000e+00 : f32
    %307 = vector.broadcast %cst_89 : f32 to vector<1x128xf32>
    %308 = arith.cmpf ogt, %306, %307 : vector<1x128xf32>
    %cst_90 = arith.constant 2.000000e-01 : f32
    %309 = vector.broadcast %cst_90 : f32 to vector<1x128xf32>
    %310 = arith.mulf %309, %306 : vector<1x128xf32>
    %311 = arith.select %308, %306, %310 : vector<1x128xi1>, vector<1x128xf32>
    %312 = arith.addf %214, %211 : vector<1x128xf32>
    %cst_91 = arith.constant 0.000000e+00 : f32
    %313 = vector.broadcast %cst_91 : f32 to vector<1x128xf32>
    %314 = arith.cmpf ogt, %312, %313 : vector<1x128xf32>
    %cst_92 = arith.constant 2.000000e-01 : f32
    %315 = vector.broadcast %cst_92 : f32 to vector<1x128xf32>
    %316 = arith.mulf %315, %312 : vector<1x128xf32>
    %317 = arith.select %314, %312, %316 : vector<1x128xi1>, vector<1x128xf32>
    %318 = arith.maximumf %305, %311 : vector<1x128xf32>
    %319 = arith.maximumf %318, %317 : vector<1x128xf32>
    %320 = arith.subf %305, %319 : vector<1x128xf32>
    %321 = math.exp %320 : vector<1x128xf32>
    %322 = arith.subf %311, %319 : vector<1x128xf32>
    %323 = math.exp %322 : vector<1x128xf32>
    %324 = arith.subf %317, %319 : vector<1x128xf32>
    %325 = math.exp %324 : vector<1x128xf32>
    %326 = arith.addf %321, %323 : vector<1x128xf32>
    %327 = arith.addf %326, %325 : vector<1x128xf32>
    %328 = tpu.reciprocal %327 {approx = true} : vector<1x128xf32> -> vector<1x128xf32>
    %329 = arith.mulf %321, %328 : vector<1x128xf32>
    %330 = vector.broadcast %329 : vector<1x128xf32> to vector<32x128xf32>
    %331 = arith.mulf %330, %204 : vector<32x128xf32>
    %332 = arith.mulf %323, %328 : vector<1x128xf32>
    %333 = vector.broadcast %332 : vector<1x128xf32> to vector<32x128xf32>
    %334 = arith.mulf %333, %205 : vector<32x128xf32>
    %335 = arith.addf %331, %334 : vector<32x128xf32>
    %336 = arith.mulf %325, %328 : vector<1x128xf32>
    %337 = vector.broadcast %336 : vector<1x128xf32> to vector<32x128xf32>
    %338 = arith.mulf %337, %207 : vector<32x128xf32>
    %339 = arith.addf %335, %338 : vector<32x128xf32>
    %340 = vector.broadcast %203 : vector<32x1xf32> to vector<32x128xf32>
    %341 = arith.addf %339, %340 : vector<32x128xf32>
    %342 = arith.addf %215, %208 : vector<1x128xf32>
    %cst_93 = arith.constant 0.000000e+00 : f32
    %343 = vector.broadcast %cst_93 : f32 to vector<1x128xf32>
    %344 = arith.cmpf ogt, %342, %343 : vector<1x128xf32>
    %cst_94 = arith.constant 2.000000e-01 : f32
    %345 = vector.broadcast %cst_94 : f32 to vector<1x128xf32>
    %346 = arith.mulf %345, %342 : vector<1x128xf32>
    %347 = arith.select %344, %342, %346 : vector<1x128xi1>, vector<1x128xf32>
    %348 = arith.addf %215, %209 : vector<1x128xf32>
    %cst_95 = arith.constant 0.000000e+00 : f32
    %349 = vector.broadcast %cst_95 : f32 to vector<1x128xf32>
    %350 = arith.cmpf ogt, %348, %349 : vector<1x128xf32>
    %cst_96 = arith.constant 2.000000e-01 : f32
    %351 = vector.broadcast %cst_96 : f32 to vector<1x128xf32>
    %352 = arith.mulf %351, %348 : vector<1x128xf32>
    %353 = arith.select %350, %348, %352 : vector<1x128xi1>, vector<1x128xf32>
    %354 = arith.addf %215, %210 : vector<1x128xf32>
    %cst_97 = arith.constant 0.000000e+00 : f32
    %355 = vector.broadcast %cst_97 : f32 to vector<1x128xf32>
    %356 = arith.cmpf ogt, %354, %355 : vector<1x128xf32>
    %cst_98 = arith.constant 2.000000e-01 : f32
    %357 = vector.broadcast %cst_98 : f32 to vector<1x128xf32>
    %358 = arith.mulf %357, %354 : vector<1x128xf32>
    %359 = arith.select %356, %354, %358 : vector<1x128xi1>, vector<1x128xf32>
    %360 = arith.maximumf %347, %353 : vector<1x128xf32>
    %361 = arith.maximumf %360, %359 : vector<1x128xf32>
    %362 = arith.subf %347, %361 : vector<1x128xf32>
    %363 = math.exp %362 : vector<1x128xf32>
    %364 = arith.subf %353, %361 : vector<1x128xf32>
    %365 = math.exp %364 : vector<1x128xf32>
    %366 = arith.subf %359, %361 : vector<1x128xf32>
    %367 = math.exp %366 : vector<1x128xf32>
    %368 = arith.addf %363, %365 : vector<1x128xf32>
    %369 = arith.addf %368, %367 : vector<1x128xf32>
    %370 = tpu.reciprocal %369 {approx = true} : vector<1x128xf32> -> vector<1x128xf32>
    %371 = arith.mulf %363, %370 : vector<1x128xf32>
    %372 = vector.broadcast %371 : vector<1x128xf32> to vector<32x128xf32>
    %373 = arith.mulf %372, %204 : vector<32x128xf32>
    %374 = arith.mulf %365, %370 : vector<1x128xf32>
    %375 = vector.broadcast %374 : vector<1x128xf32> to vector<32x128xf32>
    %376 = arith.mulf %375, %205 : vector<32x128xf32>
    %377 = arith.addf %373, %376 : vector<32x128xf32>
    %378 = arith.mulf %367, %370 : vector<1x128xf32>
    %379 = vector.broadcast %378 : vector<1x128xf32> to vector<32x128xf32>
    %380 = arith.mulf %379, %206 : vector<32x128xf32>
    %381 = arith.addf %377, %380 : vector<32x128xf32>
    %382 = vector.broadcast %203 : vector<32x1xf32> to vector<32x128xf32>
    %383 = arith.addf %381, %382 : vector<32x128xf32>
    %cst_99 = arith.constant 0.000000e+00 : f32
    %384 = vector.broadcast %cst_99 : f32 to vector<32x128xf32>
    %385 = arith.maximumf %257, %384 : vector<32x128xf32>
    %cst_100 = arith.constant 0.000000e+00 : f32
    %386 = vector.broadcast %cst_100 : f32 to vector<32x128xf32>
    %387 = arith.maximumf %299, %386 : vector<32x128xf32>
    %cst_101 = arith.constant 0.000000e+00 : f32
    %388 = vector.broadcast %cst_101 : f32 to vector<32x128xf32>
    %389 = arith.maximumf %341, %388 : vector<32x128xf32>
    %cst_102 = arith.constant 0.000000e+00 : f32
    %390 = vector.broadcast %cst_102 : f32 to vector<32x128xf32>
    %391 = arith.maximumf %383, %390 : vector<32x128xf32>
    %c0_103 = arith.constant 0 : index
    %c0_104 = arith.constant 0 : index
    %392 = vector.load %arg10[%c0_103, %c0_104] : memref<32x32xf32, #tpu.memory_space<vmem>>, vector<32x32xf32>
    %c0_105 = arith.constant 0 : index
    %c0_106 = arith.constant 0 : index
    %393 = vector.load %arg11[%c0_105, %c0_106] : memref<1x32xf32, #tpu.memory_space<vmem>>, vector<1x32xf32>
    %c0_107 = arith.constant 0 : index
    %c0_108 = arith.constant 0 : index
    %394 = vector.load %arg12[%c0_107, %c0_108] : memref<1x32xf32, #tpu.memory_space<vmem>>, vector<1x32xf32>
    %c0_109 = arith.constant 0 : index
    %c0_110 = arith.constant 0 : index
    %395 = vector.load %arg13[%c0_109, %c0_110] : memref<32x1xf32, #tpu.memory_space<vmem>>, vector<32x1xf32>
    %cst_111 = arith.constant dense<0.000000e+00> : vector<32x128xf32>
    %396 = tpu.matmul %392, %385, %cst_111 {dimension_numbers = #tpu.dot_dimension_numbers<[1], [0], [0], [1], [0, 0, 1, 1], [], []>} : vector<32x32xf32>, vector<32x128xf32>, vector<32x128xf32> -> vector<32x128xf32>
    %cst_112 = arith.constant dense<0.000000e+00> : vector<32x128xf32>
    %397 = tpu.matmul %392, %387, %cst_112 {dimension_numbers = #tpu.dot_dimension_numbers<[1], [0], [0], [1], [0, 0, 1, 1], [], []>} : vector<32x32xf32>, vector<32x128xf32>, vector<32x128xf32> -> vector<32x128xf32>
    %cst_113 = arith.constant dense<0.000000e+00> : vector<32x128xf32>
    %398 = tpu.matmul %392, %389, %cst_113 {dimension_numbers = #tpu.dot_dimension_numbers<[1], [0], [0], [1], [0, 0, 1, 1], [], []>} : vector<32x32xf32>, vector<32x128xf32>, vector<32x128xf32> -> vector<32x128xf32>
    %cst_114 = arith.constant dense<0.000000e+00> : vector<32x128xf32>
    %399 = tpu.matmul %392, %391, %cst_114 {dimension_numbers = #tpu.dot_dimension_numbers<[1], [0], [0], [1], [0, 0, 1, 1], [], []>} : vector<32x32xf32>, vector<32x128xf32>, vector<32x128xf32> -> vector<32x128xf32>
    %cst_115 = arith.constant dense<0.000000e+00> : vector<1x128xf32>
    %400 = tpu.matmul %393, %396, %cst_115 {dimension_numbers = #tpu.dot_dimension_numbers<[1], [0], [0], [1], [0, 0, 1, 1], [], []>} : vector<1x32xf32>, vector<32x128xf32>, vector<1x128xf32> -> vector<1x128xf32>
    %cst_116 = arith.constant dense<0.000000e+00> : vector<1x128xf32>
    %401 = tpu.matmul %393, %397, %cst_116 {dimension_numbers = #tpu.dot_dimension_numbers<[1], [0], [0], [1], [0, 0, 1, 1], [], []>} : vector<1x32xf32>, vector<32x128xf32>, vector<1x128xf32> -> vector<1x128xf32>
    %cst_117 = arith.constant dense<0.000000e+00> : vector<1x128xf32>
    %402 = tpu.matmul %393, %398, %cst_117 {dimension_numbers = #tpu.dot_dimension_numbers<[1], [0], [0], [1], [0, 0, 1, 1], [], []>} : vector<1x32xf32>, vector<32x128xf32>, vector<1x128xf32> -> vector<1x128xf32>
    %cst_118 = arith.constant dense<0.000000e+00> : vector<1x128xf32>
    %403 = tpu.matmul %393, %399, %cst_118 {dimension_numbers = #tpu.dot_dimension_numbers<[1], [0], [0], [1], [0, 0, 1, 1], [], []>} : vector<1x32xf32>, vector<32x128xf32>, vector<1x128xf32> -> vector<1x128xf32>
    %cst_119 = arith.constant dense<0.000000e+00> : vector<1x128xf32>
    %404 = tpu.matmul %394, %396, %cst_119 {dimension_numbers = #tpu.dot_dimension_numbers<[1], [0], [0], [1], [0, 0, 1, 1], [], []>} : vector<1x32xf32>, vector<32x128xf32>, vector<1x128xf32> -> vector<1x128xf32>
    %cst_120 = arith.constant dense<0.000000e+00> : vector<1x128xf32>
    %405 = tpu.matmul %394, %397, %cst_120 {dimension_numbers = #tpu.dot_dimension_numbers<[1], [0], [0], [1], [0, 0, 1, 1], [], []>} : vector<1x32xf32>, vector<32x128xf32>, vector<1x128xf32> -> vector<1x128xf32>
    %cst_121 = arith.constant dense<0.000000e+00> : vector<1x128xf32>
    %406 = tpu.matmul %394, %398, %cst_121 {dimension_numbers = #tpu.dot_dimension_numbers<[1], [0], [0], [1], [0, 0, 1, 1], [], []>} : vector<1x32xf32>, vector<32x128xf32>, vector<1x128xf32> -> vector<1x128xf32>
    %cst_122 = arith.constant dense<0.000000e+00> : vector<1x128xf32>
    %407 = tpu.matmul %394, %399, %cst_122 {dimension_numbers = #tpu.dot_dimension_numbers<[1], [0], [0], [1], [0, 0, 1, 1], [], []>} : vector<1x32xf32>, vector<32x128xf32>, vector<1x128xf32> -> vector<1x128xf32>
    %408 = arith.addf %404, %401 : vector<1x128xf32>
    %cst_123 = arith.constant 0.000000e+00 : f32
    %409 = vector.broadcast %cst_123 : f32 to vector<1x128xf32>
    %410 = arith.cmpf ogt, %408, %409 : vector<1x128xf32>
    %cst_124 = arith.constant 2.000000e-01 : f32
    %411 = vector.broadcast %cst_124 : f32 to vector<1x128xf32>
    %412 = arith.mulf %411, %408 : vector<1x128xf32>
    %413 = arith.select %410, %408, %412 : vector<1x128xi1>, vector<1x128xf32>
    %414 = arith.addf %404, %402 : vector<1x128xf32>
    %cst_125 = arith.constant 0.000000e+00 : f32
    %415 = vector.broadcast %cst_125 : f32 to vector<1x128xf32>
    %416 = arith.cmpf ogt, %414, %415 : vector<1x128xf32>
    %cst_126 = arith.constant 2.000000e-01 : f32
    %417 = vector.broadcast %cst_126 : f32 to vector<1x128xf32>
    %418 = arith.mulf %417, %414 : vector<1x128xf32>
    %419 = arith.select %416, %414, %418 : vector<1x128xi1>, vector<1x128xf32>
    %420 = arith.addf %404, %403 : vector<1x128xf32>
    %cst_127 = arith.constant 0.000000e+00 : f32
    %421 = vector.broadcast %cst_127 : f32 to vector<1x128xf32>
    %422 = arith.cmpf ogt, %420, %421 : vector<1x128xf32>
    %cst_128 = arith.constant 2.000000e-01 : f32
    %423 = vector.broadcast %cst_128 : f32 to vector<1x128xf32>
    %424 = arith.mulf %423, %420 : vector<1x128xf32>
    %425 = arith.select %422, %420, %424 : vector<1x128xi1>, vector<1x128xf32>
    %426 = arith.maximumf %413, %419 : vector<1x128xf32>
    %427 = arith.maximumf %426, %425 : vector<1x128xf32>
    %428 = arith.subf %413, %427 : vector<1x128xf32>
    %429 = math.exp %428 : vector<1x128xf32>
    %430 = arith.subf %419, %427 : vector<1x128xf32>
    %431 = math.exp %430 : vector<1x128xf32>
    %432 = arith.subf %425, %427 : vector<1x128xf32>
    %433 = math.exp %432 : vector<1x128xf32>
    %434 = arith.addf %429, %431 : vector<1x128xf32>
    %435 = arith.addf %434, %433 : vector<1x128xf32>
    %436 = tpu.reciprocal %435 {approx = true} : vector<1x128xf32> -> vector<1x128xf32>
    %437 = arith.mulf %429, %436 : vector<1x128xf32>
    %438 = vector.broadcast %437 : vector<1x128xf32> to vector<32x128xf32>
    %439 = arith.mulf %438, %397 : vector<32x128xf32>
    %440 = arith.mulf %431, %436 : vector<1x128xf32>
    %441 = vector.broadcast %440 : vector<1x128xf32> to vector<32x128xf32>
    %442 = arith.mulf %441, %398 : vector<32x128xf32>
    %443 = arith.addf %439, %442 : vector<32x128xf32>
    %444 = arith.mulf %433, %436 : vector<1x128xf32>
    %445 = vector.broadcast %444 : vector<1x128xf32> to vector<32x128xf32>
    %446 = arith.mulf %445, %399 : vector<32x128xf32>
    %447 = arith.addf %443, %446 : vector<32x128xf32>
    %448 = vector.broadcast %395 : vector<32x1xf32> to vector<32x128xf32>
    %449 = arith.addf %447, %448 : vector<32x128xf32>
    %450 = arith.addf %405, %400 : vector<1x128xf32>
    %cst_129 = arith.constant 0.000000e+00 : f32
    %451 = vector.broadcast %cst_129 : f32 to vector<1x128xf32>
    %452 = arith.cmpf ogt, %450, %451 : vector<1x128xf32>
    %cst_130 = arith.constant 2.000000e-01 : f32
    %453 = vector.broadcast %cst_130 : f32 to vector<1x128xf32>
    %454 = arith.mulf %453, %450 : vector<1x128xf32>
    %455 = arith.select %452, %450, %454 : vector<1x128xi1>, vector<1x128xf32>
    %456 = arith.addf %405, %402 : vector<1x128xf32>
    %cst_131 = arith.constant 0.000000e+00 : f32
    %457 = vector.broadcast %cst_131 : f32 to vector<1x128xf32>
    %458 = arith.cmpf ogt, %456, %457 : vector<1x128xf32>
    %cst_132 = arith.constant 2.000000e-01 : f32
    %459 = vector.broadcast %cst_132 : f32 to vector<1x128xf32>
    %460 = arith.mulf %459, %456 : vector<1x128xf32>
    %461 = arith.select %458, %456, %460 : vector<1x128xi1>, vector<1x128xf32>
    %462 = arith.addf %405, %403 : vector<1x128xf32>
    %cst_133 = arith.constant 0.000000e+00 : f32
    %463 = vector.broadcast %cst_133 : f32 to vector<1x128xf32>
    %464 = arith.cmpf ogt, %462, %463 : vector<1x128xf32>
    %cst_134 = arith.constant 2.000000e-01 : f32
    %465 = vector.broadcast %cst_134 : f32 to vector<1x128xf32>
    %466 = arith.mulf %465, %462 : vector<1x128xf32>
    %467 = arith.select %464, %462, %466 : vector<1x128xi1>, vector<1x128xf32>
    %468 = arith.maximumf %455, %461 : vector<1x128xf32>
    %469 = arith.maximumf %468, %467 : vector<1x128xf32>
    %470 = arith.subf %455, %469 : vector<1x128xf32>
    %471 = math.exp %470 : vector<1x128xf32>
    %472 = arith.subf %461, %469 : vector<1x128xf32>
    %473 = math.exp %472 : vector<1x128xf32>
    %474 = arith.subf %467, %469 : vector<1x128xf32>
    %475 = math.exp %474 : vector<1x128xf32>
    %476 = arith.addf %471, %473 : vector<1x128xf32>
    %477 = arith.addf %476, %475 : vector<1x128xf32>
    %478 = tpu.reciprocal %477 {approx = true} : vector<1x128xf32> -> vector<1x128xf32>
    %479 = arith.mulf %471, %478 : vector<1x128xf32>
    %480 = vector.broadcast %479 : vector<1x128xf32> to vector<32x128xf32>
    %481 = arith.mulf %480, %396 : vector<32x128xf32>
    %482 = arith.mulf %473, %478 : vector<1x128xf32>
    %483 = vector.broadcast %482 : vector<1x128xf32> to vector<32x128xf32>
    %484 = arith.mulf %483, %398 : vector<32x128xf32>
    %485 = arith.addf %481, %484 : vector<32x128xf32>
    %486 = arith.mulf %475, %478 : vector<1x128xf32>
    %487 = vector.broadcast %486 : vector<1x128xf32> to vector<32x128xf32>
    %488 = arith.mulf %487, %399 : vector<32x128xf32>
    %489 = arith.addf %485, %488 : vector<32x128xf32>
    %490 = vector.broadcast %395 : vector<32x1xf32> to vector<32x128xf32>
    %491 = arith.addf %489, %490 : vector<32x128xf32>
    %492 = arith.addf %406, %400 : vector<1x128xf32>
    %cst_135 = arith.constant 0.000000e+00 : f32
    %493 = vector.broadcast %cst_135 : f32 to vector<1x128xf32>
    %494 = arith.cmpf ogt, %492, %493 : vector<1x128xf32>
    %cst_136 = arith.constant 2.000000e-01 : f32
    %495 = vector.broadcast %cst_136 : f32 to vector<1x128xf32>
    %496 = arith.mulf %495, %492 : vector<1x128xf32>
    %497 = arith.select %494, %492, %496 : vector<1x128xi1>, vector<1x128xf32>
    %498 = arith.addf %406, %401 : vector<1x128xf32>
    %cst_137 = arith.constant 0.000000e+00 : f32
    %499 = vector.broadcast %cst_137 : f32 to vector<1x128xf32>
    %500 = arith.cmpf ogt, %498, %499 : vector<1x128xf32>
    %cst_138 = arith.constant 2.000000e-01 : f32
    %501 = vector.broadcast %cst_138 : f32 to vector<1x128xf32>
    %502 = arith.mulf %501, %498 : vector<1x128xf32>
    %503 = arith.select %500, %498, %502 : vector<1x128xi1>, vector<1x128xf32>
    %504 = arith.addf %406, %403 : vector<1x128xf32>
    %cst_139 = arith.constant 0.000000e+00 : f32
    %505 = vector.broadcast %cst_139 : f32 to vector<1x128xf32>
    %506 = arith.cmpf ogt, %504, %505 : vector<1x128xf32>
    %cst_140 = arith.constant 2.000000e-01 : f32
    %507 = vector.broadcast %cst_140 : f32 to vector<1x128xf32>
    %508 = arith.mulf %507, %504 : vector<1x128xf32>
    %509 = arith.select %506, %504, %508 : vector<1x128xi1>, vector<1x128xf32>
    %510 = arith.maximumf %497, %503 : vector<1x128xf32>
    %511 = arith.maximumf %510, %509 : vector<1x128xf32>
    %512 = arith.subf %497, %511 : vector<1x128xf32>
    %513 = math.exp %512 : vector<1x128xf32>
    %514 = arith.subf %503, %511 : vector<1x128xf32>
    %515 = math.exp %514 : vector<1x128xf32>
    %516 = arith.subf %509, %511 : vector<1x128xf32>
    %517 = math.exp %516 : vector<1x128xf32>
    %518 = arith.addf %513, %515 : vector<1x128xf32>
    %519 = arith.addf %518, %517 : vector<1x128xf32>
    %520 = tpu.reciprocal %519 {approx = true} : vector<1x128xf32> -> vector<1x128xf32>
    %521 = arith.mulf %513, %520 : vector<1x128xf32>
    %522 = vector.broadcast %521 : vector<1x128xf32> to vector<32x128xf32>
    %523 = arith.mulf %522, %396 : vector<32x128xf32>
    %524 = arith.mulf %515, %520 : vector<1x128xf32>
    %525 = vector.broadcast %524 : vector<1x128xf32> to vector<32x128xf32>
    %526 = arith.mulf %525, %397 : vector<32x128xf32>
    %527 = arith.addf %523, %526 : vector<32x128xf32>
    %528 = arith.mulf %517, %520 : vector<1x128xf32>
    %529 = vector.broadcast %528 : vector<1x128xf32> to vector<32x128xf32>
    %530 = arith.mulf %529, %399 : vector<32x128xf32>
    %531 = arith.addf %527, %530 : vector<32x128xf32>
    %532 = vector.broadcast %395 : vector<32x1xf32> to vector<32x128xf32>
    %533 = arith.addf %531, %532 : vector<32x128xf32>
    %534 = arith.addf %407, %400 : vector<1x128xf32>
    %cst_141 = arith.constant 0.000000e+00 : f32
    %535 = vector.broadcast %cst_141 : f32 to vector<1x128xf32>
    %536 = arith.cmpf ogt, %534, %535 : vector<1x128xf32>
    %cst_142 = arith.constant 2.000000e-01 : f32
    %537 = vector.broadcast %cst_142 : f32 to vector<1x128xf32>
    %538 = arith.mulf %537, %534 : vector<1x128xf32>
    %539 = arith.select %536, %534, %538 : vector<1x128xi1>, vector<1x128xf32>
    %540 = arith.addf %407, %401 : vector<1x128xf32>
    %cst_143 = arith.constant 0.000000e+00 : f32
    %541 = vector.broadcast %cst_143 : f32 to vector<1x128xf32>
    %542 = arith.cmpf ogt, %540, %541 : vector<1x128xf32>
    %cst_144 = arith.constant 2.000000e-01 : f32
    %543 = vector.broadcast %cst_144 : f32 to vector<1x128xf32>
    %544 = arith.mulf %543, %540 : vector<1x128xf32>
    %545 = arith.select %542, %540, %544 : vector<1x128xi1>, vector<1x128xf32>
    %546 = arith.addf %407, %402 : vector<1x128xf32>
    %cst_145 = arith.constant 0.000000e+00 : f32
    %547 = vector.broadcast %cst_145 : f32 to vector<1x128xf32>
    %548 = arith.cmpf ogt, %546, %547 : vector<1x128xf32>
    %cst_146 = arith.constant 2.000000e-01 : f32
    %549 = vector.broadcast %cst_146 : f32 to vector<1x128xf32>
    %550 = arith.mulf %549, %546 : vector<1x128xf32>
    %551 = arith.select %548, %546, %550 : vector<1x128xi1>, vector<1x128xf32>
    %552 = arith.maximumf %539, %545 : vector<1x128xf32>
    %553 = arith.maximumf %552, %551 : vector<1x128xf32>
    %554 = arith.subf %539, %553 : vector<1x128xf32>
    %555 = math.exp %554 : vector<1x128xf32>
    %556 = arith.subf %545, %553 : vector<1x128xf32>
    %557 = math.exp %556 : vector<1x128xf32>
    %558 = arith.subf %551, %553 : vector<1x128xf32>
    %559 = math.exp %558 : vector<1x128xf32>
    %560 = arith.addf %555, %557 : vector<1x128xf32>
    %561 = arith.addf %560, %559 : vector<1x128xf32>
    %562 = tpu.reciprocal %561 {approx = true} : vector<1x128xf32> -> vector<1x128xf32>
    %563 = arith.mulf %555, %562 : vector<1x128xf32>
    %564 = vector.broadcast %563 : vector<1x128xf32> to vector<32x128xf32>
    %565 = arith.mulf %564, %396 : vector<32x128xf32>
    %566 = arith.mulf %557, %562 : vector<1x128xf32>
    %567 = vector.broadcast %566 : vector<1x128xf32> to vector<32x128xf32>
    %568 = arith.mulf %567, %397 : vector<32x128xf32>
    %569 = arith.addf %565, %568 : vector<32x128xf32>
    %570 = arith.mulf %559, %562 : vector<1x128xf32>
    %571 = vector.broadcast %570 : vector<1x128xf32> to vector<32x128xf32>
    %572 = arith.mulf %571, %398 : vector<32x128xf32>
    %573 = arith.addf %569, %572 : vector<32x128xf32>
    %574 = vector.broadcast %395 : vector<32x1xf32> to vector<32x128xf32>
    %575 = arith.addf %573, %574 : vector<32x128xf32>
    %cst_147 = arith.constant 0.000000e+00 : f32
    %576 = vector.broadcast %cst_147 : f32 to vector<32x128xf32>
    %577 = arith.maximumf %449, %576 : vector<32x128xf32>
    %cst_148 = arith.constant 0.000000e+00 : f32
    %578 = vector.broadcast %cst_148 : f32 to vector<32x128xf32>
    %579 = arith.maximumf %491, %578 : vector<32x128xf32>
    %cst_149 = arith.constant 0.000000e+00 : f32
    %580 = vector.broadcast %cst_149 : f32 to vector<32x128xf32>
    %581 = arith.maximumf %533, %580 : vector<32x128xf32>
    %cst_150 = arith.constant 0.000000e+00 : f32
    %582 = vector.broadcast %cst_150 : f32 to vector<32x128xf32>
    %583 = arith.maximumf %575, %582 : vector<32x128xf32>
    %c0_151 = arith.constant 0 : index
    %c0_152 = arith.constant 0 : index
    %584 = vector.load %arg14[%c0_151, %c0_152] : memref<32x32xf32, #tpu.memory_space<vmem>>, vector<32x32xf32>
    %c0_153 = arith.constant 0 : index
    %c0_154 = arith.constant 0 : index
    %585 = vector.load %arg15[%c0_153, %c0_154] : memref<32x1xf32, #tpu.memory_space<vmem>>, vector<32x1xf32>
    %c0_155 = arith.constant 0 : index
    %c0_156 = arith.constant 0 : index
    %586 = vector.load %arg16[%c0_155, %c0_156] : memref<9x32xf32, #tpu.memory_space<vmem>>, vector<9x32xf32>
    %c0_157 = arith.constant 0 : index
    %c0_158 = arith.constant 0 : index
    %587 = vector.load %arg17[%c0_157, %c0_158] : memref<9x1xf32, #tpu.memory_space<vmem>>, vector<9x1xf32>
    %cst_159 = arith.constant dense<0.000000e+00> : vector<32x128xf32>
    %588 = tpu.matmul %584, %577, %cst_159 {dimension_numbers = #tpu.dot_dimension_numbers<[1], [0], [0], [1], [0, 0, 1, 1], [], []>} : vector<32x32xf32>, vector<32x128xf32>, vector<32x128xf32> -> vector<32x128xf32>
    %589 = vector.broadcast %585 : vector<32x1xf32> to vector<32x128xf32>
    %590 = arith.addf %588, %589 : vector<32x128xf32>
    %cst_160 = arith.constant 0.000000e+00 : f32
    %591 = vector.broadcast %cst_160 : f32 to vector<32x128xf32>
    %592 = arith.maximumf %590, %591 : vector<32x128xf32>
    %cst_161 = arith.constant dense<0.000000e+00> : vector<9x128xf32>
    %593 = tpu.matmul %586, %592, %cst_161 {dimension_numbers = #tpu.dot_dimension_numbers<[1], [0], [0], [1], [0, 0, 1, 1], [], []>} : vector<9x32xf32>, vector<32x128xf32>, vector<9x128xf32> -> vector<9x128xf32>
    %594 = vector.broadcast %587 : vector<9x1xf32> to vector<9x128xf32>
    %595 = arith.addf %593, %594 : vector<9x128xf32>
    %c0_162 = arith.constant 0 : index
    %c0_163 = arith.constant 0 : index
    %c0_164 = arith.constant 0 : index
    %596 = vector.load %arg18[%c0_162, %c0_163, %c0_164] : memref<4x9x128xf32, #tpu.memory_space<vmem>>, vector<1x9x128xf32>
    %597 = vector.shape_cast %596 : vector<1x9x128xf32> to vector<9x128xf32>
    %598 = vector.shape_cast %595 : vector<9x128xf32> to vector<1x9x128xf32>
    tpu.vector_store %arg18[%c0_162, %c0_163, %c0_164], %598 {strides = array<i32>} : memref<4x9x128xf32, #tpu.memory_space<vmem>>, vector<1x9x128xf32>,
    %cst_165 = arith.constant dense<0.000000e+00> : vector<32x128xf32>
    %599 = tpu.matmul %584, %579, %cst_165 {dimension_numbers = #tpu.dot_dimension_numbers<[1], [0], [0], [1], [0, 0, 1, 1], [], []>} : vector<32x32xf32>, vector<32x128xf32>, vector<32x128xf32> -> vector<32x128xf32>
    %600 = vector.broadcast %585 : vector<32x1xf32> to vector<32x128xf32>
    %601 = arith.addf %599, %600 : vector<32x128xf32>
    %cst_166 = arith.constant 0.000000e+00 : f32
    %602 = vector.broadcast %cst_166 : f32 to vector<32x128xf32>
    %603 = arith.maximumf %601, %602 : vector<32x128xf32>
    %cst_167 = arith.constant dense<0.000000e+00> : vector<9x128xf32>
    %604 = tpu.matmul %586, %603, %cst_167 {dimension_numbers = #tpu.dot_dimension_numbers<[1], [0], [0], [1], [0, 0, 1, 1], [], []>} : vector<9x32xf32>, vector<32x128xf32>, vector<9x128xf32> -> vector<9x128xf32>
    %605 = vector.broadcast %587 : vector<9x1xf32> to vector<9x128xf32>
    %606 = arith.addf %604, %605 : vector<9x128xf32>
    %c1_168 = arith.constant 1 : index
    %c0_169 = arith.constant 0 : index
    %c0_170 = arith.constant 0 : index
    %607 = vector.load %arg18[%c1_168, %c0_169, %c0_170] : memref<4x9x128xf32, #tpu.memory_space<vmem>>, vector<1x9x128xf32>
    %608 = vector.shape_cast %607 : vector<1x9x128xf32> to vector<9x128xf32>
    %609 = vector.shape_cast %606 : vector<9x128xf32> to vector<1x9x128xf32>
    tpu.vector_store %arg18[%c1_168, %c0_169, %c0_170], %609 {strides = array<i32>} : memref<4x9x128xf32, #tpu.memory_space<vmem>>, vector<1x9x128xf32>,
    %cst_171 = arith.constant dense<0.000000e+00> : vector<32x128xf32>
    %610 = tpu.matmul %584, %581, %cst_171 {dimension_numbers = #tpu.dot_dimension_numbers<[1], [0], [0], [1], [0, 0, 1, 1], [], []>} : vector<32x32xf32>, vector<32x128xf32>, vector<32x128xf32> -> vector<32x128xf32>
    %611 = vector.broadcast %585 : vector<32x1xf32> to vector<32x128xf32>
    %612 = arith.addf %610, %611 : vector<32x128xf32>
    %cst_172 = arith.constant 0.000000e+00 : f32
    %613 = vector.broadcast %cst_172 : f32 to vector<32x128xf32>
    %614 = arith.maximumf %612, %613 : vector<32x128xf32>
    %cst_173 = arith.constant dense<0.000000e+00> : vector<9x128xf32>
    %615 = tpu.matmul %586, %614, %cst_173 {dimension_numbers = #tpu.dot_dimension_numbers<[1], [0], [0], [1], [0, 0, 1, 1], [], []>} : vector<9x32xf32>, vector<32x128xf32>, vector<9x128xf32> -> vector<9x128xf32>
    %616 = vector.broadcast %587 : vector<9x1xf32> to vector<9x128xf32>
    %617 = arith.addf %615, %616 : vector<9x128xf32>
    %c2_174 = arith.constant 2 : index
    %c0_175 = arith.constant 0 : index
    %c0_176 = arith.constant 0 : index
    %618 = vector.load %arg18[%c2_174, %c0_175, %c0_176] : memref<4x9x128xf32, #tpu.memory_space<vmem>>, vector<1x9x128xf32>
    %619 = vector.shape_cast %618 : vector<1x9x128xf32> to vector<9x128xf32>
    %620 = vector.shape_cast %617 : vector<9x128xf32> to vector<1x9x128xf32>
    tpu.vector_store %arg18[%c2_174, %c0_175, %c0_176], %620 {strides = array<i32>} : memref<4x9x128xf32, #tpu.memory_space<vmem>>, vector<1x9x128xf32>,
    %cst_177 = arith.constant dense<0.000000e+00> : vector<32x128xf32>
    %621 = tpu.matmul %584, %583, %cst_177 {dimension_numbers = #tpu.dot_dimension_numbers<[1], [0], [0], [1], [0, 0, 1, 1], [], []>} : vector<32x32xf32>, vector<32x128xf32>, vector<32x128xf32> -> vector<32x128xf32>
    %622 = vector.broadcast %585 : vector<32x1xf32> to vector<32x128xf32>
    %623 = arith.addf %621, %622 : vector<32x128xf32>
    %cst_178 = arith.constant 0.000000e+00 : f32
    %624 = vector.broadcast %cst_178 : f32 to vector<32x128xf32>
    %625 = arith.maximumf %623, %624 : vector<32x128xf32>
    %cst_179 = arith.constant dense<0.000000e+00> : vector<9x128xf32>
    %626 = tpu.matmul %586, %625, %cst_179 {dimension_numbers = #tpu.dot_dimension_numbers<[1], [0], [0], [1], [0, 0, 1, 1], [], []>} : vector<9x32xf32>, vector<32x128xf32>, vector<9x128xf32> -> vector<9x128xf32>
    %627 = vector.broadcast %587 : vector<9x1xf32> to vector<9x128xf32>
    %628 = arith.addf %626, %627 : vector<9x128xf32>
    %c3_180 = arith.constant 3 : index
    %c0_181 = arith.constant 0 : index
    %c0_182 = arith.constant 0 : index
    %629 = vector.load %arg18[%c3_180, %c0_181, %c0_182] : memref<4x9x128xf32, #tpu.memory_space<vmem>>, vector<1x9x128xf32>
    %630 = vector.shape_cast %629 : vector<1x9x128xf32> to vector<9x128xf32>
    %631 = vector.shape_cast %628 : vector<9x128xf32> to vector<1x9x128xf32>
    tpu.vector_store %arg18[%c3_180, %c0_181, %c0_182], %631 {strides = array<i32>} : memref<4x9x128xf32, #tpu.memory_space<vmem>>, vector<1x9x128xf32>,
    return
  }
  func.func @transform_0(%arg0: i32) -> (i32, i32, i32) {
    %c0_i32 = arith.constant 0 : i32
    %c0_i32_0 = arith.constant 0 : i32
    %c0_i32_1 = arith.constant 0 : i32
    return %c0_i32, %c0_i32_0, %arg0 : i32, i32, i32
  }
  func.func @transform_1(%arg0: i32) -> (i32, i32) {
    %c0_i32 = arith.constant 0 : i32
    %c0_i32_0 = arith.constant 0 : i32
    %c0_i32_1 = arith.constant 0 : i32
    return %c0_i32, %c0_i32_0 : i32, i32
  }
  func.func @transform_2(%arg0: i32) -> (i32, i32) {
    %c0_i32 = arith.constant 0 : i32
    %c0_i32_0 = arith.constant 0 : i32
    %c0_i32_1 = arith.constant 0 : i32
    return %c0_i32, %c0_i32_0 : i32, i32
  }
  func.func @transform_3(%arg0: i32) -> (i32, i32) {
    %c0_i32 = arith.constant 0 : i32
    %c0_i32_0 = arith.constant 0 : i32
    %c0_i32_1 = arith.constant 0 : i32
    return %c0_i32, %c0_i32_0 : i32, i32
  }
  func.func @transform_4(%arg0: i32) -> (i32, i32) {
    %c0_i32 = arith.constant 0 : i32
    %c0_i32_0 = arith.constant 0 : i32
    %c0_i32_1 = arith.constant 0 : i32
    return %c0_i32, %c0_i32_0 : i32, i32
  }
  func.func @transform_5(%arg0: i32) -> (i32, i32) {
    %c0_i32 = arith.constant 0 : i32
    %c0_i32_0 = arith.constant 0 : i32
    %c0_i32_1 = arith.constant 0 : i32
    return %c0_i32, %c0_i32_0 : i32, i32
  }
  func.func @transform_6(%arg0: i32) -> (i32, i32) {
    %c0_i32 = arith.constant 0 : i32
    %c0_i32_0 = arith.constant 0 : i32
    %c0_i32_1 = arith.constant 0 : i32
    return %c0_i32, %c0_i32_0 : i32, i32
  }
  func.func @transform_7(%arg0: i32) -> (i32, i32) {
    %c0_i32 = arith.constant 0 : i32
    %c0_i32_0 = arith.constant 0 : i32
    %c0_i32_1 = arith.constant 0 : i32
    return %c0_i32, %c0_i32_0 : i32, i32
  }
  func.func @transform_8(%arg0: i32) -> (i32, i32) {
    %c0_i32 = arith.constant 0 : i32
    %c0_i32_0 = arith.constant 0 : i32
    %c0_i32_1 = arith.constant 0 : i32
    return %c0_i32, %c0_i32_0 : i32, i32
  }
  func.func @transform_9(%arg0: i32) -> (i32, i32) {
    %c0_i32 = arith.constant 0 : i32
    %c0_i32_0 = arith.constant 0 : i32
    %c0_i32_1 = arith.constant 0 : i32
    return %c0_i32, %c0_i32_0 : i32, i32
  }
  func.func @transform_10(%arg0: i32) -> (i32, i32) {
    %c0_i32 = arith.constant 0 : i32
    %c0_i32_0 = arith.constant 0 : i32
    %c0_i32_1 = arith.constant 0 : i32
    return %c0_i32, %c0_i32_0 : i32, i32
  }
  func.func @transform_11(%arg0: i32) -> (i32, i32) {
    %c0_i32 = arith.constant 0 : i32
    %c0_i32_0 = arith.constant 0 : i32
    %c0_i32_1 = arith.constant 0 : i32
    return %c0_i32, %c0_i32_0 : i32, i32
  }
  func.func @transform_12(%arg0: i32) -> (i32, i32) {
    %c0_i32 = arith.constant 0 : i32
    %c0_i32_0 = arith.constant 0 : i32
    %c0_i32_1 = arith.constant 0 : i32
    return %c0_i32, %c0_i32_0 : i32, i32
  }
  func.func @transform_13(%arg0: i32) -> (i32, i32) {
    %c0_i32 = arith.constant 0 : i32
    %c0_i32_0 = arith.constant 0 : i32
    %c0_i32_1 = arith.constant 0 : i32
    return %c0_i32, %c0_i32_0 : i32, i32
  }
  func.func @transform_14(%arg0: i32) -> (i32, i32) {
    %c0_i32 = arith.constant 0 : i32
    %c0_i32_0 = arith.constant 0 : i32
    %c0_i32_1 = arith.constant 0 : i32
    return %c0_i32, %c0_i32_0 : i32, i32
  }
  func.func @transform_15(%arg0: i32) -> (i32, i32) {
    %c0_i32 = arith.constant 0 : i32
    %c0_i32_0 = arith.constant 0 : i32
    %c0_i32_1 = arith.constant 0 : i32
    return %c0_i32, %c0_i32_0 : i32, i32
  }
  func.func @transform_16(%arg0: i32) -> (i32, i32) {
    %c0_i32 = arith.constant 0 : i32
    %c0_i32_0 = arith.constant 0 : i32
    %c0_i32_1 = arith.constant 0 : i32
    return %c0_i32, %c0_i32_0 : i32, i32
  }
  func.func @transform_17(%arg0: i32) -> (i32, i32, i32) {
    %c0_i32 = arith.constant 0 : i32
    %c0_i32_0 = arith.constant 0 : i32
    %c0_i32_1 = arith.constant 0 : i32
    return %c0_i32, %c0_i32_0, %arg0 : i32, i32, i32
  }
}

</mosaic_0001>

<llo_original>
// kernel: custom_gnn_forward.1
$region0: #{custom_gnn_forward.1}
  #allocation0 [shape = 'u32[]', space=smem, size = 0x4, offset = 0x4, fixed_abs, tag = 'smem constant byte address 0x4 - core index']
  #allocation1 [shape = 'u32[144,128]{1,0:T(1,128)}', space=vmem, size = 0x12000, scoped, tag = 'internal scratch']
  %s0 = inlined_call_operand.vmem [shape: f32[4,6,128], index: 0, kind: input, shape index: {}]
  %s1 = inlined_call_operand.vmem [shape: f32[32,6], index: 1, kind: input, shape index: {}]
  %s2 = inlined_call_operand.vmem [shape: f32[1,32], index: 2, kind: input, shape index: {}]
  %s3 = inlined_call_operand.vmem [shape: f32[1,32], index: 3, kind: input, shape index: {}]
  %s4 = inlined_call_operand.vmem [shape: f32[32,1], index: 4, kind: input, shape index: {}]
  %s5 = inlined_call_operand.vmem [shape: f32[32,32], index: 5, kind: input, shape index: {}]
  %s6 = inlined_call_operand.vmem [shape: f32[1,32], index: 6, kind: input, shape index: {}]
  %s7 = inlined_call_operand.vmem [shape: f32[1,32], index: 7, kind: input, shape index: {}]
  %s8 = inlined_call_operand.vmem [shape: f32[32,1], index: 8, kind: input, shape index: {}]
  %s9 = inlined_call_operand.vmem [shape: f32[32,32], index: 9, kind: input, shape index: {}]
  %s10 = inlined_call_operand.vmem [shape: f32[1,32], index: 10, kind: input, shape index: {}]
  %s11 = inlined_call_operand.vmem [shape: f32[1,32], index: 11, kind: input, shape index: {}]
  %s12 = inlined_call_operand.vmem [shape: f32[32,1], index: 12, kind: input, shape index: {}]
  %s13 = inlined_call_operand.vmem [shape: f32[32,32], index: 13, kind: input, shape index: {}]
  %s14 = inlined_call_operand.vmem [shape: f32[32,1], index: 14, kind: input, shape index: {}]
  %s15 = inlined_call_operand.vmem [shape: f32[9,32], index: 15, kind: input, shape index: {}]
  %s16 = inlined_call_operand.vmem [shape: f32[9,1], index: 16, kind: input, shape index: {}]
  %s17 = inlined_call_operand.vmem [shape: f32[4,9,128], index: 17, kind: output, shape index: {}]
  %s18 = sld [smem:[#allocation0]]
  $region78: #{custom_gnn_forward.1} parent=0
    _
  %s20 = ssub.s32 1, %s18
  %s21 = scalar_select 0, %s20, %s18
  // Predicated region
  $region2: #{custom_gnn_forward.1} parent=0 // pred_check
    _
  $region3: #{custom_gnn_forward.1} parent=0 // pred_check_branch
    %23 = sbr.rel (0) target = $region5
  $region4: #{custom_gnn_forward.1} parent=0 // pred_region
    _
  $region5: #{custom_gnn_forward.1} parent=0 // pred_fallthru
    _
  // Predicated region
  $region6: #{custom_gnn_forward.1} parent=0 // pred_check
    _
  $region7: #{custom_gnn_forward.1} parent=0 // pred_check_branch
    %25 = sbr.rel (0) target = $region9
  $region8: #{custom_gnn_forward.1} parent=0 // pred_region
    _
  $region9: #{custom_gnn_forward.1} parent=0 // pred_fallthru
    _
  // Predicated region
  $region10: #{custom_gnn_forward.1} parent=0 // pred_check
    _
  $region11: #{custom_gnn_forward.1} parent=0 // pred_check_branch
    %27 = sbr.rel (0) target = $region13
  $region12: #{custom_gnn_forward.1} parent=0 // pred_region
    _
  $region13: #{custom_gnn_forward.1} parent=0 // pred_fallthru
    _
  // Predicated region
  $region14: #{custom_gnn_forward.1} parent=0 // pred_check
    _
  $region15: #{custom_gnn_forward.1} parent=0 // pred_check_branch
    %29 = sbr.rel (0) target = $region17
  $region16: #{custom_gnn_forward.1} parent=0 // pred_region
    _
  $region17: #{custom_gnn_forward.1} parent=0 // pred_fallthru
    _
  // Predicated region
  $region18: #{custom_gnn_forward.1} parent=0 // pred_check
    _
  $region19: #{custom_gnn_forward.1} parent=0 // pred_check_branch
    %31 = sbr.rel (0) target = $region21
  $region20: #{custom_gnn_forward.1} parent=0 // pred_region
    _
  $region21: #{custom_gnn_forward.1} parent=0 // pred_fallthru
    _
  // Predicated region
  $region22: #{custom_gnn_forward.1} parent=0 // pred_check
    _
  $region23: #{custom_gnn_forward.1} parent=0 // pred_check_branch
    %33 = sbr.rel (0) target = $region25
  $region24: #{custom_gnn_forward.1} parent=0 // pred_region
    _
  $region25: #{custom_gnn_forward.1} parent=0 // pred_fallthru
    _
  // Predicated region
  $region26: #{custom_gnn_forward.1} parent=0 // pred_check
    _
  $region27: #{custom_gnn_forward.1} parent=0 // pred_check_branch
    %35 = sbr.rel (0) target = $region29
  $region28: #{custom_gnn_forward.1} parent=0 // pred_region
    _
  $region29: #{custom_gnn_forward.1} parent=0 // pred_fallthru
    _
  // Predicated region
  $region30: #{custom_gnn_forward.1} parent=0 // pred_check
    _
  $region31: #{custom_gnn_forward.1} parent=0 // pred_check_branch
    %37 = sbr.rel (0) target = $region33
  $region32: #{custom_gnn_forward.1} parent=0 // pred_region
    _
  $region33: #{custom_gnn_forward.1} parent=0 // pred_fallthru
    _
  // Predicated region
  $region34: #{custom_gnn_forward.1} parent=0 // pred_check
    _
  $region35: #{custom_gnn_forward.1} parent=0 // pred_check_branch
    %39 = sbr.rel (0) target = $region37
  $region36: #{custom_gnn_forward.1} parent=0 // pred_region
    _
  $region37: #{custom_gnn_forward.1} parent=0 // pred_fallthru
    _
  // Predicated region
  $region38: #{custom_gnn_forward.1} parent=0 // pred_check
    _
  $region39: #{custom_gnn_forward.1} parent=0 // pred_check_branch
    %41 = sbr.rel (0) target = $region41
  $region40: #{custom_gnn_forward.1} parent=0 // pred_region
    _
  $region41: #{custom_gnn_forward.1} parent=0 // pred_fallthru
    _
  // Predicated region
  $region42: #{custom_gnn_forward.1} parent=0 // pred_check
    _
  $region43: #{custom_gnn_forward.1} parent=0 // pred_check_branch
    %43 = sbr.rel (0) target = $region45
  $region44: #{custom_gnn_forward.1} parent=0 // pred_region
    _
  $region45: #{custom_gnn_forward.1} parent=0 // pred_fallthru
    _
  // Predicated region
  $region46: #{custom_gnn_forward.1} parent=0 // pred_check
    _
  $region47: #{custom_gnn_forward.1} parent=0 // pred_check_branch
    %45 = sbr.rel (0) target = $region49
  $region48: #{custom_gnn_forward.1} parent=0 // pred_region
    _
  $region49: #{custom_gnn_forward.1} parent=0 // pred_fallthru
    _
  // Predicated region
  $region50: #{custom_gnn_forward.1} parent=0 // pred_check
    _
  $region51: #{custom_gnn_forward.1} parent=0 // pred_check_branch
    %47 = sbr.rel (0) target = $region53
  $region52: #{custom_gnn_forward.1} parent=0 // pred_region
    _
  $region53: #{custom_gnn_forward.1} parent=0 // pred_fallthru
    _
  // Predicated region
  $region54: #{custom_gnn_forward.1} parent=0 // pred_check
    _
  $region55: #{custom_gnn_forward.1} parent=0 // pred_check_branch
    %49 = sbr.rel (0) target = $region57
  $region56: #{custom_gnn_forward.1} parent=0 // pred_region
    _
  $region57: #{custom_gnn_forward.1} parent=0 // pred_fallthru
    _
  // Predicated region
  $region58: #{custom_gnn_forward.1} parent=0 // pred_check
    _
  $region59: #{custom_gnn_forward.1} parent=0 // pred_check_branch
    %51 = sbr.rel (0) target = $region61
  $region60: #{custom_gnn_forward.1} parent=0 // pred_region
    _
  $region61: #{custom_gnn_forward.1} parent=0 // pred_fallthru
    _
  // Predicated region
  $region62: #{custom_gnn_forward.1} parent=0 // pred_check
    _
  $region63: #{custom_gnn_forward.1} parent=0 // pred_check_branch
    %53 = sbr.rel (0) target = $region65
  $region64: #{custom_gnn_forward.1} parent=0 // pred_region
    _
  $region65: #{custom_gnn_forward.1} parent=0 // pred_fallthru
    _
  // Predicated region
  $region66: #{custom_gnn_forward.1} parent=0 // pred_check
    _
  $region67: #{custom_gnn_forward.1} parent=0 // pred_check_branch
    %55 = sbr.rel (0) target = $region69
  $region68: #{custom_gnn_forward.1} parent=0 // pred_region
    _
  $region69: #{custom_gnn_forward.1} parent=0 // pred_fallthru
    _
  %v56 = vld [vmem:[%s0] sm:$0x3f]
  %s57 = scalar_lea.vmem %s0, 8
  %v58 = vld [vmem:[%s57] sm:$0x3f]
  %s59 = scalar_lea.vmem %s0, 16
  %v60 = vld [vmem:[%s59] sm:$0x3f]
  %s61 = scalar_lea.vmem %s0, 24
  %v62 = vld [vmem:[%s61] sm:$0x3f]
  %v63 = vld [vmem:[%s1] sm:$0xff]
  %v64 = vld [vmem:[%s1 + $0x8] sm:$0xff]
  %v65 = vld [vmem:[%s1 + $0x10] sm:$0xff]
  %v66 = vld [vmem:[%s1 + $0x18] sm:$0xff]
  %v67 = vld [vmem:[%s2] sm:$0x1]
  %v68 = vld [vmem:[%s3] sm:$0x1]
  %v69 = vld [vmem:[%s4] sm:$0xff]
  %v70 = vld [vmem:[%s4 + $0x8] sm:$0xff]
  %v71 = vld [vmem:[%s4 + $0x10] sm:$0xff]
  %v72 = vld [vmem:[%s4 + $0x18] sm:$0xff]
  %vm73 = vcmask 48128
  %v75 = vsel %vm73, %v63, 0
  %v78 = vsel %vm73, %v64, 0
  %v81 = vsel %vm73, %v65, 0
  %v84 = vsel %vm73, %v66, 0
  %vm86 = vcmask 1045504
  %v88 = vsel %vm86, %v56, 0
  %90 = vmatprep.subr.mxu0 0.0
  %91 = vmatpush1.msra.mxu0 %v88
  %92 = vmatprep.subr.mxu0 0.0
  %93 = vmatpush1.msra.mxu0 0.0
  %94 = vmatprep.subr.mxu0 0.0
  %95 = vmatpush1.msra.mxu0 0.0
  %96 = vmatprep.subr.mxu0 0.0
  %97 = vmatpush1.msra.mxu0 0.0
  %98 = vmatprep.subr.mxu0 0.0
  %99 = vmatpush1.msra.mxu0 0.0
  %100 = vmatprep.subr.mxu0 0.0
  %101 = vmatpush1.msra.mxu0 0.0
  %102 = vmatprep.subr.mxu0 0.0
  %103 = vmatpush1.msra.mxu0 0.0
  %104 = vmatprep.subr.mxu0 0.0
  %105 = vmatpush1.msra.mxu0 0.0
  %106 = vmatprep.subr.mxu0 0.0
  %107 = vmatpush1.msra.mxu0 0.0
  %108 = vmatprep.subr.mxu0 0.0
  %109 = vmatpush1.msra.mxu0 0.0
  %110 = vmatprep.subr.mxu0 0.0
  %111 = vmatpush1.msra.mxu0 0.0
  %112 = vmatprep.subr.mxu0 0.0
  %113 = vmatpush1.msra.mxu0 0.0
  %114 = vmatprep.subr.mxu0 0.0
  %115 = vmatpush1.msra.mxu0 0.0
  %116 = vmatprep.subr.mxu0 0.0
  %117 = vmatpush1.msra.mxu0 0.0
  %118 = vmatprep.subr.mxu0 0.0
  %119 = vmatpush1.msra.mxu0 0.0
  %120 = vmatprep.subr.mxu0 0.0
  %121 = vmatpush1.msra.mxu0 0.0
  %122 = vmatprep.subr.mxu0 0.0
  %123 = vmatpush1.msra.mxu0 0.0
  %124 = vmatprep.subr.mxu0 0.0
  %125 = vmatpush1.msra.mxu0 0.0
  %126 = vmatprep.subr.mxu0 0.0
  %127 = vmatpush1.msra.mxu0 0.0
  %128 = vmatprep.subr.mxu0 0.0
  %129 = vmatpush1.msra.mxu0 0.0
  %130 = vmatprep.subr.mxu0 0.0
  %131 = vmatpush1.msra.mxu0 0.0
  %132 = vmatprep.subr.mxu0 0.0
  %133 = vmatpush1.msra.mxu0 0.0
  %134 = vmatprep.subr.mxu0 0.0
  %135 = vmatpush1.msra.mxu0 0.0
  %136 = vmatprep.subr.mxu0 0.0
  %137 = vmatpush1.msra.mxu0 0.0
  %138 = vmatprep.subr.mxu0 0.0
  %139 = vmatpush1.msra.mxu0 0.0
  %140 = vmatprep.subr.mxu0 0.0
  %141 = vmatpush1.msra.mxu0 0.0
  %142 = vmatprep.subr.mxu0 0.0
  %143 = vmatpush1.msra.mxu0 0.0
  %144 = vmatprep.subr.mxu0 0.0
  %145 = vmatpush1.msra.mxu0 0.0
  %146 = vmatprep.subr.mxu0 0.0
  %147 = vmatpush1.msra.mxu0 0.0
  %148 = vmatprep.subr.mxu0 0.0
  %149 = vmatpush1.msra.mxu0 0.0
  %150 = vmatprep.subr.mxu0 0.0
  %151 = vmatpush1.msra.mxu0 0.0
  %152 = vmatprep.subr.mxu0 0.0
  %153 = vmatpush1.msra.mxu0 0.0
  %154 = vmatprep.mubr.f32.mxu0 0.0
  %155 = vmatmul.mubr.f32.gmra.mrb[0].mxu0 %v75
  %v156 = vpop.f32.mrb[0].mxu0
  %v157 = vadd.f32 0.0, %v156
  %v158 = vpop.f32.mrb[0].mxu0
  %159 = vmatprep.mubr.f32.mxu0 0.0
  %160 = vmatmul.mubr.f32.gmra.mrb[0].mxu0 %v78
  %v161 = vpop.f32.mrb[0].mxu0
  %v162 = vadd.f32 0.0, %v161
  %v163 = vpop.f32.mrb[0].mxu0
  %164 = vmatprep.mubr.f32.mxu0 0.0
  %165 = vmatmul.mubr.f32.gmra.mrb[0].mxu0 %v81
  %v166 = vpop.f32.mrb[0].mxu0
  %v167 = vadd.f32 0.0, %v166
  %v168 = vpop.f32.mrb[0].mxu0
  %169 = vmatprep.mubr.f32.mxu0 0.0
  %170 = vmatmul.mubr.f32.gmra.mrb[0].mxu0 %v84
  %v171 = vpop.f32.mrb[0].mxu0
  %v172 = vadd.f32 0.0, %v171
  %v173 = vpop.f32.mrb[0].mxu0
  %174 = vdwg.mxu0
  %v176 = vsel %vm86, %v58, 0
  %178 = vmatprep.subr.mxu0 0.0
  %179 = vmatpush1.msra.mxu0 %v176
  %180 = vmatprep.subr.mxu0 0.0
  %181 = vmatpush1.msra.mxu0 0.0
  %182 = vmatprep.subr.mxu0 0.0
  %183 = vmatpush1.msra.mxu0 0.0
  %184 = vmatprep.subr.mxu0 0.0
  %185 = vmatpush1.msra.mxu0 0.0
  %186 = vmatprep.subr.mxu0 0.0
  %187 = vmatpush1.msra.mxu0 0.0
  %188 = vmatprep.subr.mxu0 0.0
  %189 = vmatpush1.msra.mxu0 0.0
  %190 = vmatprep.subr.mxu0 0.0
  %191 = vmatpush1.msra.mxu0 0.0
  %192 = vmatprep.subr.mxu0 0.0
  %193 = vmatpush1.msra.mxu0 0.0
  %194 = vmatprep.subr.mxu0 0.0
  %195 = vmatpush1.msra.mxu0 0.0
  %196 = vmatprep.subr.mxu0 0.0
  %197 = vmatpush1.msra.mxu0 0.0
  %198 = vmatprep.subr.mxu0 0.0
  %199 = vmatpush1.msra.mxu0 0.0
  %200 = vmatprep.subr.mxu0 0.0
  %201 = vmatpush1.msra.mxu0 0.0
  %202 = vmatprep.subr.mxu0 0.0
  %203 = vmatpush1.msra.mxu0 0.0
  %204 = vmatprep.subr.mxu0 0.0
  %205 = vmatpush1.msra.mxu0 0.0
  %206 = vmatprep.subr.mxu0 0.0
  %207 = vmatpush1.msra.mxu0 0.0
  %208 = vmatprep.subr.mxu0 0.0
  %209 = vmatpush1.msra.mxu0 0.0
  %210 = vmatprep.subr.mxu0 0.0
  %211 = vmatpush1.msra.mxu0 0.0
  %212 = vmatprep.subr.mxu0 0.0
  %213 = vmatpush1.msra.mxu0 0.0
  %214 = vmatprep.subr.mxu0 0.0
  %215 = vmatpush1.msra.mxu0 0.0
  %216 = vmatprep.subr.mxu0 0.0
  %217 = vmatpush1.msra.mxu0 0.0
  %218 = vmatprep.subr.mxu0 0.0
  %219 = vmatpush1.msra.mxu0 0.0
  %220 = vmatprep.subr.mxu0 0.0
  %221 = vmatpush1.msra.mxu0 0.0
  %222 = vmatprep.subr.mxu0 0.0
  %223 = vmatpush1.msra.mxu0 0.0
  %224 = vmatprep.subr.mxu0 0.0
  %225 = vmatpush1.msra.mxu0 0.0
  %226 = vmatprep.subr.mxu0 0.0
  %227 = vmatpush1.msra.mxu0 0.0
  %228 = vmatprep.subr.mxu0 0.0
  %229 = vmatpush1.msra.mxu0 0.0
  %230 = vmatprep.subr.mxu0 0.0
  %231 = vmatpush1.msra.mxu0 0.0
  %232 = vmatprep.subr.mxu0 0.0
  %233 = vmatpush1.msra.mxu0 0.0
  %234 = vmatprep.subr.mxu0 0.0
  %235 = vmatpush1.msra.mxu0 0.0
  %236 = vmatprep.subr.mxu0 0.0
  %237 = vmatpush1.msra.mxu0 0.0
  %238 = vmatprep.subr.mxu0 0.0
  %239 = vmatpush1.msra.mxu0 0.0
  %240 = vmatprep.subr.mxu0 0.0
  %241 = vmatpush1.msra.mxu0 0.0
  %242 = vmatprep.mubr.f32.mxu0 0.0
  %243 = vmatmul.mubr.f32.gmra.mrb[0].mxu0 %v75
  %v244 = vpop.f32.mrb[0].mxu0
  %v245 = vadd.f32 0.0, %v244
  %v246 = vpop.f32.mrb[0].mxu0
  %247 = vmatprep.mubr.f32.mxu0 0.0
  %248 = vmatmul.mubr.f32.gmra.mrb[0].mxu0 %v78
  %v249 = vpop.f32.mrb[0].mxu0
  %v250 = vadd.f32 0.0, %v249
  %v251 = vpop.f32.mrb[0].mxu0
  %252 = vmatprep.mubr.f32.mxu0 0.0
  %253 = vmatmul.mubr.f32.gmra.mrb[0].mxu0 %v81
  %v254 = vpop.f32.mrb[0].mxu0
  %v255 = vadd.f32 0.0, %v254
  %v256 = vpop.f32.mrb[0].mxu0
  %257 = vmatprep.mubr.f32.mxu0 0.0
  %258 = vmatmul.mubr.f32.gmra.mrb[0].mxu0 %v84
  %v259 = vpop.f32.mrb[0].mxu0
  %v260 = vadd.f32 0.0, %v259
  %v261 = vpop.f32.mrb[0].mxu0
  %262 = vdwg.mxu0
  %v264 = vsel %vm86, %v60, 0
  %266 = vmatprep.subr.mxu0 0.0
  %267 = vmatpush1.msra.mxu0 %v264
  %268 = vmatprep.subr.mxu0 0.0
  %269 = vmatpush1.msra.mxu0 0.0
  %270 = vmatprep.subr.mxu0 0.0
  %271 = vmatpush1.msra.mxu0 0.0
  %272 = vmatprep.subr.mxu0 0.0
  %273 = vmatpush1.msra.mxu0 0.0
  %274 = vmatprep.subr.mxu0 0.0
  %275 = vmatpush1.msra.mxu0 0.0
  %276 = vmatprep.subr.mxu0 0.0
  %277 = vmatpush1.msra.mxu0 0.0
  %278 = vmatprep.subr.mxu0 0.0
  %279 = vmatpush1.msra.mxu0 0.0
  %280 = vmatprep.subr.mxu0 0.0
  %281 = vmatpush1.msra.mxu0 0.0
  %282 = vmatprep.subr.mxu0 0.0
  %283 = vmatpush1.msra.mxu0 0.0
  %284 = vmatprep.subr.mxu0 0.0
  %285 = vmatpush1.msra.mxu0 0.0
  %286 = vmatprep.subr.mxu0 0.0
  %287 = vmatpush1.msra.mxu0 0.0
  %288 = vmatprep.subr.mxu0 0.0
  %289 = vmatpush1.msra.mxu0 0.0
  %290 = vmatprep.subr.mxu0 0.0
  %291 = vmatpush1.msra.mxu0 0.0
  %292 = vmatprep.subr.mxu0 0.0
  %293 = vmatpush1.msra.mxu0 0.0
  %294 = vmatprep.subr.mxu0 0.0
  %295 = vmatpush1.msra.mxu0 0.0
  %296 = vmatprep.subr.mxu0 0.0
  %297 = vmatpush1.msra.mxu0 0.0
  %298 = vmatprep.subr.mxu0 0.0
  %299 = vmatpush1.msra.mxu0 0.0
  %300 = vmatprep.subr.mxu0 0.0
  %301 = vmatpush1.msra.mxu0 0.0
  %302 = vmatprep.subr.mxu0 0.0
  %303 = vmatpush1.msra.mxu0 0.0
  %304 = vmatprep.subr.mxu0 0.0
  %305 = vmatpush1.msra.mxu0 0.0
  %306 = vmatprep.subr.mxu0 0.0
  %307 = vmatpush1.msra.mxu0 0.0
  %308 = vmatprep.subr.mxu0 0.0
  %309 = vmatpush1.msra.mxu0 0.0
  %310 = vmatprep.subr.mxu0 0.0
  %311 = vmatpush1.msra.mxu0 0.0
  %312 = vmatprep.subr.mxu0 0.0
  %313 = vmatpush1.msra.mxu0 0.0
  %314 = vmatprep.subr.mxu0 0.0
  %315 = vmatpush1.msra.mxu0 0.0
  %316 = vmatprep.subr.mxu0 0.0
  %317 = vmatpush1.msra.mxu0 0.0
  %318 = vmatprep.subr.mxu0 0.0
  %319 = vmatpush1.msra.mxu0 0.0
  %320 = vmatprep.subr.mxu0 0.0
  %321 = vmatpush1.msra.mxu0 0.0
  %322 = vmatprep.subr.mxu0 0.0
  %323 = vmatpush1.msra.mxu0 0.0
  %324 = vmatprep.subr.mxu0 0.0
  %325 = vmatpush1.msra.mxu0 0.0
  %326 = vmatprep.subr.mxu0 0.0
  %327 = vmatpush1.msra.mxu0 0.0
  %328 = vmatprep.subr.mxu0 0.0
  %329 = vmatpush1.msra.mxu0 0.0
  %330 = vmatprep.mubr.f32.mxu0 0.0
  %331 = vmatmul.mubr.f32.gmra.mrb[0].mxu0 %v75
  %v332 = vpop.f32.mrb[0].mxu0
  %v333 = vadd.f32 0.0, %v332
  %v334 = vpop.f32.mrb[0].mxu0
  %335 = vmatprep.mubr.f32.mxu0 0.0
  %336 = vmatmul.mubr.f32.gmra.mrb[0].mxu0 %v78
  %v337 = vpop.f32.mrb[0].mxu0
  %v338 = vadd.f32 0.0, %v337
  %v339 = vpop.f32.mrb[0].mxu0
  %340 = vmatprep.mubr.f32.mxu0 0.0
  %341 = vmatmul.mubr.f32.gmra.mrb[0].mxu0 %v81
  %v342 = vpop.f32.mrb[0].mxu0
  %v343 = vadd.f32 0.0, %v342
  %v344 = vpop.f32.mrb[0].mxu0
  %345 = vmatprep.mubr.f32.mxu0 0.0
  %346 = vmatmul.mubr.f32.gmra.mrb[0].mxu0 %v84
  %v347 = vpop.f32.mrb[0].mxu0
  %v348 = vadd.f32 0.0, %v347
  %v349 = vpop.f32.mrb[0].mxu0
  %350 = vdwg.mxu0
  %v352 = vsel %vm86, %v62, 0
  %354 = vmatprep.subr.mxu0 0.0
  %355 = vmatpush1.msra.mxu0 %v352
  %356 = vmatprep.subr.mxu0 0.0
  %357 = vmatpush1.msra.mxu0 0.0
  %358 = vmatprep.subr.mxu0 0.0
  %359 = vmatpush1.msra.mxu0 0.0
  %360 = vmatprep.subr.mxu0 0.0
  %361 = vmatpush1.msra.mxu0 0.0
  %362 = vmatprep.subr.mxu0 0.0
  %363 = vmatpush1.msra.mxu0 0.0
  %364 = vmatprep.subr.mxu0 0.0
  %365 = vmatpush1.msra.mxu0 0.0
  %366 = vmatprep.subr.mxu0 0.0
  %367 = vmatpush1.msra.mxu0 0.0
  %368 = vmatprep.subr.mxu0 0.0
  %369 = vmatpush1.msra.mxu0 0.0
  %370 = vmatprep.subr.mxu0 0.0
  %371 = vmatpush1.msra.mxu0 0.0
  %372 = vmatprep.subr.mxu0 0.0
  %373 = vmatpush1.msra.mxu0 0.0
  %374 = vmatprep.subr.mxu0 0.0
  %375 = vmatpush1.msra.mxu0 0.0
  %376 = vmatprep.subr.mxu0 0.0
  %377 = vmatpush1.msra.mxu0 0.0
  %378 = vmatprep.subr.mxu0 0.0
  %379 = vmatpush1.msra.mxu0 0.0
  %380 = vmatprep.subr.mxu0 0.0
  %381 = vmatpush1.msra.mxu0 0.0
  %382 = vmatprep.subr.mxu0 0.0
  %383 = vmatpush1.msra.mxu0 0.0
  %384 = vmatprep.subr.mxu0 0.0
  %385 = vmatpush1.msra.mxu0 0.0
  %386 = vmatprep.subr.mxu0 0.0
  %387 = vmatpush1.msra.mxu0 0.0
  %388 = vmatprep.subr.mxu0 0.0
  %389 = vmatpush1.msra.mxu0 0.0
  %390 = vmatprep.subr.mxu0 0.0
  %391 = vmatpush1.msra.mxu0 0.0
  %392 = vmatprep.subr.mxu0 0.0
  %393 = vmatpush1.msra.mxu0 0.0
  %394 = vmatprep.subr.mxu0 0.0
  %395 = vmatpush1.msra.mxu0 0.0
  %396 = vmatprep.subr.mxu0 0.0
  %397 = vmatpush1.msra.mxu0 0.0
  %398 = vmatprep.subr.mxu0 0.0
  %399 = vmatpush1.msra.mxu0 0.0
  %400 = vmatprep.subr.mxu0 0.0
  %401 = vmatpush1.msra.mxu0 0.0
  %402 = vmatprep.subr.mxu0 0.0
  %403 = vmatpush1.msra.mxu0 0.0
  %404 = vmatprep.subr.mxu0 0.0
  %405 = vmatpush1.msra.mxu0 0.0
  %406 = vmatprep.subr.mxu0 0.0
  %407 = vmatpush1.msra.mxu0 0.0
  %408 = vmatprep.subr.mxu0 0.0
  %409 = vmatpush1.msra.mxu0 0.0
  %410 = vmatprep.subr.mxu0 0.0
  %411 = vmatpush1.msra.mxu0 0.0
  %412 = vmatprep.subr.mxu0 0.0
  %413 = vmatpush1.msra.mxu0 0.0
  %414 = vmatprep.subr.mxu0 0.0
  %415 = vmatpush1.msra.mxu0 0.0
  %416 = vmatprep.subr.mxu0 0.0
  %417 = vmatpush1.msra.mxu0 0.0
  %418 = vmatprep.mubr.f32.mxu0 0.0
  %419 = vmatmul.mubr.f32.gmra.mrb[0].mxu0 %v75
  %v420 = vpop.f32.mrb[0].mxu0
  %v421 = vadd.f32 0.0, %v420
  %v422 = vpop.f32.mrb[0].mxu0
  %423 = vmatprep.mubr.f32.mxu0 0.0
  %424 = vmatmul.mubr.f32.gmra.mrb[0].mxu0 %v78
  %v425 = vpop.f32.mrb[0].mxu0
  %v426 = vadd.f32 0.0, %v425
  %v427 = vpop.f32.mrb[0].mxu0
  %428 = vmatprep.mubr.f32.mxu0 0.0
  %429 = vmatmul.mubr.f32.gmra.mrb[0].mxu0 %v81
  %v430 = vpop.f32.mrb[0].mxu0
  %v431 = vadd.f32 0.0, %v430
  %v432 = vpop.f32.mrb[0].mxu0
  %433 = vmatprep.mubr.f32.mxu0 0.0
  %434 = vmatmul.mubr.f32.gmra.mrb[0].mxu0 %v84
  %v435 = vpop.f32.mrb[0].mxu0
  %v436 = vadd.f32 0.0, %v435
  %v437 = vpop.f32.mrb[0].mxu0
  %438 = vdwg.mxu0
  %vm439 = vcmask 261120
  %v441 = vsel %vm439, %v67, 0
  %443 = vmatprep.subr.mxu0 0.0
  %444 = vmatpush1.msra.mxu0 %v157
  %445 = vmatprep.subr.mxu0 0.0
  %446 = vmatpush1.msra.mxu0 %v162
  %447 = vmatprep.subr.mxu0 0.0
  %448 = vmatpush1.msra.mxu0 %v167
  %449 = vmatprep.subr.mxu0 0.0
  %450 = vmatpush1.msra.mxu0 %v172
  %451 = vmatprep.subr.mxu0 0.0
  %452 = vmatpush1.msra.mxu0 0.0
  %453 = vmatprep.subr.mxu0 0.0
  %454 = vmatpush1.msra.mxu0 0.0
  %455 = vmatprep.subr.mxu0 0.0
  %456 = vmatpush1.msra.mxu0 0.0
  %457 = vmatprep.subr.mxu0 0.0
  %458 = vmatpush1.msra.mxu0 0.0
  %459 = vmatprep.subr.mxu0 0.0
  %460 = vmatpush1.msra.mxu0 0.0
  %461 = vmatprep.subr.mxu0 0.0
  %462 = vmatpush1.msra.mxu0 0.0
  %463 = vmatprep.subr.mxu0 0.0
  %464 = vmatpush1.msra.mxu0 0.0
  %465 = vmatprep.subr.mxu0 0.0
  %466 = vmatpush1.msra.mxu0 0.0
  %467 = vmatprep.subr.mxu0 0.0
  %468 = vmatpush1.msra.mxu0 0.0
  %469 = vmatprep.subr.mxu0 0.0
  %470 = vmatpush1.msra.mxu0 0.0
  %471 = vmatprep.subr.mxu0 0.0
  %472 = vmatpush1.msra.mxu0 0.0
  %473 = vmatprep.subr.mxu0 0.0
  %474 = vmatpush1.msra.mxu0 0.0
  %475 = vmatprep.subr.mxu0 0.0
  %476 = vmatpush1.msra.mxu0 0.0
  %477 = vmatprep.subr.mxu0 0.0
  %478 = vmatpush1.msra.mxu0 0.0
  %479 = vmatprep.subr.mxu0 0.0
  %480 = vmatpush1.msra.mxu0 0.0
  %481 = vmatprep.subr.mxu0 0.0
  %482 = vmatpush1.msra.mxu0 0.0
  %483 = vmatprep.subr.mxu0 0.0
  %484 = vmatpush1.msra.mxu0 0.0
  %485 = vmatprep.subr.mxu0 0.0
  %486 = vmatpush1.msra.mxu0 0.0
  %487 = vmatprep.subr.mxu0 0.0
  %488 = vmatpush1.msra.mxu0 0.0
  %489 = vmatprep.subr.mxu0 0.0
  %490 = vmatpush1.msra.mxu0 0.0
  %491 = vmatprep.subr.mxu0 0.0
  %492 = vmatpush1.msra.mxu0 0.0
  %493 = vmatprep.subr.mxu0 0.0
  %494 = vmatpush1.msra.mxu0 0.0
  %495 = vmatprep.subr.mxu0 0.0
  %496 = vmatpush1.msra.mxu0 0.0
  %497 = vmatprep.subr.mxu0 0.0
  %498 = vmatpush1.msra.mxu0 0.0
  %499 = vmatprep.subr.mxu0 0.0
  %500 = vmatpush1.msra.mxu0 0.0
  %501 = vmatprep.subr.mxu0 0.0
  %502 = vmatpush1.msra.mxu0 0.0
  %503 = vmatprep.subr.mxu0 0.0
  %504 = vmatpush1.msra.mxu0 0.0
  %505 = vmatprep.subr.mxu0 0.0
  %506 = vmatpush1.msra.mxu0 0.0
  %507 = vmatprep.mubr.f32.mxu0 0.0
  %508 = vmatmul.mubr.f32.gmra.mrb[0].mxu0 %v441
  %v509 = vpop.f32.mrb[0].mxu0
  %v510 = vadd.f32 0.0, %v509
  %v511 = vpop.f32.mrb[0].mxu0
  %512 = vdwg.mxu0
  %513 = vmatprep.subr.mxu0 0.0
  %514 = vmatpush1.msra.mxu0 %v245
  %515 = vmatprep.subr.mxu0 0.0
  %516 = vmatpush1.msra.mxu0 %v250
  %517 = vmatprep.subr.mxu0 0.0
  %518 = vmatpush1.msra.mxu0 %v255
  %519 = vmatprep.subr.mxu0 0.0
  %520 = vmatpush1.msra.mxu0 %v260
  %521 = vmatprep.subr.mxu0 0.0
  %522 = vmatpush1.msra.mxu0 0.0
  %523 = vmatprep.subr.mxu0 0.0
  %524 = vmatpush1.msra.mxu0 0.0
  %525 = vmatprep.subr.mxu0 0.0
  %526 = vmatpush1.msra.mxu0 0.0
  %527 = vmatprep.subr.mxu0 0.0
  %528 = vmatpush1.msra.mxu0 0.0
  %529 = vmatprep.subr.mxu0 0.0
  %530 = vmatpush1.msra.mxu0 0.0
  %531 = vmatprep.subr.mxu0 0.0
  %532 = vmatpush1.msra.mxu0 0.0
  %533 = vmatprep.subr.mxu0 0.0
  %534 = vmatpush1.msra.mxu0 0.0
  %535 = vmatprep.subr.mxu0 0.0
  %536 = vmatpush1.msra.mxu0 0.0
  %537 = vmatprep.subr.mxu0 0.0
  %538 = vmatpush1.msra.mxu0 0.0
  %539 = vmatprep.subr.mxu0 0.0
  %540 = vmatpush1.msra.mxu0 0.0
  %541 = vmatprep.subr.mxu0 0.0
  %542 = vmatpush1.msra.mxu0 0.0
  %543 = vmatprep.subr.mxu0 0.0
  %544 = vmatpush1.msra.mxu0 0.0
  %545 = vmatprep.subr.mxu0 0.0
  %546 = vmatpush1.msra.mxu0 0.0
  %547 = vmatprep.subr.mxu0 0.0
  %548 = vmatpush1.msra.mxu0 0.0
  %549 = vmatprep.subr.mxu0 0.0
  %550 = vmatpush1.msra.mxu0 0.0
  %551 = vmatprep.subr.mxu0 0.0
  %552 = vmatpush1.msra.mxu0 0.0
  %553 = vmatprep.subr.mxu0 0.0
  %554 = vmatpush1.msra.mxu0 0.0
  %555 = vmatprep.subr.mxu0 0.0
  %556 = vmatpush1.msra.mxu0 0.0
  %557 = vmatprep.subr.mxu0 0.0
  %558 = vmatpush1.msra.mxu0 0.0
  %559 = vmatprep.subr.mxu0 0.0
  %560 = vmatpush1.msra.mxu0 0.0
  %561 = vmatprep.subr.mxu0 0.0
  %562 = vmatpush1.msra.mxu0 0.0
  %563 = vmatprep.subr.mxu0 0.0
  %564 = vmatpush1.msra.mxu0 0.0
  %565 = vmatprep.subr.mxu0 0.0
  %566 = vmatpush1.msra.mxu0 0.0
  %567 = vmatprep.subr.mxu0 0.0
  %568 = vmatpush1.msra.mxu0 0.0
  %569 = vmatprep.subr.mxu0 0.0
  %570 = vmatpush1.msra.mxu0 0.0
  %571 = vmatprep.subr.mxu0 0.0
  %572 = vmatpush1.msra.mxu0 0.0
  %573 = vmatprep.subr.mxu0 0.0
  %574 = vmatpush1.msra.mxu0 0.0
  %575 = vmatprep.subr.mxu0 0.0
  %576 = vmatpush1.msra.mxu0 0.0
  %577 = vmatprep.mubr.f32.mxu0 0.0
  %578 = vmatmul.mubr.f32.gmra.mrb[0].mxu0 %v441
  %v579 = vpop.f32.mrb[0].mxu0
  %v580 = vadd.f32 0.0, %v579
  %v581 = vpop.f32.mrb[0].mxu0
  %582 = vdwg.mxu0
  %583 = vmatprep.subr.mxu0 0.0
  %584 = vmatpush1.msra.mxu0 %v333
  %585 = vmatprep.subr.mxu0 0.0
  %586 = vmatpush1.msra.mxu0 %v338
  %587 = vmatprep.subr.mxu0 0.0
  %588 = vmatpush1.msra.mxu0 %v343
  %589 = vmatprep.subr.mxu0 0.0
  %590 = vmatpush1.msra.mxu0 %v348
  %591 = vmatprep.subr.mxu0 0.0
  %592 = vmatpush1.msra.mxu0 0.0
  %593 = vmatprep.subr.mxu0 0.0
  %594 = vmatpush1.msra.mxu0 0.0
  %595 = vmatprep.subr.mxu0 0.0
  %596 = vmatpush1.msra.mxu0 0.0
  %597 = vmatprep.subr.mxu0 0.0
  %598 = vmatpush1.msra.mxu0 0.0
  %599 = vmatprep.subr.mxu0 0.0
  %600 = vmatpush1.msra.mxu0 0.0
  %601 = vmatprep.subr.mxu0 0.0
  %602 = vmatpush1.msra.mxu0 0.0
  %603 = vmatprep.subr.mxu0 0.0
  %604 = vmatpush1.msra.mxu0 0.0
  %605 = vmatprep.subr.mxu0 0.0
  %606 = vmatpush1.msra.mxu0 0.0
  %607 = vmatprep.subr.mxu0 0.0
  %608 = vmatpush1.msra.mxu0 0.0
  %609 = vmatprep.subr.mxu0 0.0
  %610 = vmatpush1.msra.mxu0 0.0
  %611 = vmatprep.subr.mxu0 0.0
  %612 = vmatpush1.msra.mxu0 0.0
  %613 = vmatprep.subr.mxu0 0.0
  %614 = vmatpush1.msra.mxu0 0.0
  %615 = vmatprep.subr.mxu0 0.0
  %616 = vmatpush1.msra.mxu0 0.0
  %617 = vmatprep.subr.mxu0 0.0
  %618 = vmatpush1.msra.mxu0 0.0
  %619 = vmatprep.subr.mxu0 0.0
  %620 = vmatpush1.msra.mxu0 0.0
  %621 = vmatprep.subr.mxu0 0.0
  %622 = vmatpush1.msra.mxu0 0.0
  %623 = vmatprep.subr.mxu0 0.0
  %624 = vmatpush1.msra.mxu0 0.0
  %625 = vmatprep.subr.mxu0 0.0
  %626 = vmatpush1.msra.mxu0 0.0
  %627 = vmatprep.subr.mxu0 0.0
  %628 = vmatpush1.msra.mxu0 0.0
  %629 = vmatprep.subr.mxu0 0.0
  %630 = vmatpush1.msra.mxu0 0.0
  %631 = vmatprep.subr.mxu0 0.0
  %632 = vmatpush1.msra.mxu0 0.0
  %633 = vmatprep.subr.mxu0 0.0
  %634 = vmatpush1.msra.mxu0 0.0
  %635 = vmatprep.subr.mxu0 0.0
  %636 = vmatpush1.msra.mxu0 0.0
  %637 = vmatprep.subr.mxu0 0.0
  %638 = vmatpush1.msra.mxu0 0.0
  %639 = vmatprep.subr.mxu0 0.0
  %640 = vmatpush1.msra.mxu0 0.0
  %641 = vmatprep.subr.mxu0 0.0
  %642 = vmatpush1.msra.mxu0 0.0
  %643 = vmatprep.subr.mxu0 0.0
  %644 = vmatpush1.msra.mxu0 0.0
  %645 = vmatprep.subr.mxu0 0.0
  %646 = vmatpush1.msra.mxu0 0.0
  %647 = vmatprep.mubr.f32.mxu0 0.0
  %648 = vmatmul.mubr.f32.gmra.mrb[0].mxu0 %v441
  %v649 = vpop.f32.mrb[0].mxu0
  %v650 = vadd.f32 0.0, %v649
  %v651 = vpop.f32.mrb[0].mxu0
  %652 = vdwg.mxu0
  %653 = vmatprep.subr.mxu0 0.0
  %654 = vmatpush1.msra.mxu0 %v421
  %655 = vmatprep.subr.mxu0 0.0
  %656 = vmatpush1.msra.mxu0 %v426
  %657 = vmatprep.subr.mxu0 0.0
  %658 = vmatpush1.msra.mxu0 %v431
  %659 = vmatprep.subr.mxu0 0.0
  %660 = vmatpush1.msra.mxu0 %v436
  %661 = vmatprep.subr.mxu0 0.0
  %662 = vmatpush1.msra.mxu0 0.0
  %663 = vmatprep.subr.mxu0 0.0
  %664 = vmatpush1.msra.mxu0 0.0
  %665 = vmatprep.subr.mxu0 0.0
  %666 = vmatpush1.msra.mxu0 0.0
  %667 = vmatprep.subr.mxu0 0.0
  %668 = vmatpush1.msra.mxu0 0.0
  %669 = vmatprep.subr.mxu0 0.0
  %670 = vmatpush1.msra.mxu0 0.0
  %671 = vmatprep.subr.mxu0 0.0
  %672 = vmatpush1.msra.mxu0 0.0
  %673 = vmatprep.subr.mxu0 0.0
  %674 = vmatpush1.msra.mxu0 0.0
  %675 = vmatprep.subr.mxu0 0.0
  %676 = vmatpush1.msra.mxu0 0.0
  %677 = vmatprep.subr.mxu0 0.0
  %678 = vmatpush1.msra.mxu0 0.0
  %679 = vmatprep.subr.mxu0 0.0
  %680 = vmatpush1.msra.mxu0 0.0
  %681 = vmatprep.subr.mxu0 0.0
  %682 = vmatpush1.msra.mxu0 0.0
  %683 = vmatprep.subr.mxu0 0.0
  %684 = vmatpush1.msra.mxu0 0.0
  %685 = vmatprep.subr.mxu0 0.0
  %686 = vmatpush1.msra.mxu0 0.0
  %687 = vmatprep.subr.mxu0 0.0
  %688 = vmatpush1.msra.mxu0 0.0
  %689 = vmatprep.subr.mxu0 0.0
  %690 = vmatpush1.msra.mxu0 0.0
  %691 = vmatprep.subr.mxu0 0.0
  %692 = vmatpush1.msra.mxu0 0.0
  %693 = vmatprep.subr.mxu0 0.0
  %694 = vmatpush1.msra.mxu0 0.0
  %695 = vmatprep.subr.mxu0 0.0
  %696 = vmatpush1.msra.mxu0 0.0
  %697 = vmatprep.subr.mxu0 0.0
  %698 = vmatpush1.msra.mxu0 0.0
  %699 = vmatprep.subr.mxu0 0.0
  %700 = vmatpush1.msra.mxu0 0.0
  %701 = vmatprep.subr.mxu0 0.0
  %702 = vmatpush1.msra.mxu0 0.0
  %703 = vmatprep.subr.mxu0 0.0
  %704 = vmatpush1.msra.mxu0 0.0
  %705 = vmatprep.subr.mxu0 0.0
  %706 = vmatpush1.msra.mxu0 0.0
  %707 = vmatprep.subr.mxu0 0.0
  %708 = vmatpush1.msra.mxu0 0.0
  %709 = vmatprep.subr.mxu0 0.0
  %710 = vmatpush1.msra.mxu0 0.0
  %711 = vmatprep.subr.mxu0 0.0
  %712 = vmatpush1.msra.mxu0 0.0
  %713 = vmatprep.subr.mxu0 0.0
  %714 = vmatpush1.msra.mxu0 0.0
  %715 = vmatprep.subr.mxu0 0.0
  %716 = vmatpush1.msra.mxu0 0.0
  %717 = vmatprep.mubr.f32.mxu0 0.0
  %718 = vmatmul.mubr.f32.gmra.mrb[0].mxu0 %v441
  %v719 = vpop.f32.mrb[0].mxu0
  %v720 = vadd.f32 0.0, %v719
  %v721 = vpop.f32.mrb[0].mxu0
  %722 = vdwg.mxu0
  %v724 = vsel %vm439, %v68, 0
  %726 = vmatprep.subr.mxu0 0.0
  %727 = vmatpush1.msra.mxu0 %v157
  %728 = vmatprep.subr.mxu0 0.0
  %729 = vmatpush1.msra.mxu0 %v162
  %730 = vmatprep.subr.mxu0 0.0
  %731 = vmatpush1.msra.mxu0 %v167
  %732 = vmatprep.subr.mxu0 0.0
  %733 = vmatpush1.msra.mxu0 %v172
  %734 = vmatprep.subr.mxu0 0.0
  %735 = vmatpush1.msra.mxu0 0.0
  %736 = vmatprep.subr.mxu0 0.0
  %737 = vmatpush1.msra.mxu0 0.0
  %738 = vmatprep.subr.mxu0 0.0
  %739 = vmatpush1.msra.mxu0 0.0
  %740 = vmatprep.subr.mxu0 0.0
  %741 = vmatpush1.msra.mxu0 0.0
  %742 = vmatprep.subr.mxu0 0.0
  %743 = vmatpush1.msra.mxu0 0.0
  %744 = vmatprep.subr.mxu0 0.0
  %745 = vmatpush1.msra.mxu0 0.0
  %746 = vmatprep.subr.mxu0 0.0
  %747 = vmatpush1.msra.mxu0 0.0
  %748 = vmatprep.subr.mxu0 0.0
  %749 = vmatpush1.msra.mxu0 0.0
  %750 = vmatprep.subr.mxu0 0.0
  %751 = vmatpush1.msra.mxu0 0.0
  %752 = vmatprep.subr.mxu0 0.0
  %753 = vmatpush1.msra.mxu0 0.0
  %754 = vmatprep.subr.mxu0 0.0
  %755 = vmatpush1.msra.mxu0 0.0
  %756 = vmatprep.subr.mxu0 0.0
  %757 = vmatpush1.msra.mxu0 0.0
  %758 = vmatprep.subr.mxu0 0.0
  %759 = vmatpush1.msra.mxu0 0.0
  %760 = vmatprep.subr.mxu0 0.0
  %761 = vmatpush1.msra.mxu0 0.0
  %762 = vmatprep.subr.mxu0 0.0
  %763 = vmatpush1.msra.mxu0 0.0
  %764 = vmatprep.subr.mxu0 0.0
  %765 = vmatpush1.msra.mxu0 0.0
  %766 = vmatprep.subr.mxu0 0.0
  %767 = vmatpush1.msra.mxu0 0.0
  %768 = vmatprep.subr.mxu0 0.0
  %769 = vmatpush1.msra.mxu0 0.0
  %770 = vmatprep.subr.mxu0 0.0
  %771 = vmatpush1.msra.mxu0 0.0
  %772 = vmatprep.subr.mxu0 0.0
  %773 = vmatpush1.msra.mxu0 0.0
  %774 = vmatprep.subr.mxu0 0.0
  %775 = vmatpush1.msra.mxu0 0.0
  %776 = vmatprep.subr.mxu0 0.0
  %777 = vmatpush1.msra.mxu0 0.0
  %778 = vmatprep.subr.mxu0 0.0
  %779 = vmatpush1.msra.mxu0 0.0
  %780 = vmatprep.subr.mxu0 0.0
  %781 = vmatpush1.msra.mxu0 0.0
  %782 = vmatprep.subr.mxu0 0.0
  %783 = vmatpush1.msra.mxu0 0.0
  %784 = vmatprep.subr.mxu0 0.0
  %785 = vmatpush1.msra.mxu0 0.0
  %786 = vmatprep.subr.mxu0 0.0
  %787 = vmatpush1.msra.mxu0 0.0
  %788 = vmatprep.subr.mxu0 0.0
  %789 = vmatpush1.msra.mxu0 0.0
  %790 = vmatprep.mubr.f32.mxu0 0.0
  %791 = vmatmul.mubr.f32.gmra.mrb[0].mxu0 %v724
  %v792 = vpop.f32.mrb[0].mxu0
  %v793 = vadd.f32 0.0, %v792
  %v794 = vpop.f32.mrb[0].mxu0
  %795 = vdwg.mxu0
  %796 = vmatprep.subr.mxu0 0.0
  %797 = vmatpush1.msra.mxu0 %v245
  %798 = vmatprep.subr.mxu0 0.0
  %799 = vmatpush1.msra.mxu0 %v250
  %800 = vmatprep.subr.mxu0 0.0
  %801 = vmatpush1.msra.mxu0 %v255
  %802 = vmatprep.subr.mxu0 0.0
  %803 = vmatpush1.msra.mxu0 %v260
  %804 = vmatprep.subr.mxu0 0.0
  %805 = vmatpush1.msra.mxu0 0.0
  %806 = vmatprep.subr.mxu0 0.0
  %807 = vmatpush1.msra.mxu0 0.0
  %808 = vmatprep.subr.mxu0 0.0
  %809 = vmatpush1.msra.mxu0 0.0
  %810 = vmatprep.subr.mxu0 0.0
  %811 = vmatpush1.msra.mxu0 0.0
  %812 = vmatprep.subr.mxu0 0.0
  %813 = vmatpush1.msra.mxu0 0.0
  %814 = vmatprep.subr.mxu0 0.0
  %815 = vmatpush1.msra.mxu0 0.0
  %816 = vmatprep.subr.mxu0 0.0
  %817 = vmatpush1.msra.mxu0 0.0
  %818 = vmatprep.subr.mxu0 0.0
  %819 = vmatpush1.msra.mxu0 0.0
  %820 = vmatprep.subr.mxu0 0.0
  %821 = vmatpush1.msra.mxu0 0.0
  %822 = vmatprep.subr.mxu0 0.0
  %823 = vmatpush1.msra.mxu0 0.0
  %824 = vmatprep.subr.mxu0 0.0
  %825 = vmatpush1.msra.mxu0 0.0
  %826 = vmatprep.subr.mxu0 0.0
  %827 = vmatpush1.msra.mxu0 0.0
  %828 = vmatprep.subr.mxu0 0.0
  %829 = vmatpush1.msra.mxu0 0.0
  %830 = vmatprep.subr.mxu0 0.0
  %831 = vmatpush1.msra.mxu0 0.0
  %832 = vmatprep.subr.mxu0 0.0
  %833 = vmatpush1.msra.mxu0 0.0
  %834 = vmatprep.subr.mxu0 0.0
  %835 = vmatpush1.msra.mxu0 0.0
  %836 = vmatprep.subr.mxu0 0.0
  %837 = vmatpush1.msra.mxu0 0.0
  %838 = vmatprep.subr.mxu0 0.0
  %839 = vmatpush1.msra.mxu0 0.0
  %840 = vmatprep.subr.mxu0 0.0
  %841 = vmatpush1.msra.mxu0 0.0
  %842 = vmatprep.subr.mxu0 0.0
  %843 = vmatpush1.msra.mxu0 0.0
  %844 = vmatprep.subr.mxu0 0.0
  %845 = vmatpush1.msra.mxu0 0.0
  %846 = vmatprep.subr.mxu0 0.0
  %847 = vmatpush1.msra.mxu0 0.0
  %848 = vmatprep.subr.mxu0 0.0
  %849 = vmatpush1.msra.mxu0 0.0
  %850 = vmatprep.subr.mxu0 0.0
  %851 = vmatpush1.msra.mxu0 0.0
  %852 = vmatprep.subr.mxu0 0.0
  %853 = vmatpush1.msra.mxu0 0.0
  %854 = vmatprep.subr.mxu0 0.0
  %855 = vmatpush1.msra.mxu0 0.0
  %856 = vmatprep.subr.mxu0 0.0
  %857 = vmatpush1.msra.mxu0 0.0
  %858 = vmatprep.subr.mxu0 0.0
  %859 = vmatpush1.msra.mxu0 0.0
  %860 = vmatprep.mubr.f32.mxu0 0.0
  %861 = vmatmul.mubr.f32.gmra.mrb[0].mxu0 %v724
  %v862 = vpop.f32.mrb[0].mxu0
  %v863 = vadd.f32 0.0, %v862
  %v864 = vpop.f32.mrb[0].mxu0
  %865 = vdwg.mxu0
  %866 = vmatprep.subr.mxu0 0.0
  %867 = vmatpush1.msra.mxu0 %v333
  %868 = vmatprep.subr.mxu0 0.0
  %869 = vmatpush1.msra.mxu0 %v338
  %870 = vmatprep.subr.mxu0 0.0
  %871 = vmatpush1.msra.mxu0 %v343
  %872 = vmatprep.subr.mxu0 0.0
  %873 = vmatpush1.msra.mxu0 %v348
  %874 = vmatprep.subr.mxu0 0.0
  %875 = vmatpush1.msra.mxu0 0.0
  %876 = vmatprep.subr.mxu0 0.0
  %877 = vmatpush1.msra.mxu0 0.0
  %878 = vmatprep.subr.mxu0 0.0
  %879 = vmatpush1.msra.mxu0 0.0
  %880 = vmatprep.subr.mxu0 0.0
  %881 = vmatpush1.msra.mxu0 0.0
  %882 = vmatprep.subr.mxu0 0.0
  %883 = vmatpush1.msra.mxu0 0.0
  %884 = vmatprep.subr.mxu0 0.0
  %885 = vmatpush1.msra.mxu0 0.0
  %886 = vmatprep.subr.mxu0 0.0
  %887 = vmatpush1.msra.mxu0 0.0
  %888 = vmatprep.subr.mxu0 0.0
  %889 = vmatpush1.msra.mxu0 0.0
  %890 = vmatprep.subr.mxu0 0.0
  %891 = vmatpush1.msra.mxu0 0.0
  %892 = vmatprep.subr.mxu0 0.0
  %893 = vmatpush1.msra.mxu0 0.0
  %894 = vmatprep.subr.mxu0 0.0
  %895 = vmatpush1.msra.mxu0 0.0
  %896 = vmatprep.subr.mxu0 0.0
  %897 = vmatpush1.msra.mxu0 0.0
  %898 = vmatprep.subr.mxu0 0.0
  %899 = vmatpush1.msra.mxu0 0.0
  %900 = vmatprep.subr.mxu0 0.0
  %901 = vmatpush1.msra.mxu0 0.0
  %902 = vmatprep.subr.mxu0 0.0
  %903 = vmatpush1.msra.mxu0 0.0
  %904 = vmatprep.subr.mxu0 0.0
  %905 = vmatpush1.msra.mxu0 0.0
  %906 = vmatprep.subr.mxu0 0.0
  %907 = vmatpush1.msra.mxu0 0.0
  %908 = vmatprep.subr.mxu0 0.0
  %909 = vmatpush1.msra.mxu0 0.0
  %910 = vmatprep.subr.mxu0 0.0
  %911 = vmatpush1.msra.mxu0 0.0
  %912 = vmatprep.subr.mxu0 0.0
  %913 = vmatpush1.msra.mxu0 0.0
  %914 = vmatprep.subr.mxu0 0.0
  %915 = vmatpush1.msra.mxu0 0.0
  %916 = vmatprep.subr.mxu0 0.0
  %917 = vmatpush1.msra.mxu0 0.0
  %918 = vmatprep.subr.mxu0 0.0
  %919 = vmatpush1.msra.mxu0 0.0
  %920 = vmatprep.subr.mxu0 0.0
  %921 = vmatpush1.msra.mxu0 0.0
  %922 = vmatprep.subr.mxu0 0.0
  %923 = vmatpush1.msra.mxu0 0.0
  %924 = vmatprep.subr.mxu0 0.0
  %925 = vmatpush1.msra.mxu0 0.0
  %926 = vmatprep.subr.mxu0 0.0
  %927 = vmatpush1.msra.mxu0 0.0
  %928 = vmatprep.subr.mxu0 0.0
  %929 = vmatpush1.msra.mxu0 0.0
  %930 = vmatprep.mubr.f32.mxu0 0.0
  %931 = vmatmul.mubr.f32.gmra.mrb[0].mxu0 %v724
  %v932 = vpop.f32.mrb[0].mxu0
  %v933 = vadd.f32 0.0, %v932
  %v934 = vpop.f32.mrb[0].mxu0
  %935 = vdwg.mxu0
  %936 = vmatprep.subr.mxu0 0.0
  %937 = vmatpush1.msra.mxu0 %v421
  %938 = vmatprep.subr.mxu0 0.0
  %939 = vmatpush1.msra.mxu0 %v426
  %940 = vmatprep.subr.mxu0 0.0
  %941 = vmatpush1.msra.mxu0 %v431
  %942 = vmatprep.subr.mxu0 0.0
  %943 = vmatpush1.msra.mxu0 %v436
  %944 = vmatprep.subr.mxu0 0.0
  %945 = vmatpush1.msra.mxu0 0.0
  %946 = vmatprep.subr.mxu0 0.0
  %947 = vmatpush1.msra.mxu0 0.0
  %948 = vmatprep.subr.mxu0 0.0
  %949 = vmatpush1.msra.mxu0 0.0
  %950 = vmatprep.subr.mxu0 0.0
  %951 = vmatpush1.msra.mxu0 0.0
  %952 = vmatprep.subr.mxu0 0.0
  %953 = vmatpush1.msra.mxu0 0.0
  %954 = vmatprep.subr.mxu0 0.0
  %955 = vmatpush1.msra.mxu0 0.0
  %956 = vmatprep.subr.mxu0 0.0
  %957 = vmatpush1.msra.mxu0 0.0
  %958 = vmatprep.subr.mxu0 0.0
  %959 = vmatpush1.msra.mxu0 0.0
  %960 = vmatprep.subr.mxu0 0.0
  %961 = vmatpush1.msra.mxu0 0.0
  %962 = vmatprep.subr.mxu0 0.0
  %963 = vmatpush1.msra.mxu0 0.0
  %964 = vmatprep.subr.mxu0 0.0
  %965 = vmatpush1.msra.mxu0 0.0
  %966 = vmatprep.subr.mxu0 0.0
  %967 = vmatpush1.msra.mxu0 0.0
  %968 = vmatprep.subr.mxu0 0.0
  %969 = vmatpush1.msra.mxu0 0.0
  %970 = vmatprep.subr.mxu0 0.0
  %971 = vmatpush1.msra.mxu0 0.0
  %972 = vmatprep.subr.mxu0 0.0
  %973 = vmatpush1.msra.mxu0 0.0
  %974 = vmatprep.subr.mxu0 0.0
  %975 = vmatpush1.msra.mxu0 0.0
  %976 = vmatprep.subr.mxu0 0.0
  %977 = vmatpush1.msra.mxu0 0.0
  %978 = vmatprep.subr.mxu0 0.0
  %979 = vmatpush1.msra.mxu0 0.0
  %980 = vmatprep.subr.mxu0 0.0
  %981 = vmatpush1.msra.mxu0 0.0
  %982 = vmatprep.subr.mxu0 0.0
  %983 = vmatpush1.msra.mxu0 0.0
  %984 = vmatprep.subr.mxu0 0.0
  %985 = vmatpush1.msra.mxu0 0.0
  %986 = vmatprep.subr.mxu0 0.0
  %987 = vmatpush1.msra.mxu0 0.0
  %988 = vmatprep.subr.mxu0 0.0
  %989 = vmatpush1.msra.mxu0 0.0
  %990 = vmatprep.subr.mxu0 0.0
  %991 = vmatpush1.msra.mxu0 0.0
  %992 = vmatprep.subr.mxu0 0.0
  %993 = vmatpush1.msra.mxu0 0.0
  %994 = vmatprep.subr.mxu0 0.0
  %995 = vmatpush1.msra.mxu0 0.0
  %996 = vmatprep.subr.mxu0 0.0
  %997 = vmatpush1.msra.mxu0 0.0
  %998 = vmatprep.subr.mxu0 0.0
  %999 = vmatpush1.msra.mxu0 0.0
  %1000 = vmatprep.mubr.f32.mxu0 0.0
  %1001 = vmatmul.mubr.f32.gmra.mrb[0].mxu0 %v724
  %v1002 = vpop.f32.mrb[0].mxu0
  %v1003 = vadd.f32 0.0, %v1002
  %v1004 = vpop.f32.mrb[0].mxu0
  %1005 = vdwg.mxu0
  %v1006 = vadd.f32 %v793, %v580
  %vm1007 = vcmp.gt.f32.partialorder %v1006, 0.0
  %v1008 = vmul.f32 %v1006, 0.2
  %v1009 = vsel %vm1007, %v1006, %v1008
  %v1010 = vadd.f32 %v793, %v650
  %vm1011 = vcmp.gt.f32.partialorder %v1010, 0.0
  %v1012 = vmul.f32 %v1010, 0.2
  %v1013 = vsel %vm1011, %v1010, %v1012
  %v1014 = vadd.f32 %v793, %v720
  %vm1015 = vcmp.gt.f32.partialorder %v1014, 0.0
  %v1016 = vmul.f32 %v1014, 0.2
  %v1017 = vsel %vm1015, %v1014, %v1016
  %v1018 = vmax.f32 %v1009, %v1013
  %v1019 = vmax.f32 %v1018, %v1017
  %v1020 = vsub.f32 %v1009, %v1019
  %v1021 = vmul.f32 %v1020, 1.442695
  %v1022 = vpow.pop %v1021
  %v1023 = vsub.f32 %v1013, %v1019
  %v1024 = vmul.f32 %v1023, 1.442695
  %v1025 = vpow.pop %v1024
  %v1026 = vsub.f32 %v1017, %v1019
  %v1027 = vmul.f32 %v1026, 1.442695
  %v1028 = vpow.pop %v1027
  %v1029 = vadd.f32 %v1022, %v1025
  %v1030 = vadd.f32 %v1029, %v1028
  %v1031 = vrcp.pop %v1030
  %v1032 = vmul.f32 %v1022, %v1031
  %v1033 = vlaneseq
  %v1034 = vshrl.u32 %v1033, 7
  %v1035 = vsub.s32 0, %v1034
  %v1036 = vrot.slane %v1032, %v1035
  %v1037 = vmul.f32 %v1036, %v245
  %v1038 = vmul.f32 %v1036, %v250
  %v1039 = vmul.f32 %v1036, %v255
  %v1040 = vmul.f32 %v1036, %v260
  %v1041 = vmul.f32 %v1025, %v1031
  %v1042 = vlaneseq
  %v1043 = vshrl.u32 %v1042, 7
  %v1044 = vsub.s32 0, %v1043
  %v1045 = vrot.slane %v1041, %v1044
  %v1046 = vmul.f32 %v1045, %v333
  %v1047 = vmul.f32 %v1045, %v338
  %v1048 = vmul.f32 %v1045, %v343
  %v1049 = vmul.f32 %v1045, %v348
  %v1050 = vadd.f32 %v1037, %v1046
  %v1051 = vadd.f32 %v1038, %v1047
  %v1052 = vadd.f32 %v1039, %v1048
  %v1053 = vadd.f32 %v1040, %v1049
  %v1054 = vmul.f32 %v1028, %v1031
  %v1055 = vlaneseq
  %v1056 = vshrl.u32 %v1055, 7
  %v1057 = vsub.s32 0, %v1056
  %v1058 = vrot.slane %v1054, %v1057
  %v1059 = vmul.f32 %v1058, %v421
  %v1060 = vmul.f32 %v1058, %v426
  %v1061 = vmul.f32 %v1058, %v431
  %v1062 = vmul.f32 %v1058, %v436
  %v1063 = vadd.f32 %v1050, %v1059
  %v1064 = vadd.f32 %v1051, %v1060
  %v1065 = vadd.f32 %v1052, %v1061
  %v1066 = vadd.f32 %v1053, %v1062
  %1068 = vset.pattern.permute.xlu0 0
  %1069 = vperm.xlu0 %1068, %v69
  %v1070 = vpop.permute.xlu0 %1069
  %1073 = vset.pattern.permute.xlu0 0
  %1074 = vperm.xlu0 %1073, %v70
  %v1075 = vpop.permute.xlu0 %1074
  %1078 = vset.pattern.permute.xlu0 0
  %1079 = vperm.xlu0 %1078, %v71
  %v1080 = vpop.permute.xlu0 %1079
  %1083 = vset.pattern.permute.xlu0 0
  %1084 = vperm.xlu0 %1083, %v72
  %v1085 = vpop.permute.xlu0 %1084
  %v1087 = vadd.f32 %v1063, %v1070
  %v1088 = vadd.f32 %v1064, %v1075
  %v1089 = vadd.f32 %v1065, %v1080
  %v1090 = vadd.f32 %v1066, %v1085
  %v1091 = vadd.f32 %v863, %v510
  %vm1092 = vcmp.gt.f32.partialorder %v1091, 0.0
  %v1093 = vmul.f32 %v1091, 0.2
  %v1094 = vsel %vm1092, %v1091, %v1093
  %v1095 = vadd.f32 %v863, %v650
  %vm1096 = vcmp.gt.f32.partialorder %v1095, 0.0
  %v1097 = vmul.f32 %v1095, 0.2
  %v1098 = vsel %vm1096, %v1095, %v1097
  %v1099 = vadd.f32 %v863, %v720
  %vm1100 = vcmp.gt.f32.partialorder %v1099, 0.0
  %v1101 = vmul.f32 %v1099, 0.2
  %v1102 = vsel %vm1100, %v1099, %v1101
  %v1103 = vmax.f32 %v1094, %v1098
  %v1104 = vmax.f32 %v1103, %v1102
  %v1105 = vsub.f32 %v1094, %v1104
  %v1106 = vmul.f32 %v1105, 1.442695
  %v1107 = vpow.pop %v1106
  %v1108 = vsub.f32 %v1098, %v1104
  %v1109 = vmul.f32 %v1108, 1.442695
  %v1110 = vpow.pop %v1109
  %v1111 = vsub.f32 %v1102, %v1104
  %v1112 = vmul.f32 %v1111, 1.442695
  %v1113 = vpow.pop %v1112
  %v1114 = vadd.f32 %v1107, %v1110
  %v1115 = vadd.f32 %v1114, %v1113
  %v1116 = vrcp.pop %v1115
  %v1117 = vmul.f32 %v1107, %v1116
  %v1118 = vlaneseq
  %v1119 = vshrl.u32 %v1118, 7
  %v1120 = vsub.s32 0, %v1119
  %v1121 = vrot.slane %v1117, %v1120
  %v1122 = vmul.f32 %v1121, %v157
  %v1123 = vmul.f32 %v1121, %v162
  %v1124 = vmul.f32 %v1121, %v167
  %v1125 = vmul.f32 %v1121, %v172
  %v1126 = vmul.f32 %v1110, %v1116
  %v1127 = vlaneseq
  %v1128 = vshrl.u32 %v1127, 7
  %v1129 = vsub.s32 0, %v1128
  %v1130 = vrot.slane %v1126, %v1129
  %v1131 = vmul.f32 %v1130, %v333
  %v1132 = vmul.f32 %v1130, %v338
  %v1133 = vmul.f32 %v1130, %v343
  %v1134 = vmul.f32 %v1130, %v348
  %v1135 = vadd.f32 %v1122, %v1131
  %v1136 = vadd.f32 %v1123, %v1132
  %v1137 = vadd.f32 %v1124, %v1133
  %v1138 = vadd.f32 %v1125, %v1134
  %v1139 = vmul.f32 %v1113, %v1116
  %v1140 = vlaneseq
  %v1141 = vshrl.u32 %v1140, 7
  %v1142 = vsub.s32 0, %v1141
  %v1143 = vrot.slane %v1139, %v1142
  %v1144 = vmul.f32 %v1143, %v421
  %v1145 = vmul.f32 %v1143, %v426
  %v1146 = vmul.f32 %v1143, %v431
  %v1147 = vmul.f32 %v1143, %v436
  %v1148 = vadd.f32 %v1135, %v1144
  %v1149 = vadd.f32 %v1136, %v1145
  %v1150 = vadd.f32 %v1137, %v1146
  %v1151 = vadd.f32 %v1138, %v1147
  %v1152 = vadd.f32 %v1148, %v1070
  %v1153 = vadd.f32 %v1149, %v1075
  %v1154 = vadd.f32 %v1150, %v1080
  %v1155 = vadd.f32 %v1151, %v1085
  %v1156 = vadd.f32 %v933, %v510
  %vm1157 = vcmp.gt.f32.partialorder %v1156, 0.0
  %v1158 = vmul.f32 %v1156, 0.2
  %v1159 = vsel %vm1157, %v1156, %v1158
  %v1160 = vadd.f32 %v933, %v580
  %vm1161 = vcmp.gt.f32.partialorder %v1160, 0.0
  %v1162 = vmul.f32 %v1160, 0.2
  %v1163 = vsel %vm1161, %v1160, %v1162
  %v1164 = vadd.f32 %v933, %v720
  %vm1165 = vcmp.gt.f32.partialorder %v1164, 0.0
  %v1166 = vmul.f32 %v1164, 0.2
  %v1167 = vsel %vm1165, %v1164, %v1166
  %v1168 = vmax.f32 %v1159, %v1163
  %v1169 = vmax.f32 %v1168, %v1167
  %v1170 = vsub.f32 %v1159, %v1169
  %v1171 = vmul.f32 %v1170, 1.442695
  %v1172 = vpow.pop %v1171
  %v1173 = vsub.f32 %v1163, %v1169
  %v1174 = vmul.f32 %v1173, 1.442695
  %v1175 = vpow.pop %v1174
  %v1176 = vsub.f32 %v1167, %v1169
  %v1177 = vmul.f32 %v1176, 1.442695
  %v1178 = vpow.pop %v1177
  %v1179 = vadd.f32 %v1172, %v1175
  %v1180 = vadd.f32 %v1179, %v1178
  %v1181 = vrcp.pop %v1180
  %v1182 = vmul.f32 %v1172, %v1181
  %v1183 = vlaneseq
  %v1184 = vshrl.u32 %v1183, 7
  %v1185 = vsub.s32 0, %v1184
  %v1186 = vrot.slane %v1182, %v1185
  %v1187 = vmul.f32 %v1186, %v157
  %v1188 = vmul.f32 %v1186, %v162
  %v1189 = vmul.f32 %v1186, %v167
  %v1190 = vmul.f32 %v1186, %v172
  %v1191 = vmul.f32 %v1175, %v1181
  %v1192 = vlaneseq
  %v1193 = vshrl.u32 %v1192, 7
  %v1194 = vsub.s32 0, %v1193
  %v1195 = vrot.slane %v1191, %v1194
  %v1196 = vmul.f32 %v1195, %v245
  %v1197 = vmul.f32 %v1195, %v250
  %v1198 = vmul.f32 %v1195, %v255
  %v1199 = vmul.f32 %v1195, %v260
  %v1200 = vadd.f32 %v1187, %v1196
  %v1201 = vadd.f32 %v1188, %v1197
  %v1202 = vadd.f32 %v1189, %v1198
  %v1203 = vadd.f32 %v1190, %v1199
  %v1204 = vmul.f32 %v1178, %v1181
  %v1205 = vlaneseq
  %v1206 = vshrl.u32 %v1205, 7
  %v1207 = vsub.s32 0, %v1206
  %v1208 = vrot.slane %v1204, %v1207
  %v1209 = vmul.f32 %v1208, %v421
  %v1210 = vmul.f32 %v1208, %v426
  %v1211 = vmul.f32 %v1208, %v431
  %v1212 = vmul.f32 %v1208, %v436
  %v1213 = vadd.f32 %v1200, %v1209
  %v1214 = vadd.f32 %v1201, %v1210
  %v1215 = vadd.f32 %v1202, %v1211
  %v1216 = vadd.f32 %v1203, %v1212
  %v1217 = vadd.f32 %v1213, %v1070
  %v1218 = vadd.f32 %v1214, %v1075
  %v1219 = vadd.f32 %v1215, %v1080
  %v1220 = vadd.f32 %v1216, %v1085
  %v1221 = vadd.f32 %v1003, %v510
  %vm1222 = vcmp.gt.f32.partialorder %v1221, 0.0
  %v1223 = vmul.f32 %v1221, 0.2
  %v1224 = vsel %vm1222, %v1221, %v1223
  %v1225 = vadd.f32 %v1003, %v580
  %vm1226 = vcmp.gt.f32.partialorder %v1225, 0.0
  %v1227 = vmul.f32 %v1225, 0.2
  %v1228 = vsel %vm1226, %v1225, %v1227
  %v1229 = vadd.f32 %v1003, %v650
  %vm1230 = vcmp.gt.f32.partialorder %v1229, 0.0
  %v1231 = vmul.f32 %v1229, 0.2
  %v1232 = vsel %vm1230, %v1229, %v1231
  %v1233 = vmax.f32 %v1224, %v1228
  %v1234 = vmax.f32 %v1233, %v1232
  %v1235 = vsub.f32 %v1224, %v1234
  %v1236 = vmul.f32 %v1235, 1.442695
  %v1237 = vpow.pop %v1236
  %v1238 = vsub.f32 %v1228, %v1234
  %v1239 = vmul.f32 %v1238, 1.442695
  %v1240 = vpow.pop %v1239
  %v1241 = vsub.f32 %v1232, %v1234
  %v1242 = vmul.f32 %v1241, 1.442695
  %v1243 = vpow.pop %v1242
  %v1244 = vadd.f32 %v1237, %v1240
  %v1245 = vadd.f32 %v1244, %v1243
  %v1246 = vrcp.pop %v1245
  %v1247 = vmul.f32 %v1237, %v1246
  %v1248 = vlaneseq
  %v1249 = vshrl.u32 %v1248, 7
  %v1250 = vsub.s32 0, %v1249
  %v1251 = vrot.slane %v1247, %v1250
  %v1252 = vmul.f32 %v1251, %v157
  %v1253 = vmul.f32 %v1251, %v162
  %v1254 = vmul.f32 %v1251, %v167
  %v1255 = vmul.f32 %v1251, %v172
  %v1256 = vmul.f32 %v1240, %v1246
  %v1257 = vlaneseq
  %v1258 = vshrl.u32 %v1257, 7
  %v1259 = vsub.s32 0, %v1258
  %v1260 = vrot.slane %v1256, %v1259
  %v1261 = vmul.f32 %v1260, %v245
  %v1262 = vmul.f32 %v1260, %v250
  %v1263 = vmul.f32 %v1260, %v255
  %v1264 = vmul.f32 %v1260, %v260
  %v1265 = vadd.f32 %v1252, %v1261
  %v1266 = vadd.f32 %v1253, %v1262
  %v1267 = vadd.f32 %v1254, %v1263
  %v1268 = vadd.f32 %v1255, %v1264
  %v1269 = vmul.f32 %v1243, %v1246
  %v1270 = vlaneseq
  %v1271 = vshrl.u32 %v1270, 7
  %v1272 = vsub.s32 0, %v1271
  %v1273 = vrot.slane %v1269, %v1272
  %v1274 = vmul.f32 %v1273, %v333
  %v1275 = vmul.f32 %v1273, %v338
  %v1276 = vmul.f32 %v1273, %v343
  %v1277 = vmul.f32 %v1273, %v348
  %v1278 = vadd.f32 %v1265, %v1274
  %v1279 = vadd.f32 %v1266, %v1275
  %v1280 = vadd.f32 %v1267, %v1276
  %v1281 = vadd.f32 %v1268, %v1277
  %v1282 = vadd.f32 %v1278, %v1070
  %v1283 = vadd.f32 %v1279, %v1075
  %v1284 = vadd.f32 %v1280, %v1080
  %v1285 = vadd.f32 %v1281, %v1085
  %v1286 = vmax.f32 %v1087, 0.0
  %v1287 = vmax.f32 %v1088, 0.0
  %v1288 = vmax.f32 %v1089, 0.0
  %v1289 = vmax.f32 %v1090, 0.0
  %v1290 = vmax.f32 %v1152, 0.0
  %v1291 = vmax.f32 %v1153, 0.0
  %v1292 = vmax.f32 %v1154, 0.0
  %v1293 = vmax.f32 %v1155, 0.0
  %v1294 = vmax.f32 %v1217, 0.0
  %v1295 = vmax.f32 %v1218, 0.0
  %v1296 = vmax.f32 %v1219, 0.0
  %v1297 = vmax.f32 %v1220, 0.0
  %v1298 = vmax.f32 %v1282, 0.0
  %v1299 = vmax.f32 %v1283, 0.0
  %v1300 = vmax.f32 %v1284, 0.0
  %v1301 = vmax.f32 %v1285, 0.0
  %v1302 = vld [vmem:[%s5] sm:$0xff]
  %v1303 = vld [vmem:[%s5 + $0x8] sm:$0xff]
  %v1304 = vld [vmem:[%s5 + $0x10] sm:$0xff]
  %v1305 = vld [vmem:[%s5 + $0x18] sm:$0xff]
  %v1306 = vld [vmem:[%s6] sm:$0x1]
  %v1307 = vld [vmem:[%s7] sm:$0x1]
  %v1308 = vld [vmem:[%s8] sm:$0xff]
  %v1309 = vld [vmem:[%s8 + $0x8] sm:$0xff]
  %v1310 = vld [vmem:[%s8 + $0x10] sm:$0xff]
  %v1311 = vld [vmem:[%s8 + $0x18] sm:$0xff]
  %v1313 = vsel %vm439, %v1302, 0
  %v1316 = vsel %vm439, %v1303, 0
  %v1319 = vsel %vm439, %v1304, 0
  %v1322 = vsel %vm439, %v1305, 0
  %1324 = vmatprep.subr.mxu0 0.0
  %1325 = vmatpush1.msra.mxu0 %v1286
  %1326 = vmatprep.subr.mxu0 0.0
  %1327 = vmatpush1.msra.mxu0 %v1287
  %1328 = vmatprep.subr.mxu0 0.0
  %1329 = vmatpush1.msra.mxu0 %v1288
  %1330 = vmatprep.subr.mxu0 0.0
  %1331 = vmatpush1.msra.mxu0 %v1289
  %1332 = vmatprep.subr.mxu0 0.0
  %1333 = vmatpush1.msra.mxu0 0.0
  %1334 = vmatprep.subr.mxu0 0.0
  %1335 = vmatpush1.msra.mxu0 0.0
  %1336 = vmatprep.subr.mxu0 0.0
  %1337 = vmatpush1.msra.mxu0 0.0
  %1338 = vmatprep.subr.mxu0 0.0
  %1339 = vmatpush1.msra.mxu0 0.0
  %1340 = vmatprep.subr.mxu0 0.0
  %1341 = vmatpush1.msra.mxu0 0.0
  %1342 = vmatprep.subr.mxu0 0.0
  %1343 = vmatpush1.msra.mxu0 0.0
  %1344 = vmatprep.subr.mxu0 0.0
  %1345 = vmatpush1.msra.mxu0 0.0
  %1346 = vmatprep.subr.mxu0 0.0
  %1347 = vmatpush1.msra.mxu0 0.0
  %1348 = vmatprep.subr.mxu0 0.0
  %1349 = vmatpush1.msra.mxu0 0.0
  %1350 = vmatprep.subr.mxu0 0.0
  %1351 = vmatpush1.msra.mxu0 0.0
  %1352 = vmatprep.subr.mxu0 0.0
  %1353 = vmatpush1.msra.mxu0 0.0
  %1354 = vmatprep.subr.mxu0 0.0
  %1355 = vmatpush1.msra.mxu0 0.0
  %1356 = vmatprep.subr.mxu0 0.0
  %1357 = vmatpush1.msra.mxu0 0.0
  %1358 = vmatprep.subr.mxu0 0.0
  %1359 = vmatpush1.msra.mxu0 0.0
  %1360 = vmatprep.subr.mxu0 0.0
  %1361 = vmatpush1.msra.mxu0 0.0
  %1362 = vmatprep.subr.mxu0 0.0
  %1363 = vmatpush1.msra.mxu0 0.0
  %1364 = vmatprep.subr.mxu0 0.0
  %1365 = vmatpush1.msra.mxu0 0.0
  %1366 = vmatprep.subr.mxu0 0.0
  %1367 = vmatpush1.msra.mxu0 0.0
  %1368 = vmatprep.subr.mxu0 0.0
  %1369 = vmatpush1.msra.mxu0 0.0
  %1370 = vmatprep.subr.mxu0 0.0
  %1371 = vmatpush1.msra.mxu0 0.0
  %1372 = vmatprep.subr.mxu0 0.0
  %1373 = vmatpush1.msra.mxu0 0.0
  %1374 = vmatprep.subr.mxu0 0.0
  %1375 = vmatpush1.msra.mxu0 0.0
  %1376 = vmatprep.subr.mxu0 0.0
  %1377 = vmatpush1.msra.mxu0 0.0
  %1378 = vmatprep.subr.mxu0 0.0
  %1379 = vmatpush1.msra.mxu0 0.0
  %1380 = vmatprep.subr.mxu0 0.0
  %1381 = vmatpush1.msra.mxu0 0.0
  %1382 = vmatprep.subr.mxu0 0.0
  %1383 = vmatpush1.msra.mxu0 0.0
  %1384 = vmatprep.subr.mxu0 0.0
  %1385 = vmatpush1.msra.mxu0 0.0
  %1386 = vmatprep.subr.mxu0 0.0
  %1387 = vmatpush1.msra.mxu0 0.0
  %1388 = vmatprep.mubr.f32.mxu0 0.0
  %1389 = vmatmul.mubr.f32.gmra.mrb[0].mxu0 %v1313
  %v1390 = vpop.f32.mrb[0].mxu0
  %v1391 = vadd.f32 0.0, %v1390
  %v1392 = vpop.f32.mrb[0].mxu0
  %1393 = vmatprep.mubr.f32.mxu0 0.0
  %1394 = vmatmul.mubr.f32.gmra.mrb[0].mxu0 %v1316
  %v1395 = vpop.f32.mrb[0].mxu0
  %v1396 = vadd.f32 0.0, %v1395
  %v1397 = vpop.f32.mrb[0].mxu0
  %1398 = vmatprep.mubr.f32.mxu0 0.0
  %1399 = vmatmul.mubr.f32.gmra.mrb[0].mxu0 %v1319
  %v1400 = vpop.f32.mrb[0].mxu0
  %v1401 = vadd.f32 0.0, %v1400
  %v1402 = vpop.f32.mrb[0].mxu0
  %1403 = vmatprep.mubr.f32.mxu0 0.0
  %1404 = vmatmul.mubr.f32.gmra.mrb[0].mxu0 %v1322
  %v1405 = vpop.f32.mrb[0].mxu0
  %v1406 = vadd.f32 0.0, %v1405
  %v1407 = vpop.f32.mrb[0].mxu0
  %1408 = vdwg.mxu0
  %1409 = vmatprep.subr.mxu0 0.0
  %1410 = vmatpush1.msra.mxu0 %v1290
  %1411 = vmatprep.subr.mxu0 0.0
  %1412 = vmatpush1.msra.mxu0 %v1291
  %1413 = vmatprep.subr.mxu0 0.0
  %1414 = vmatpush1.msra.mxu0 %v1292
  %1415 = vmatprep.subr.mxu0 0.0
  %1416 = vmatpush1.msra.mxu0 %v1293
  %1417 = vmatprep.subr.mxu0 0.0
  %1418 = vmatpush1.msra.mxu0 0.0
  %1419 = vmatprep.subr.mxu0 0.0
  %1420 = vmatpush1.msra.mxu0 0.0
  %1421 = vmatprep.subr.mxu0 0.0
  %1422 = vmatpush1.msra.mxu0 0.0
  %1423 = vmatprep.subr.mxu0 0.0
  %1424 = vmatpush1.msra.mxu0 0.0
  %1425 = vmatprep.subr.mxu0 0.0
  %1426 = vmatpush1.msra.mxu0 0.0
  %1427 = vmatprep.subr.mxu0 0.0
  %1428 = vmatpush1.msra.mxu0 0.0
  %1429 = vmatprep.subr.mxu0 0.0
  %1430 = vmatpush1.msra.mxu0 0.0
  %1431 = vmatprep.subr.mxu0 0.0
  %1432 = vmatpush1.msra.mxu0 0.0
  %1433 = vmatprep.subr.mxu0 0.0
  %1434 = vmatpush1.msra.mxu0 0.0
  %1435 = vmatprep.subr.mxu0 0.0
  %1436 = vmatpush1.msra.mxu0 0.0
  %1437 = vmatprep.subr.mxu0 0.0
  %1438 = vmatpush1.msra.mxu0 0.0
  %1439 = vmatprep.subr.mxu0 0.0
  %1440 = vmatpush1.msra.mxu0 0.0
  %1441 = vmatprep.subr.mxu0 0.0
  %1442 = vmatpush1.msra.mxu0 0.0
  %1443 = vmatprep.subr.mxu0 0.0
  %1444 = vmatpush1.msra.mxu0 0.0
  %1445 = vmatprep.subr.mxu0 0.0
  %1446 = vmatpush1.msra.mxu0 0.0
  %1447 = vmatprep.subr.mxu0 0.0
  %1448 = vmatpush1.msra.mxu0 0.0
  %1449 = vmatprep.subr.mxu0 0.0
  %1450 = vmatpush1.msra.mxu0 0.0
  %1451 = vmatprep.subr.mxu0 0.0
  %1452 = vmatpush1.msra.mxu0 0.0
  %1453 = vmatprep.subr.mxu0 0.0
  %1454 = vmatpush1.msra.mxu0 0.0
  %1455 = vmatprep.subr.mxu0 0.0
  %1456 = vmatpush1.msra.mxu0 0.0
  %1457 = vmatprep.subr.mxu0 0.0
  %1458 = vmatpush1.msra.mxu0 0.0
  %1459 = vmatprep.subr.mxu0 0.0
  %1460 = vmatpush1.msra.mxu0 0.0
  %1461 = vmatprep.subr.mxu0 0.0
  %1462 = vmatpush1.msra.mxu0 0.0
  %1463 = vmatprep.subr.mxu0 0.0
  %1464 = vmatpush1.msra.mxu0 0.0
  %1465 = vmatprep.subr.mxu0 0.0
  %1466 = vmatpush1.msra.mxu0 0.0
  %1467 = vmatprep.subr.mxu0 0.0
  %1468 = vmatpush1.msra.mxu0 0.0
  %1469 = vmatprep.subr.mxu0 0.0
  %1470 = vmatpush1.msra.mxu0 0.0
  %1471 = vmatprep.subr.mxu0 0.0
  %1472 = vmatpush1.msra.mxu0 0.0
  %1473 = vmatprep.mubr.f32.mxu0 0.0
  %1474 = vmatmul.mubr.f32.gmra.mrb[0].mxu0 %v1313
  %v1475 = vpop.f32.mrb[0].mxu0
  %v1476 = vadd.f32 0.0, %v1475
  %v1477 = vpop.f32.mrb[0].mxu0
  %1478 = vmatprep.mubr.f32.mxu0 0.0
  %1479 = vmatmul.mubr.f32.gmra.mrb[0].mxu0 %v1316
  %v1480 = vpop.f32.mrb[0].mxu0
  %v1481 = vadd.f32 0.0, %v1480
  %v1482 = vpop.f32.mrb[0].mxu0
  %1483 = vmatprep.mubr.f32.mxu0 0.0
  %1484 = vmatmul.mubr.f32.gmra.mrb[0].mxu0 %v1319
  %v1485 = vpop.f32.mrb[0].mxu0
  %v1486 = vadd.f32 0.0, %v1485
  %v1487 = vpop.f32.mrb[0].mxu0
  %1488 = vmatprep.mubr.f32.mxu0 0.0
  %1489 = vmatmul.mubr.f32.gmra.mrb[0].mxu0 %v1322
  %v1490 = vpop.f32.mrb[0].mxu0
  %v1491 = vadd.f32 0.0, %v1490
  %v1492 = vpop.f32.mrb[0].mxu0
  %1493 = vdwg.mxu0
  %1494 = vmatprep.subr.mxu0 0.0
  %1495 = vmatpush1.msra.mxu0 %v1294
  %1496 = vmatprep.subr.mxu0 0.0
  %1497 = vmatpush1.msra.mxu0 %v1295
  %1498 = vmatprep.subr.mxu0 0.0
  %1499 = vmatpush1.msra.mxu0 %v1296
  %1500 = vmatprep.subr.mxu0 0.0
  %1501 = vmatpush1.msra.mxu0 %v1297
  %1502 = vmatprep.subr.mxu0 0.0
  %1503 = vmatpush1.msra.mxu0 0.0
  %1504 = vmatprep.subr.mxu0 0.0
  %1505 = vmatpush1.msra.mxu0 0.0
  %1506 = vmatprep.subr.mxu0 0.0
  %1507 = vmatpush1.msra.mxu0 0.0
  %1508 = vmatprep.subr.mxu0 0.0
  %1509 = vmatpush1.msra.mxu0 0.0
  %1510 = vmatprep.subr.mxu0 0.0
  %1511 = vmatpush1.msra.mxu0 0.0
  %1512 = vmatprep.subr.mxu0 0.0
  %1513 = vmatpush1.msra.mxu0 0.0
  %1514 = vmatprep.subr.mxu0 0.0
  %1515 = vmatpush1.msra.mxu0 0.0
  %1516 = vmatprep.subr.mxu0 0.0
  %1517 = vmatpush1.msra.mxu0 0.0
  %1518 = vmatprep.subr.mxu0 0.0
  %1519 = vmatpush1.msra.mxu0 0.0
  %1520 = vmatprep.subr.mxu0 0.0
  %1521 = vmatpush1.msra.mxu0 0.0
  %1522 = vmatprep.subr.mxu0 0.0
  %1523 = vmatpush1.msra.mxu0 0.0
  %1524 = vmatprep.subr.mxu0 0.0
  %1525 = vmatpush1.msra.mxu0 0.0
  %1526 = vmatprep.subr.mxu0 0.0
  %1527 = vmatpush1.msra.mxu0 0.0
  %1528 = vmatprep.subr.mxu0 0.0
  %1529 = vmatpush1.msra.mxu0 0.0
  %1530 = vmatprep.subr.mxu0 0.0
  %1531 = vmatpush1.msra.mxu0 0.0
  %1532 = vmatprep.subr.mxu0 0.0
  %1533 = vmatpush1.msra.mxu0 0.0
  %1534 = vmatprep.subr.mxu0 0.0
  %1535 = vmatpush1.msra.mxu0 0.0
  %1536 = vmatprep.subr.mxu0 0.0
  %1537 = vmatpush1.msra.mxu0 0.0
  %1538 = vmatprep.subr.mxu0 0.0
  %1539 = vmatpush1.msra.mxu0 0.0
  %1540 = vmatprep.subr.mxu0 0.0
  %1541 = vmatpush1.msra.mxu0 0.0
  %1542 = vmatprep.subr.mxu0 0.0
  %1543 = vmatpush1.msra.mxu0 0.0
  %1544 = vmatprep.subr.mxu0 0.0
  %1545 = vmatpush1.msra.mxu0 0.0
  %1546 = vmatprep.subr.mxu0 0.0
  %1547 = vmatpush1.msra.mxu0 0.0
  %1548 = vmatprep.subr.mxu0 0.0
  %1549 = vmatpush1.msra.mxu0 0.0
  %1550 = vmatprep.subr.mxu0 0.0
  %1551 = vmatpush1.msra.mxu0 0.0
  %1552 = vmatprep.subr.mxu0 0.0
  %1553 = vmatpush1.msra.mxu0 0.0
  %1554 = vmatprep.subr.mxu0 0.0
  %1555 = vmatpush1.msra.mxu0 0.0
  %1556 = vmatprep.subr.mxu0 0.0
  %1557 = vmatpush1.msra.mxu0 0.0
  %1558 = vmatprep.mubr.f32.mxu0 0.0
  %1559 = vmatmul.mubr.f32.gmra.mrb[0].mxu0 %v1313
  %v1560 = vpop.f32.mrb[0].mxu0
  %v1561 = vadd.f32 0.0, %v1560
  %v1562 = vpop.f32.mrb[0].mxu0
  %1563 = vmatprep.mubr.f32.mxu0 0.0
  %1564 = vmatmul.mubr.f32.gmra.mrb[0].mxu0 %v1316
  %v1565 = vpop.f32.mrb[0].mxu0
  %v1566 = vadd.f32 0.0, %v1565
  %v1567 = vpop.f32.mrb[0].mxu0
  %1568 = vmatprep.mubr.f32.mxu0 0.0
  %1569 = vmatmul.mubr.f32.gmra.mrb[0].mxu0 %v1319
  %v1570 = vpop.f32.mrb[0].mxu0
  %v1571 = vadd.f32 0.0, %v1570
  %v1572 = vpop.f32.mrb[0].mxu0
  %1573 = vmatprep.mubr.f32.mxu0 0.0
  %1574 = vmatmul.mubr.f32.gmra.mrb[0].mxu0 %v1322
  %v1575 = vpop.f32.mrb[0].mxu0
  %v1576 = vadd.f32 0.0, %v1575
  %v1577 = vpop.f32.mrb[0].mxu0
  %1578 = vdwg.mxu0
  %1579 = vmatprep.subr.mxu0 0.0
  %1580 = vmatpush1.msra.mxu0 %v1298
  %1581 = vmatprep.subr.mxu0 0.0
  %1582 = vmatpush1.msra.mxu0 %v1299
  %1583 = vmatprep.subr.mxu0 0.0
  %1584 = vmatpush1.msra.mxu0 %v1300
  %1585 = vmatprep.subr.mxu0 0.0
  %1586 = vmatpush1.msra.mxu0 %v1301
  %1587 = vmatprep.subr.mxu0 0.0
  %1588 = vmatpush1.msra.mxu0 0.0
  %1589 = vmatprep.subr.mxu0 0.0
  %1590 = vmatpush1.msra.mxu0 0.0
  %1591 = vmatprep.subr.mxu0 0.0
  %1592 = vmatpush1.msra.mxu0 0.0
  %1593 = vmatprep.subr.mxu0 0.0
  %1594 = vmatpush1.msra.mxu0 0.0
  %1595 = vmatprep.subr.mxu0 0.0
  %1596 = vmatpush1.msra.mxu0 0.0
  %1597 = vmatprep.subr.mxu0 0.0
  %1598 = vmatpush1.msra.mxu0 0.0
  %1599 = vmatprep.subr.mxu0 0.0
  %1600 = vmatpush1.msra.mxu0 0.0
  %1601 = vmatprep.subr.mxu0 0.0
  %1602 = vmatpush1.msra.mxu0 0.0
  %1603 = vmatprep.subr.mxu0 0.0
  %1604 = vmatpush1.msra.mxu0 0.0
  %1605 = vmatprep.subr.mxu0 0.0
  %1606 = vmatpush1.msra.mxu0 0.0
  %1607 = vmatprep.subr.mxu0 0.0
  %1608 = vmatpush1.msra.mxu0 0.0
  %1609 = vmatprep.subr.mxu0 0.0
  %1610 = vmatpush1.msra.mxu0 0.0
  %1611 = vmatprep.subr.mxu0 0.0
  %1612 = vmatpush1.msra.mxu0 0.0
  %1613 = vmatprep.subr.mxu0 0.0
  %1614 = vmatpush1.msra.mxu0 0.0
  %1615 = vmatprep.subr.mxu0 0.0
  %1616 = vmatpush1.msra.mxu0 0.0
  %1617 = vmatprep.subr.mxu0 0.0
  %1618 = vmatpush1.msra.mxu0 0.0
  %1619 = vmatprep.subr.mxu0 0.0
  %1620 = vmatpush1.msra.mxu0 0.0
  %1621 = vmatprep.subr.mxu0 0.0
  %1622 = vmatpush1.msra.mxu0 0.0
  %1623 = vmatprep.subr.mxu0 0.0
  %1624 = vmatpush1.msra.mxu0 0.0
  %1625 = vmatprep.subr.mxu0 0.0
  %1626 = vmatpush1.msra.mxu0 0.0
  %1627 = vmatprep.subr.mxu0 0.0
  %1628 = vmatpush1.msra.mxu0 0.0
  %1629 = vmatprep.subr.mxu0 0.0
  %1630 = vmatpush1.msra.mxu0 0.0
  %1631 = vmatprep.subr.mxu0 0.0
  %1632 = vmatpush1.msra.mxu0 0.0
  %1633 = vmatprep.subr.mxu0 0.0
  %1634 = vmatpush1.msra.mxu0 0.0
  %1635 = vmatprep.subr.mxu0 0.0
  %1636 = vmatpush1.msra.mxu0 0.0
  %1637 = vmatprep.subr.mxu0 0.0
  %1638 = vmatpush1.msra.mxu0 0.0
  %1639 = vmatprep.subr.mxu0 0.0
  %1640 = vmatpush1.msra.mxu0 0.0
  %1641 = vmatprep.subr.mxu0 0.0
  %1642 = vmatpush1.msra.mxu0 0.0
  %1643 = vmatprep.mubr.f32.mxu0 0.0
  %1644 = vmatmul.mubr.f32.gmra.mrb[0].mxu0 %v1313
  %v1645 = vpop.f32.mrb[0].mxu0
  %v1646 = vadd.f32 0.0, %v1645
  %v1647 = vpop.f32.mrb[0].mxu0
  %1648 = vmatprep.mubr.f32.mxu0 0.0
  %1649 = vmatmul.mubr.f32.gmra.mrb[0].mxu0 %v1316
  %v1650 = vpop.f32.mrb[0].mxu0
  %v1651 = vadd.f32 0.0, %v1650
  %v1652 = vpop.f32.mrb[0].mxu0
  %1653 = vmatprep.mubr.f32.mxu0 0.0
  %1654 = vmatmul.mubr.f32.gmra.mrb[0].mxu0 %v1319
  %v1655 = vpop.f32.mrb[0].mxu0
  %v1656 = vadd.f32 0.0, %v1655
  %v1657 = vpop.f32.mrb[0].mxu0
  %1658 = vmatprep.mubr.f32.mxu0 0.0
  %1659 = vmatmul.mubr.f32.gmra.mrb[0].mxu0 %v1322
  %v1660 = vpop.f32.mrb[0].mxu0
  %v1661 = vadd.f32 0.0, %v1660
  %v1662 = vpop.f32.mrb[0].mxu0
  %1663 = vdwg.mxu0
  %v1665 = vsel %vm439, %v1306, 0
  %1667 = vmatprep.subr.mxu0 0.0
  %1668 = vmatpush1.msra.mxu0 %v1391
  %1669 = vmatprep.subr.mxu0 0.0
  %1670 = vmatpush1.msra.mxu0 %v1396
  %1671 = vmatprep.subr.mxu0 0.0
  %1672 = vmatpush1.msra.mxu0 %v1401
  %1673 = vmatprep.subr.mxu0 0.0
  %1674 = vmatpush1.msra.mxu0 %v1406
  %1675 = vmatprep.subr.mxu0 0.0
  %1676 = vmatpush1.msra.mxu0 0.0
  %1677 = vmatprep.subr.mxu0 0.0
  %1678 = vmatpush1.msra.mxu0 0.0
  %1679 = vmatprep.subr.mxu0 0.0
  %1680 = vmatpush1.msra.mxu0 0.0
  %1681 = vmatprep.subr.mxu0 0.0
  %1682 = vmatpush1.msra.mxu0 0.0
  %1683 = vmatprep.subr.mxu0 0.0
  %1684 = vmatpush1.msra.mxu0 0.0
  %1685 = vmatprep.subr.mxu0 0.0
  %1686 = vmatpush1.msra.mxu0 0.0
  %1687 = vmatprep.subr.mxu0 0.0
  %1688 = vmatpush1.msra.mxu0 0.0
  %1689 = vmatprep.subr.mxu0 0.0
  %1690 = vmatpush1.msra.mxu0 0.0
  %1691 = vmatprep.subr.mxu0 0.0
  %1692 = vmatpush1.msra.mxu0 0.0
  %1693 = vmatprep.subr.mxu0 0.0
  %1694 = vmatpush1.msra.mxu0 0.0
  %1695 = vmatprep.subr.mxu0 0.0
  %1696 = vmatpush1.msra.mxu0 0.0
  %1697 = vmatprep.subr.mxu0 0.0
  %1698 = vmatpush1.msra.mxu0 0.0
  %1699 = vmatprep.subr.mxu0 0.0
  %1700 = vmatpush1.msra.mxu0 0.0
  %1701 = vmatprep.subr.mxu0 0.0
  %1702 = vmatpush1.msra.mxu0 0.0
  %1703 = vmatprep.subr.mxu0 0.0
  %1704 = vmatpush1.msra.mxu0 0.0
  %1705 = vmatprep.subr.mxu0 0.0
  %1706 = vmatpush1.msra.mxu0 0.0
  %1707 = vmatprep.subr.mxu0 0.0
  %1708 = vmatpush1.msra.mxu0 0.0
  %1709 = vmatprep.subr.mxu0 0.0
  %1710 = vmatpush1.msra.mxu0 0.0
  %1711 = vmatprep.subr.mxu0 0.0
  %1712 = vmatpush1.msra.mxu0 0.0
  %1713 = vmatprep.subr.mxu0 0.0
  %1714 = vmatpush1.msra.mxu0 0.0
  %1715 = vmatprep.subr.mxu0 0.0
  %1716 = vmatpush1.msra.mxu0 0.0
  %1717 = vmatprep.subr.mxu0 0.0
  %1718 = vmatpush1.msra.mxu0 0.0
  %1719 = vmatprep.subr.mxu0 0.0
  %1720 = vmatpush1.msra.mxu0 0.0
  %1721 = vmatprep.subr.mxu0 0.0
  %1722 = vmatpush1.msra.mxu0 0.0
  %1723 = vmatprep.subr.mxu0 0.0
  %1724 = vmatpush1.msra.mxu0 0.0
  %1725 = vmatprep.subr.mxu0 0.0
  %1726 = vmatpush1.msra.mxu0 0.0
  %1727 = vmatprep.subr.mxu0 0.0
  %1728 = vmatpush1.msra.mxu0 0.0
  %1729 = vmatprep.subr.mxu0 0.0
  %1730 = vmatpush1.msra.mxu0 0.0
  %1731 = vmatprep.mubr.f32.mxu0 0.0
  %1732 = vmatmul.mubr.f32.gmra.mrb[0].mxu0 %v1665
  %v1733 = vpop.f32.mrb[0].mxu0
  %v1734 = vadd.f32 0.0, %v1733
  %v1735 = vpop.f32.mrb[0].mxu0
  %1736 = vdwg.mxu0
  %1737 = vmatprep.subr.mxu0 0.0
  %1738 = vmatpush1.msra.mxu0 %v1476
  %1739 = vmatprep.subr.mxu0 0.0
  %1740 = vmatpush1.msra.mxu0 %v1481
  %1741 = vmatprep.subr.mxu0 0.0
  %1742 = vmatpush1.msra.mxu0 %v1486
  %1743 = vmatprep.subr.mxu0 0.0
  %1744 = vmatpush1.msra.mxu0 %v1491
  %1745 = vmatprep.subr.mxu0 0.0
  %1746 = vmatpush1.msra.mxu0 0.0
  %1747 = vmatprep.subr.mxu0 0.0
  %1748 = vmatpush1.msra.mxu0 0.0
  %1749 = vmatprep.subr.mxu0 0.0
  %1750 = vmatpush1.msra.mxu0 0.0
  %1751 = vmatprep.subr.mxu0 0.0
  %1752 = vmatpush1.msra.mxu0 0.0
  %1753 = vmatprep.subr.mxu0 0.0
  %1754 = vmatpush1.msra.mxu0 0.0
  %1755 = vmatprep.subr.mxu0 0.0
  %1756 = vmatpush1.msra.mxu0 0.0
  %1757 = vmatprep.subr.mxu0 0.0
  %1758 = vmatpush1.msra.mxu0 0.0
  %1759 = vmatprep.subr.mxu0 0.0
  %1760 = vmatpush1.msra.mxu0 0.0
  %1761 = vmatprep.subr.mxu0 0.0
  %1762 = vmatpush1.msra.mxu0 0.0
  %1763 = vmatprep.subr.mxu0 0.0
  %1764 = vmatpush1.msra.mxu0 0.0
  %1765 = vmatprep.subr.mxu0 0.0
  %1766 = vmatpush1.msra.mxu0 0.0
  %1767 = vmatprep.subr.mxu0 0.0
  %1768 = vmatpush1.msra.mxu0 0.0
  %1769 = vmatprep.subr.mxu0 0.0
  %1770 = vmatpush1.msra.mxu0 0.0
  %1771 = vmatprep.subr.mxu0 0.0
  %1772 = vmatpush1.msra.mxu0 0.0
  %1773 = vmatprep.subr.mxu0 0.0
  %1774 = vmatpush1.msra.mxu0 0.0
  %1775 = vmatprep.subr.mxu0 0.0
  %1776 = vmatpush1.msra.mxu0 0.0
  %1777 = vmatprep.subr.mxu0 0.0
  %1778 = vmatpush1.msra.mxu0 0.0
  %1779 = vmatprep.subr.mxu0 0.0
  %1780 = vmatpush1.msra.mxu0 0.0
  %1781 = vmatprep.subr.mxu0 0.0
  %1782 = vmatpush1.msra.mxu0 0.0
  %1783 = vmatprep.subr.mxu0 0.0
  %1784 = vmatpush1.msra.mxu0 0.0
  %1785 = vmatprep.subr.mxu0 0.0
  %1786 = vmatpush1.msra.mxu0 0.0
  %1787 = vmatprep.subr.mxu0 0.0
  %1788 = vmatpush1.msra.mxu0 0.0
  %1789 = vmatprep.subr.mxu0 0.0
  %1790 = vmatpush1.msra.mxu0 0.0
  %1791 = vmatprep.subr.mxu0 0.0
  %1792 = vmatpush1.msra.mxu0 0.0
  %1793 = vmatprep.subr.mxu0 0.0
  %1794 = vmatpush1.msra.mxu0 0.0
  %1795 = vmatprep.subr.mxu0 0.0
  %1796 = vmatpush1.msra.mxu0 0.0
  %1797 = vmatprep.subr.mxu0 0.0
  %1798 = vmatpush1.msra.mxu0 0.0
  %1799 = vmatprep.subr.mxu0 0.0
  %1800 = vmatpush1.msra.mxu0 0.0
  %1801 = vmatprep.mubr.f32.mxu0 0.0
  %1802 = vmatmul.mubr.f32.gmra.mrb[0].mxu0 %v1665
  %v1803 = vpop.f32.mrb[0].mxu0
  %v1804 = vadd.f32 0.0, %v1803
  %v1805 = vpop.f32.mrb[0].mxu0
  %1806 = vdwg.mxu0
  %1807 = vmatprep.subr.mxu0 0.0
  %1808 = vmatpush1.msra.mxu0 %v1561
  %1809 = vmatprep.subr.mxu0 0.0
  %1810 = vmatpush1.msra.mxu0 %v1566
  %1811 = vmatprep.subr.mxu0 0.0
  %1812 = vmatpush1.msra.mxu0 %v1571
  %1813 = vmatprep.subr.mxu0 0.0
  %1814 = vmatpush1.msra.mxu0 %v1576
  %1815 = vmatprep.subr.mxu0 0.0
  %1816 = vmatpush1.msra.mxu0 0.0
  %1817 = vmatprep.subr.mxu0 0.0
  %1818 = vmatpush1.msra.mxu0 0.0
  %1819 = vmatprep.subr.mxu0 0.0
  %1820 = vmatpush1.msra.mxu0 0.0
  %1821 = vmatprep.subr.mxu0 0.0
  %1822 = vmatpush1.msra.mxu0 0.0
  %1823 = vmatprep.subr.mxu0 0.0
  %1824 = vmatpush1.msra.mxu0 0.0
  %1825 = vmatprep.subr.mxu0 0.0
  %1826 = vmatpush1.msra.mxu0 0.0
  %1827 = vmatprep.subr.mxu0 0.0
  %1828 = vmatpush1.msra.mxu0 0.0
  %1829 = vmatprep.subr.mxu0 0.0
  %1830 = vmatpush1.msra.mxu0 0.0
  %1831 = vmatprep.subr.mxu0 0.0
  %1832 = vmatpush1.msra.mxu0 0.0
  %1833 = vmatprep.subr.mxu0 0.0
  %1834 = vmatpush1.msra.mxu0 0.0
  %1835 = vmatprep.subr.mxu0 0.0
  %1836 = vmatpush1.msra.mxu0 0.0
  %1837 = vmatprep.subr.mxu0 0.0
  %1838 = vmatpush1.msra.mxu0 0.0
  %1839 = vmatprep.subr.mxu0 0.0
  %1840 = vmatpush1.msra.mxu0 0.0
  %1841 = vmatprep.subr.mxu0 0.0
  %1842 = vmatpush1.msra.mxu0 0.0
  %1843 = vmatprep.subr.mxu0 0.0
  %1844 = vmatpush1.msra.mxu0 0.0
  %1845 = vmatprep.subr.mxu0 0.0
  %1846 = vmatpush1.msra.mxu0 0.0
  %1847 = vmatprep.subr.mxu0 0.0
  %1848 = vmatpush1.msra.mxu0 0.0
  %1849 = vmatprep.subr.mxu0 0.0
  %1850 = vmatpush1.msra.mxu0 0.0
  %1851 = vmatprep.subr.mxu0 0.0
  %1852 = vmatpush1.msra.mxu0 0.0
  %1853 = vmatprep.subr.mxu0 0.0
  %1854 = vmatpush1.msra.mxu0 0.0
  %1855 = vmatprep.subr.mxu0 0.0
  %1856 = vmatpush1.msra.mxu0 0.0
  %1857 = vmatprep.subr.mxu0 0.0
  %1858 = vmatpush1.msra.mxu0 0.0
  %1859 = vmatprep.subr.mxu0 0.0
  %1860 = vmatpush1.msra.mxu0 0.0
  %1861 = vmatprep.subr.mxu0 0.0
  %1862 = vmatpush1.msra.mxu0 0.0
  %1863 = vmatprep.subr.mxu0 0.0
  %1864 = vmatpush1.msra.mxu0 0.0
  %1865 = vmatprep.subr.mxu0 0.0
  %1866 = vmatpush1.msra.mxu0 0.0
  %1867 = vmatprep.subr.mxu0 0.0
  %1868 = vmatpush1.msra.mxu0 0.0
  %1869 = vmatprep.subr.mxu0 0.0
  %1870 = vmatpush1.msra.mxu0 0.0
  %1871 = vmatprep.mubr.f32.mxu0 0.0
  %1872 = vmatmul.mubr.f32.gmra.mrb[0].mxu0 %v1665
  %v1873 = vpop.f32.mrb[0].mxu0
  %v1874 = vadd.f32 0.0, %v1873
  %v1875 = vpop.f32.mrb[0].mxu0
  %1876 = vdwg.mxu0
  %1877 = vmatprep.subr.mxu0 0.0
  %1878 = vmatpush1.msra.mxu0 %v1646
  %1879 = vmatprep.subr.mxu0 0.0
  %1880 = vmatpush1.msra.mxu0 %v1651
  %1881 = vmatprep.subr.mxu0 0.0
  %1882 = vmatpush1.msra.mxu0 %v1656
  %1883 = vmatprep.subr.mxu0 0.0
  %1884 = vmatpush1.msra.mxu0 %v1661
  %1885 = vmatprep.subr.mxu0 0.0
  %1886 = vmatpush1.msra.mxu0 0.0
  %1887 = vmatprep.subr.mxu0 0.0
  %1888 = vmatpush1.msra.mxu0 0.0
  %1889 = vmatprep.subr.mxu0 0.0
  %1890 = vmatpush1.msra.mxu0 0.0
  %1891 = vmatprep.subr.mxu0 0.0
  %1892 = vmatpush1.msra.mxu0 0.0
  %1893 = vmatprep.subr.mxu0 0.0
  %1894 = vmatpush1.msra.mxu0 0.0
  %1895 = vmatprep.subr.mxu0 0.0
  %1896 = vmatpush1.msra.mxu0 0.0
  %1897 = vmatprep.subr.mxu0 0.0
  %1898 = vmatpush1.msra.mxu0 0.0
  %1899 = vmatprep.subr.mxu0 0.0
  %1900 = vmatpush1.msra.mxu0 0.0
  %1901 = vmatprep.subr.mxu0 0.0
  %1902 = vmatpush1.msra.mxu0 0.0
  %1903 = vmatprep.subr.mxu0 0.0
  %1904 = vmatpush1.msra.mxu0 0.0
  %1905 = vmatprep.subr.mxu0 0.0
  %1906 = vmatpush1.msra.mxu0 0.0
  %1907 = vmatprep.subr.mxu0 0.0
  %1908 = vmatpush1.msra.mxu0 0.0
  %1909 = vmatprep.subr.mxu0 0.0
  %1910 = vmatpush1.msra.mxu0 0.0
  %1911 = vmatprep.subr.mxu0 0.0
  %1912 = vmatpush1.msra.mxu0 0.0
  %1913 = vmatprep.subr.mxu0 0.0
  %1914 = vmatpush1.msra.mxu0 0.0
  %1915 = vmatprep.subr.mxu0 0.0
  %1916 = vmatpush1.msra.mxu0 0.0
  %1917 = vmatprep.subr.mxu0 0.0
  %1918 = vmatpush1.msra.mxu0 0.0
  %1919 = vmatprep.subr.mxu0 0.0
  %1920 = vmatpush1.msra.mxu0 0.0
  %1921 = vmatprep.subr.mxu0 0.0
  %1922 = vmatpush1.msra.mxu0 0.0
  %1923 = vmatprep.subr.mxu0 0.0
  %1924 = vmatpush1.msra.mxu0 0.0
  %1925 = vmatprep.subr.mxu0 0.0
  %1926 = vmatpush1.msra.mxu0 0.0
  %1927 = vmatprep.subr.mxu0 0.0
  %1928 = vmatpush1.msra.mxu0 0.0
  %1929 = vmatprep.subr.mxu0 0.0
  %1930 = vmatpush1.msra.mxu0 0.0
  %1931 = vmatprep.subr.mxu0 0.0
  %1932 = vmatpush1.msra.mxu0 0.0
  %1933 = vmatprep.subr.mxu0 0.0
  %1934 = vmatpush1.msra.mxu0 0.0
  %1935 = vmatprep.subr.mxu0 0.0
  %1936 = vmatpush1.msra.mxu0 0.0
  %1937 = vmatprep.subr.mxu0 0.0
  %1938 = vmatpush1.msra.mxu0 0.0
  %1939 = vmatprep.subr.mxu0 0.0
  %1940 = vmatpush1.msra.mxu0 0.0
  %1941 = vmatprep.mubr.f32.mxu0 0.0
  %1942 = vmatmul.mubr.f32.gmra.mrb[0].mxu0 %v1665
  %v1943 = vpop.f32.mrb[0].mxu0
  %v1944 = vadd.f32 0.0, %v1943
  %v1945 = vpop.f32.mrb[0].mxu0
  %1946 = vdwg.mxu0
  %v1948 = vsel %vm439, %v1307, 0
  %1950 = vmatprep.subr.mxu0 0.0
  %1951 = vmatpush1.msra.mxu0 %v1391
  %1952 = vmatprep.subr.mxu0 0.0
  %1953 = vmatpush1.msra.mxu0 %v1396
  %1954 = vmatprep.subr.mxu0 0.0
  %1955 = vmatpush1.msra.mxu0 %v1401
  %1956 = vmatprep.subr.mxu0 0.0
  %1957 = vmatpush1.msra.mxu0 %v1406
  %1958 = vmatprep.subr.mxu0 0.0
  %1959 = vmatpush1.msra.mxu0 0.0
  %1960 = vmatprep.subr.mxu0 0.0
  %1961 = vmatpush1.msra.mxu0 0.0
  %1962 = vmatprep.subr.mxu0 0.0
  %1963 = vmatpush1.msra.mxu0 0.0
  %1964 = vmatprep.subr.mxu0 0.0
  %1965 = vmatpush1.msra.mxu0 0.0
  %1966 = vmatprep.subr.mxu0 0.0
  %1967 = vmatpush1.msra.mxu0 0.0
  %1968 = vmatprep.subr.mxu0 0.0
  %1969 = vmatpush1.msra.mxu0 0.0
  %1970 = vmatprep.subr.mxu0 0.0
  %1971 = vmatpush1.msra.mxu0 0.0
  %1972 = vmatprep.subr.mxu0 0.0
  %1973 = vmatpush1.msra.mxu0 0.0
  %1974 = vmatprep.subr.mxu0 0.0
  %1975 = vmatpush1.msra.mxu0 0.0
  %1976 = vmatprep.subr.mxu0 0.0
  %1977 = vmatpush1.msra.mxu0 0.0
  %1978 = vmatprep.subr.mxu0 0.0
  %1979 = vmatpush1.msra.mxu0 0.0
  %1980 = vmatprep.subr.mxu0 0.0
  %1981 = vmatpush1.msra.mxu0 0.0
  %1982 = vmatprep.subr.mxu0 0.0
  %1983 = vmatpush1.msra.mxu0 0.0
  %1984 = vmatprep.subr.mxu0 0.0
  %1985 = vmatpush1.msra.mxu0 0.0
  %1986 = vmatprep.subr.mxu0 0.0
  %1987 = vmatpush1.msra.mxu0 0.0
  %1988 = vmatprep.subr.mxu0 0.0
  %1989 = vmatpush1.msra.mxu0 0.0
  %1990 = vmatprep.subr.mxu0 0.0
  %1991 = vmatpush1.msra.mxu0 0.0
  %1992 = vmatprep.subr.mxu0 0.0
  %1993 = vmatpush1.msra.mxu0 0.0
  %1994 = vmatprep.subr.mxu0 0.0
  %1995 = vmatpush1.msra.mxu0 0.0
  %1996 = vmatprep.subr.mxu0 0.0
  %1997 = vmatpush1.msra.mxu0 0.0
  %1998 = vmatprep.subr.mxu0 0.0
  %1999 = vmatpush1.msra.mxu0 0.0
  %2000 = vmatprep.subr.mxu0 0.0
  %2001 = vmatpush1.msra.mxu0 0.0
  %2002 = vmatprep.subr.mxu0 0.0
  %2003 = vmatpush1.msra.mxu0 0.0
  %2004 = vmatprep.subr.mxu0 0.0
  %2005 = vmatpush1.msra.mxu0 0.0
  %2006 = vmatprep.subr.mxu0 0.0
  %2007 = vmatpush1.msra.mxu0 0.0
  %2008 = vmatprep.subr.mxu0 0.0
  %2009 = vmatpush1.msra.mxu0 0.0
  %2010 = vmatprep.subr.mxu0 0.0
  %2011 = vmatpush1.msra.mxu0 0.0
  %2012 = vmatprep.subr.mxu0 0.0
  %2013 = vmatpush1.msra.mxu0 0.0
  %2014 = vmatprep.mubr.f32.mxu0 0.0
  %2015 = vmatmul.mubr.f32.gmra.mrb[0].mxu0 %v1948
  %v2016 = vpop.f32.mrb[0].mxu0
  %v2017 = vadd.f32 0.0, %v2016
  %v2018 = vpop.f32.mrb[0].mxu0
  %2019 = vdwg.mxu0
  %2020 = vmatprep.subr.mxu0 0.0
  %2021 = vmatpush1.msra.mxu0 %v1476
  %2022 = vmatprep.subr.mxu0 0.0
  %2023 = vmatpush1.msra.mxu0 %v1481
  %2024 = vmatprep.subr.mxu0 0.0
  %2025 = vmatpush1.msra.mxu0 %v1486
  %2026 = vmatprep.subr.mxu0 0.0
  %2027 = vmatpush1.msra.mxu0 %v1491
  %2028 = vmatprep.subr.mxu0 0.0
  %2029 = vmatpush1.msra.mxu0 0.0
  %2030 = vmatprep.subr.mxu0 0.0
  %2031 = vmatpush1.msra.mxu0 0.0
  %2032 = vmatprep.subr.mxu0 0.0
  %2033 = vmatpush1.msra.mxu0 0.0
  %2034 = vmatprep.subr.mxu0 0.0
  %2035 = vmatpush1.msra.mxu0 0.0
  %2036 = vmatprep.subr.mxu0 0.0
  %2037 = vmatpush1.msra.mxu0 0.0
  %2038 = vmatprep.subr.mxu0 0.0
  %2039 = vmatpush1.msra.mxu0 0.0
  %2040 = vmatprep.subr.mxu0 0.0
  %2041 = vmatpush1.msra.mxu0 0.0
  %2042 = vmatprep.subr.mxu0 0.0
  %2043 = vmatpush1.msra.mxu0 0.0
  %2044 = vmatprep.subr.mxu0 0.0
  %2045 = vmatpush1.msra.mxu0 0.0
  %2046 = vmatprep.subr.mxu0 0.0
  %2047 = vmatpush1.msra.mxu0 0.0
  %2048 = vmatprep.subr.mxu0 0.0
  %2049 = vmatpush1.msra.mxu0 0.0
  %2050 = vmatprep.subr.mxu0 0.0
  %2051 = vmatpush1.msra.mxu0 0.0
  %2052 = vmatprep.subr.mxu0 0.0
  %2053 = vmatpush1.msra.mxu0 0.0
  %2054 = vmatprep.subr.mxu0 0.0
  %2055 = vmatpush1.msra.mxu0 0.0
  %2056 = vmatprep.subr.mxu0 0.0
  %2057 = vmatpush1.msra.mxu0 0.0
  %2058 = vmatprep.subr.mxu0 0.0
  %2059 = vmatpush1.msra.mxu0 0.0
  %2060 = vmatprep.subr.mxu0 0.0
  %2061 = vmatpush1.msra.mxu0 0.0
  %2062 = vmatprep.subr.mxu0 0.0
  %2063 = vmatpush1.msra.mxu0 0.0
  %2064 = vmatprep.subr.mxu0 0.0
  %2065 = vmatpush1.msra.mxu0 0.0
  %2066 = vmatprep.subr.mxu0 0.0
  %2067 = vmatpush1.msra.mxu0 0.0
  %2068 = vmatprep.subr.mxu0 0.0
  %2069 = vmatpush1.msra.mxu0 0.0
  %2070 = vmatprep.subr.mxu0 0.0
  %2071 = vmatpush1.msra.mxu0 0.0
  %2072 = vmatprep.subr.mxu0 0.0
  %2073 = vmatpush1.msra.mxu0 0.0
  %2074 = vmatprep.subr.mxu0 0.0
  %2075 = vmatpush1.msra.mxu0 0.0
  %2076 = vmatprep.subr.mxu0 0.0
  %2077 = vmatpush1.msra.mxu0 0.0
  %2078 = vmatprep.subr.mxu0 0.0
  %2079 = vmatpush1.msra.mxu0 0.0
  %2080 = vmatprep.subr.mxu0 0.0
  %2081 = vmatpush1.msra.mxu0 0.0
  %2082 = vmatprep.subr.mxu0 0.0
  %2083 = vmatpush1.msra.mxu0 0.0
  %2084 = vmatprep.mubr.f32.mxu0 0.0
  %2085 = vmatmul.mubr.f32.gmra.mrb[0].mxu0 %v1948
  %v2086 = vpop.f32.mrb[0].mxu0
  %v2087 = vadd.f32 0.0, %v2086
  %v2088 = vpop.f32.mrb[0].mxu0
  %2089 = vdwg.mxu0
  %2090 = vmatprep.subr.mxu0 0.0
  %2091 = vmatpush1.msra.mxu0 %v1561
  %2092 = vmatprep.subr.mxu0 0.0
  %2093 = vmatpush1.msra.mxu0 %v1566
  %2094 = vmatprep.subr.mxu0 0.0
  %2095 = vmatpush1.msra.mxu0 %v1571
  %2096 = vmatprep.subr.mxu0 0.0
  %2097 = vmatpush1.msra.mxu0 %v1576
  %2098 = vmatprep.subr.mxu0 0.0
  %2099 = vmatpush1.msra.mxu0 0.0
  %2100 = vmatprep.subr.mxu0 0.0
  %2101 = vmatpush1.msra.mxu0 0.0
  %2102 = vmatprep.subr.mxu0 0.0
  %2103 = vmatpush1.msra.mxu0 0.0
  %2104 = vmatprep.subr.mxu0 0.0
  %2105 = vmatpush1.msra.mxu0 0.0
  %2106 = vmatprep.subr.mxu0 0.0
  %2107 = vmatpush1.msra.mxu0 0.0
  %2108 = vmatprep.subr.mxu0 0.0
  %2109 = vmatpush1.msra.mxu0 0.0
  %2110 = vmatprep.subr.mxu0 0.0
  %2111 = vmatpush1.msra.mxu0 0.0
  %2112 = vmatprep.subr.mxu0 0.0
  %2113 = vmatpush1.msra.mxu0 0.0
  %2114 = vmatprep.subr.mxu0 0.0
  %2115 = vmatpush1.msra.mxu0 0.0
  %2116 = vmatprep.subr.mxu0 0.0
  %2117 = vmatpush1.msra.mxu0 0.0
  %2118 = vmatprep.subr.mxu0 0.0
  %2119 = vmatpush1.msra.mxu0 0.0
  %2120 = vmatprep.subr.mxu0 0.0
  %2121 = vmatpush1.msra.mxu0 0.0
  %2122 = vmatprep.subr.mxu0 0.0
  %2123 = vmatpush1.msra.mxu0 0.0
  %2124 = vmatprep.subr.mxu0 0.0
  %2125 = vmatpush1.msra.mxu0 0.0
  %2126 = vmatprep.subr.mxu0 0.0
  %2127 = vmatpush1.msra.mxu0 0.0
  %2128 = vmatprep.subr.mxu0 0.0
  %2129 = vmatpush1.msra.mxu0 0.0
  %2130 = vmatprep.subr.mxu0 0.0
  %2131 = vmatpush1.msra.mxu0 0.0
  %2132 = vmatprep.subr.mxu0 0.0
  %2133 = vmatpush1.msra.mxu0 0.0
  %2134 = vmatprep.subr.mxu0 0.0
  %2135 = vmatpush1.msra.mxu0 0.0
  %2136 = vmatprep.subr.mxu0 0.0
  %2137 = vmatpush1.msra.mxu0 0.0
  %2138 = vmatprep.subr.mxu0 0.0
  %2139 = vmatpush1.msra.mxu0 0.0
  %2140 = vmatprep.subr.mxu0 0.0
  %2141 = vmatpush1.msra.mxu0 0.0
  %2142 = vmatprep.subr.mxu0 0.0
  %2143 = vmatpush1.msra.mxu0 0.0
  %2144 = vmatprep.subr.mxu0 0.0
  %2145 = vmatpush1.msra.mxu0 0.0
  %2146 = vmatprep.subr.mxu0 0.0
  %2147 = vmatpush1.msra.mxu0 0.0
  %2148 = vmatprep.subr.mxu0 0.0
  %2149 = vmatpush1.msra.mxu0 0.0
  %2150 = vmatprep.subr.mxu0 0.0
  %2151 = vmatpush1.msra.mxu0 0.0
  %2152 = vmatprep.subr.mxu0 0.0
  %2153 = vmatpush1.msra.mxu0 0.0
  %2154 = vmatprep.mubr.f32.mxu0 0.0
  %2155 = vmatmul.mubr.f32.gmra.mrb[0].mxu0 %v1948
  %v2156 = vpop.f32.mrb[0].mxu0
  %v2157 = vadd.f32 0.0, %v2156
  %v2158 = vpop.f32.mrb[0].mxu0
  %2159 = vdwg.mxu0
  %2160 = vmatprep.subr.mxu0 0.0
  %2161 = vmatpush1.msra.mxu0 %v1646
  %2162 = vmatprep.subr.mxu0 0.0
  %2163 = vmatpush1.msra.mxu0 %v1651
  %2164 = vmatprep.subr.mxu0 0.0
  %2165 = vmatpush1.msra.mxu0 %v1656
  %2166 = vmatprep.subr.mxu0 0.0
  %2167 = vmatpush1.msra.mxu0 %v1661
  %2168 = vmatprep.subr.mxu0 0.0
  %2169 = vmatpush1.msra.mxu0 0.0
  %2170 = vmatprep.subr.mxu0 0.0
  %2171 = vmatpush1.msra.mxu0 0.0
  %2172 = vmatprep.subr.mxu0 0.0
  %2173 = vmatpush1.msra.mxu0 0.0
  %2174 = vmatprep.subr.mxu0 0.0
  %2175 = vmatpush1.msra.mxu0 0.0
  %2176 = vmatprep.subr.mxu0 0.0
  %2177 = vmatpush1.msra.mxu0 0.0
  %2178 = vmatprep.subr.mxu0 0.0
  %2179 = vmatpush1.msra.mxu0 0.0
  %2180 = vmatprep.subr.mxu0 0.0
  %2181 = vmatpush1.msra.mxu0 0.0
  %2182 = vmatprep.subr.mxu0 0.0
  %2183 = vmatpush1.msra.mxu0 0.0
  %2184 = vmatprep.subr.mxu0 0.0
  %2185 = vmatpush1.msra.mxu0 0.0
  %2186 = vmatprep.subr.mxu0 0.0
  %2187 = vmatpush1.msra.mxu0 0.0
  %2188 = vmatprep.subr.mxu0 0.0
  %2189 = vmatpush1.msra.mxu0 0.0
  %2190 = vmatprep.subr.mxu0 0.0
  %2191 = vmatpush1.msra.mxu0 0.0
  %2192 = vmatprep.subr.mxu0 0.0
  %2193 = vmatpush1.msra.mxu0 0.0
  %2194 = vmatprep.subr.mxu0 0.0
  %2195 = vmatpush1.msra.mxu0 0.0
  %2196 = vmatprep.subr.mxu0 0.0
  %2197 = vmatpush1.msra.mxu0 0.0
  %2198 = vmatprep.subr.mxu0 0.0
  %2199 = vmatpush1.msra.mxu0 0.0
  %2200 = vmatprep.subr.mxu0 0.0
  %2201 = vmatpush1.msra.mxu0 0.0
  %2202 = vmatprep.subr.mxu0 0.0
  %2203 = vmatpush1.msra.mxu0 0.0
  %2204 = vmatprep.subr.mxu0 0.0
  %2205 = vmatpush1.msra.mxu0 0.0
  %2206 = vmatprep.subr.mxu0 0.0
  %2207 = vmatpush1.msra.mxu0 0.0
  %2208 = vmatprep.subr.mxu0 0.0
  %2209 = vmatpush1.msra.mxu0 0.0
  %2210 = vmatprep.subr.mxu0 0.0
  %2211 = vmatpush1.msra.mxu0 0.0
  %2212 = vmatprep.subr.mxu0 0.0
  %2213 = vmatpush1.msra.mxu0 0.0
  %2214 = vmatprep.subr.mxu0 0.0
  %2215 = vmatpush1.msra.mxu0 0.0
  %2216 = vmatprep.subr.mxu0 0.0
  %2217 = vmatpush1.msra.mxu0 0.0
  %2218 = vmatprep.subr.mxu0 0.0
  %2219 = vmatpush1.msra.mxu0 0.0
  %2220 = vmatprep.subr.mxu0 0.0
  %2221 = vmatpush1.msra.mxu0 0.0
  %2222 = vmatprep.subr.mxu0 0.0
  %2223 = vmatpush1.msra.mxu0 0.0
  %2224 = vmatprep.mubr.f32.mxu0 0.0
  %2225 = vmatmul.mubr.f32.gmra.mrb[0].mxu0 %v1948
  %v2226 = vpop.f32.mrb[0].mxu0
  %v2227 = vadd.f32 0.0, %v2226
  %v2228 = vpop.f32.mrb[0].mxu0
  %2229 = vdwg.mxu0
  %v2230 = vadd.f32 %v2017, %v1804
  %vm2231 = vcmp.gt.f32.partialorder %v2230, 0.0
  %v2232 = vmul.f32 %v2230, 0.2
  %v2233 = vsel %vm2231, %v2230, %v2232
  %v2234 = vadd.f32 %v2017, %v1874
  %vm2235 = vcmp.gt.f32.partialorder %v2234, 0.0
  %v2236 = vmul.f32 %v2234, 0.2
  %v2237 = vsel %vm2235, %v2234, %v2236
  %v2238 = vadd.f32 %v2017, %v1944
  %vm2239 = vcmp.gt.f32.partialorder %v2238, 0.0
  %v2240 = vmul.f32 %v2238, 0.2
  %v2241 = vsel %vm2239, %v2238, %v2240
  %v2242 = vmax.f32 %v2233, %v2237
  %v2243 = vmax.f32 %v2242, %v2241
  %v2244 = vsub.f32 %v2233, %v2243
  %v2245 = vmul.f32 %v2244, 1.442695
  %v2246 = vpow.pop %v2245
  %v2247 = vsub.f32 %v2237, %v2243
  %v2248 = vmul.f32 %v2247, 1.442695
  %v2249 = vpow.pop %v2248
  %v2250 = vsub.f32 %v2241, %v2243
  %v2251 = vmul.f32 %v2250, 1.442695
  %v2252 = vpow.pop %v2251
  %v2253 = vadd.f32 %v2246, %v2249
  %v2254 = vadd.f32 %v2253, %v2252
  %v2255 = vrcp.pop %v2254
  %v2256 = vmul.f32 %v2246, %v2255
  %v2257 = vlaneseq
  %v2258 = vshrl.u32 %v2257, 7
  %v2259 = vsub.s32 0, %v2258
  %v2260 = vrot.slane %v2256, %v2259
  %v2261 = vmul.f32 %v2260, %v1476
  %v2262 = vmul.f32 %v2260, %v1481
  %v2263 = vmul.f32 %v2260, %v1486
  %v2264 = vmul.f32 %v2260, %v1491
  %v2265 = vmul.f32 %v2249, %v2255
  %v2266 = vlaneseq
  %v2267 = vshrl.u32 %v2266, 7
  %v2268 = vsub.s32 0, %v2267
  %v2269 = vrot.slane %v2265, %v2268
  %v2270 = vmul.f32 %v2269, %v1561
  %v2271 = vmul.f32 %v2269, %v1566
  %v2272 = vmul.f32 %v2269, %v1571
  %v2273 = vmul.f32 %v2269, %v1576
  %v2274 = vadd.f32 %v2261, %v2270
  %v2275 = vadd.f32 %v2262, %v2271
  %v2276 = vadd.f32 %v2263, %v2272
  %v2277 = vadd.f32 %v2264, %v2273
  %v2278 = vmul.f32 %v2252, %v2255
  %v2279 = vlaneseq
  %v2280 = vshrl.u32 %v2279, 7
  %v2281 = vsub.s32 0, %v2280
  %v2282 = vrot.slane %v2278, %v2281
  %v2283 = vmul.f32 %v2282, %v1646
  %v2284 = vmul.f32 %v2282, %v1651
  %v2285 = vmul.f32 %v2282, %v1656
  %v2286 = vmul.f32 %v2282, %v1661
  %v2287 = vadd.f32 %v2274, %v2283
  %v2288 = vadd.f32 %v2275, %v2284
  %v2289 = vadd.f32 %v2276, %v2285
  %v2290 = vadd.f32 %v2277, %v2286
  %2292 = vset.pattern.permute.xlu0 0
  %2293 = vperm.xlu0 %2292, %v1308
  %v2294 = vpop.permute.xlu0 %2293
  %2297 = vset.pattern.permute.xlu0 0
  %2298 = vperm.xlu0 %2297, %v1309
  %v2299 = vpop.permute.xlu0 %2298
  %2302 = vset.pattern.permute.xlu0 0
  %2303 = vperm.xlu0 %2302, %v1310
  %v2304 = vpop.permute.xlu0 %2303
  %2307 = vset.pattern.permute.xlu0 0
  %2308 = vperm.xlu0 %2307, %v1311
  %v2309 = vpop.permute.xlu0 %2308
  %v2311 = vadd.f32 %v2287, %v2294
  %v2312 = vadd.f32 %v2288, %v2299
  %v2313 = vadd.f32 %v2289, %v2304
  %v2314 = vadd.f32 %v2290, %v2309
  %v2315 = vadd.f32 %v2087, %v1734
  %vm2316 = vcmp.gt.f32.partialorder %v2315, 0.0
  %v2317 = vmul.f32 %v2315, 0.2
  %v2318 = vsel %vm2316, %v2315, %v2317
  %v2319 = vadd.f32 %v2087, %v1874
  %vm2320 = vcmp.gt.f32.partialorder %v2319, 0.0
  %v2321 = vmul.f32 %v2319, 0.2
  %v2322 = vsel %vm2320, %v2319, %v2321
  %v2323 = vadd.f32 %v2087, %v1944
  %vm2324 = vcmp.gt.f32.partialorder %v2323, 0.0
  %v2325 = vmul.f32 %v2323, 0.2
  %v2326 = vsel %vm2324, %v2323, %v2325
  %v2327 = vmax.f32 %v2318, %v2322
  %v2328 = vmax.f32 %v2327, %v2326
  %v2329 = vsub.f32 %v2318, %v2328
  %v2330 = vmul.f32 %v2329, 1.442695
  %v2331 = vpow.pop %v2330
  %v2332 = vsub.f32 %v2322, %v2328
  %v2333 = vmul.f32 %v2332, 1.442695
  %v2334 = vpow.pop %v2333
  %v2335 = vsub.f32 %v2326, %v2328
  %v2336 = vmul.f32 %v2335, 1.442695
  %v2337 = vpow.pop %v2336
  %v2338 = vadd.f32 %v2331, %v2334
  %v2339 = vadd.f32 %v2338, %v2337
  %v2340 = vrcp.pop %v2339
  %v2341 = vmul.f32 %v2331, %v2340
  %v2342 = vlaneseq
  %v2343 = vshrl.u32 %v2342, 7
  %v2344 = vsub.s32 0, %v2343
  %v2345 = vrot.slane %v2341, %v2344
  %v2346 = vmul.f32 %v2345, %v1391
  %v2347 = vmul.f32 %v2345, %v1396
  %v2348 = vmul.f32 %v2345, %v1401
  %v2349 = vmul.f32 %v2345, %v1406
  %v2350 = vmul.f32 %v2334, %v2340
  %v2351 = vlaneseq
  %v2352 = vshrl.u32 %v2351, 7
  %v2353 = vsub.s32 0, %v2352
  %v2354 = vrot.slane %v2350, %v2353
  %v2355 = vmul.f32 %v2354, %v1561
  %v2356 = vmul.f32 %v2354, %v1566
  %v2357 = vmul.f32 %v2354, %v1571
  %v2358 = vmul.f32 %v2354, %v1576
  %v2359 = vadd.f32 %v2346, %v2355
  %v2360 = vadd.f32 %v2347, %v2356
  %v2361 = vadd.f32 %v2348, %v2357
  %v2362 = vadd.f32 %v2349, %v2358
  %v2363 = vmul.f32 %v2337, %v2340
  %v2364 = vlaneseq
  %v2365 = vshrl.u32 %v2364, 7
  %v2366 = vsub.s32 0, %v2365
  %v2367 = vrot.slane %v2363, %v2366
  %v2368 = vmul.f32 %v2367, %v1646
  %v2369 = vmul.f32 %v2367, %v1651
  %v2370 = vmul.f32 %v2367, %v1656
  %v2371 = vmul.f32 %v2367, %v1661
  %v2372 = vadd.f32 %v2359, %v2368
  %v2373 = vadd.f32 %v2360, %v2369
  %v2374 = vadd.f32 %v2361, %v2370
  %v2375 = vadd.f32 %v2362, %v2371
  %v2376 = vadd.f32 %v2372, %v2294
  %v2377 = vadd.f32 %v2373, %v2299
  %v2378 = vadd.f32 %v2374, %v2304
  %v2379 = vadd.f32 %v2375, %v2309
  %v2380 = vadd.f32 %v2157, %v1734
  %vm2381 = vcmp.gt.f32.partialorder %v2380, 0.0
  %v2382 = vmul.f32 %v2380, 0.2
  %v2383 = vsel %vm2381, %v2380, %v2382
  %v2384 = vadd.f32 %v2157, %v1804
  %vm2385 = vcmp.gt.f32.partialorder %v2384, 0.0
  %v2386 = vmul.f32 %v2384, 0.2
  %v2387 = vsel %vm2385, %v2384, %v2386
  %v2388 = vadd.f32 %v2157, %v1944
  %vm2389 = vcmp.gt.f32.partialorder %v2388, 0.0
  %v2390 = vmul.f32 %v2388, 0.2
  %v2391 = vsel %vm2389, %v2388, %v2390
  %v2392 = vmax.f32 %v2383, %v2387
  %v2393 = vmax.f32 %v2392, %v2391
  %v2394 = vsub.f32 %v2383, %v2393
  %v2395 = vmul.f32 %v2394, 1.442695
  %v2396 = vpow.pop %v2395
  %v2397 = vsub.f32 %v2387, %v2393
  %v2398 = vmul.f32 %v2397, 1.442695
  %v2399 = vpow.pop %v2398
  %v2400 = vsub.f32 %v2391, %v2393
  %v2401 = vmul.f32 %v2400, 1.442695
  %v2402 = vpow.pop %v2401
  %v2403 = vadd.f32 %v2396, %v2399
  %v2404 = vadd.f32 %v2403, %v2402
  %v2405 = vrcp.pop %v2404
  %v2406 = vmul.f32 %v2396, %v2405
  %v2407 = vlaneseq
  %v2408 = vshrl.u32 %v2407, 7
  %v2409 = vsub.s32 0, %v2408
  %v2410 = vrot.slane %v2406, %v2409
  %v2411 = vmul.f32 %v2410, %v1391
  %v2412 = vmul.f32 %v2410, %v1396
  %v2413 = vmul.f32 %v2410, %v1401
  %v2414 = vmul.f32 %v2410, %v1406
  %v2415 = vmul.f32 %v2399, %v2405
  %v2416 = vlaneseq
  %v2417 = vshrl.u32 %v2416, 7
  %v2418 = vsub.s32 0, %v2417
  %v2419 = vrot.slane %v2415, %v2418
  %v2420 = vmul.f32 %v2419, %v1476
  %v2421 = vmul.f32 %v2419, %v1481
  %v2422 = vmul.f32 %v2419, %v1486
  %v2423 = vmul.f32 %v2419, %v1491
  %v2424 = vadd.f32 %v2411, %v2420
  %v2425 = vadd.f32 %v2412, %v2421
  %v2426 = vadd.f32 %v2413, %v2422
  %v2427 = vadd.f32 %v2414, %v2423
  %v2428 = vmul.f32 %v2402, %v2405
  %v2429 = vlaneseq
  %v2430 = vshrl.u32 %v2429, 7
  %v2431 = vsub.s32 0, %v2430
  %v2432 = vrot.slane %v2428, %v2431
  %v2433 = vmul.f32 %v2432, %v1646
  %v2434 = vmul.f32 %v2432, %v1651
  %v2435 = vmul.f32 %v2432, %v1656
  %v2436 = vmul.f32 %v2432, %v1661
  %v2437 = vadd.f32 %v2424, %v2433
  %v2438 = vadd.f32 %v2425, %v2434
  %v2439 = vadd.f32 %v2426, %v2435
  %v2440 = vadd.f32 %v2427, %v2436
  %v2441 = vadd.f32 %v2437, %v2294
  %v2442 = vadd.f32 %v2438, %v2299
  %v2443 = vadd.f32 %v2439, %v2304
  %v2444 = vadd.f32 %v2440, %v2309
  %v2445 = vadd.f32 %v2227, %v1734
  %vm2446 = vcmp.gt.f32.partialorder %v2445, 0.0
  %v2447 = vmul.f32 %v2445, 0.2
  %v2448 = vsel %vm2446, %v2445, %v2447
  %v2449 = vadd.f32 %v2227, %v1804
  %vm2450 = vcmp.gt.f32.partialorder %v2449, 0.0
  %v2451 = vmul.f32 %v2449, 0.2
  %v2452 = vsel %vm2450, %v2449, %v2451
  %v2453 = vadd.f32 %v2227, %v1874
  %vm2454 = vcmp.gt.f32.partialorder %v2453, 0.0
  %v2455 = vmul.f32 %v2453, 0.2
  %v2456 = vsel %vm2454, %v2453, %v2455
  %v2457 = vmax.f32 %v2448, %v2452
  %v2458 = vmax.f32 %v2457, %v2456
  %v2459 = vsub.f32 %v2448, %v2458
  %v2460 = vmul.f32 %v2459, 1.442695
  %v2461 = vpow.pop %v2460
  %v2462 = vsub.f32 %v2452, %v2458
  %v2463 = vmul.f32 %v2462, 1.442695
  %v2464 = vpow.pop %v2463
  %v2465 = vsub.f32 %v2456, %v2458
  %v2466 = vmul.f32 %v2465, 1.442695
  %v2467 = vpow.pop %v2466
  %v2468 = vadd.f32 %v2461, %v2464
  %v2469 = vadd.f32 %v2468, %v2467
  %v2470 = vrcp.pop %v2469
  %v2471 = vmul.f32 %v2461, %v2470
  %v2472 = vlaneseq
  %v2473 = vshrl.u32 %v2472, 7
  %v2474 = vsub.s32 0, %v2473
  %v2475 = vrot.slane %v2471, %v2474
  %v2476 = vmul.f32 %v2475, %v1391
  %v2477 = vmul.f32 %v2475, %v1396
  %v2478 = vmul.f32 %v2475, %v1401
  %v2479 = vmul.f32 %v2475, %v1406
  %v2480 = vmul.f32 %v2464, %v2470
  %v2481 = vlaneseq
  %v2482 = vshrl.u32 %v2481, 7
  %v2483 = vsub.s32 0, %v2482
  %v2484 = vrot.slane %v2480, %v2483
  %v2485 = vmul.f32 %v2484, %v1476
  %v2486 = vmul.f32 %v2484, %v1481
  %v2487 = vmul.f32 %v2484, %v1486
  %v2488 = vmul.f32 %v2484, %v1491
  %v2489 = vadd.f32 %v2476, %v2485
  %v2490 = vadd.f32 %v2477, %v2486
  %v2491 = vadd.f32 %v2478, %v2487
  %v2492 = vadd.f32 %v2479, %v2488
  %v2493 = vmul.f32 %v2467, %v2470
  %v2494 = vlaneseq
  %v2495 = vshrl.u32 %v2494, 7
  %v2496 = vsub.s32 0, %v2495
  %v2497 = vrot.slane %v2493, %v2496
  %v2498 = vmul.f32 %v2497, %v1561
  %v2499 = vmul.f32 %v2497, %v1566
  %v2500 = vmul.f32 %v2497, %v1571
  %v2501 = vmul.f32 %v2497, %v1576
  %v2502 = vadd.f32 %v2489, %v2498
  %v2503 = vadd.f32 %v2490, %v2499
  %v2504 = vadd.f32 %v2491, %v2500
  %v2505 = vadd.f32 %v2492, %v2501
  %v2506 = vadd.f32 %v2502, %v2294
  %v2507 = vadd.f32 %v2503, %v2299
  %v2508 = vadd.f32 %v2504, %v2304
  %v2509 = vadd.f32 %v2505, %v2309
  %v2510 = vmax.f32 %v2311, 0.0
  %v2511 = vmax.f32 %v2312, 0.0
  %v2512 = vmax.f32 %v2313, 0.0
  %v2513 = vmax.f32 %v2314, 0.0
  %v2514 = vmax.f32 %v2376, 0.0
  %v2515 = vmax.f32 %v2377, 0.0
  %v2516 = vmax.f32 %v2378, 0.0
  %v2517 = vmax.f32 %v2379, 0.0
  %v2518 = vmax.f32 %v2441, 0.0
  %v2519 = vmax.f32 %v2442, 0.0
  %v2520 = vmax.f32 %v2443, 0.0
  %v2521 = vmax.f32 %v2444, 0.0
  %v2522 = vmax.f32 %v2506, 0.0
  %v2523 = vmax.f32 %v2507, 0.0
  %v2524 = vmax.f32 %v2508, 0.0
  %v2525 = vmax.f32 %v2509, 0.0
  %v2526 = vld [vmem:[%s9] sm:$0xff]
  %v2527 = vld [vmem:[%s9 + $0x8] sm:$0xff]
  %v2528 = vld [vmem:[%s9 + $0x10] sm:$0xff]
  %v2529 = vld [vmem:[%s9 + $0x18] sm:$0xff]
  %v2530 = vld [vmem:[%s10] sm:$0x1]
  %v2531 = vld [vmem:[%s11] sm:$0x1]
  %v2532 = vld [vmem:[%s12] sm:$0xff]
  %v2533 = vld [vmem:[%s12 + $0x8] sm:$0xff]
  %v2534 = vld [vmem:[%s12 + $0x10] sm:$0xff]
  %v2535 = vld [vmem:[%s12 + $0x18] sm:$0xff]
  %v2537 = vsel %vm439, %v2526, 0
  %v2540 = vsel %vm439, %v2527, 0
  %v2543 = vsel %vm439, %v2528, 0
  %v2546 = vsel %vm439, %v2529, 0
  %2548 = vmatprep.subr.mxu0 0.0
  %2549 = vmatpush1.msra.mxu0 %v2510
  %2550 = vmatprep.subr.mxu0 0.0
  %2551 = vmatpush1.msra.mxu0 %v2511
  %2552 = vmatprep.subr.mxu0 0.0
  %2553 = vmatpush1.msra.mxu0 %v2512
  %2554 = vmatprep.subr.mxu0 0.0
  %2555 = vmatpush1.msra.mxu0 %v2513
  %2556 = vmatprep.subr.mxu0 0.0
  %2557 = vmatpush1.msra.mxu0 0.0
  %2558 = vmatprep.subr.mxu0 0.0
  %2559 = vmatpush1.msra.mxu0 0.0
  %2560 = vmatprep.subr.mxu0 0.0
  %2561 = vmatpush1.msra.mxu0 0.0
  %2562 = vmatprep.subr.mxu0 0.0
  %2563 = vmatpush1.msra.mxu0 0.0
  %2564 = vmatprep.subr.mxu0 0.0
  %2565 = vmatpush1.msra.mxu0 0.0
  %2566 = vmatprep.subr.mxu0 0.0
  %2567 = vmatpush1.msra.mxu0 0.0
  %2568 = vmatprep.subr.mxu0 0.0
  %2569 = vmatpush1.msra.mxu0 0.0
  %2570 = vmatprep.subr.mxu0 0.0
  %2571 = vmatpush1.msra.mxu0 0.0
  %2572 = vmatprep.subr.mxu0 0.0
  %2573 = vmatpush1.msra.mxu0 0.0
  %2574 = vmatprep.subr.mxu0 0.0
  %2575 = vmatpush1.msra.mxu0 0.0
  %2576 = vmatprep.subr.mxu0 0.0
  %2577 = vmatpush1.msra.mxu0 0.0
  %2578 = vmatprep.subr.mxu0 0.0
  %2579 = vmatpush1.msra.mxu0 0.0
  %2580 = vmatprep.subr.mxu0 0.0
  %2581 = vmatpush1.msra.mxu0 0.0
  %2582 = vmatprep.subr.mxu0 0.0
  %2583 = vmatpush1.msra.mxu0 0.0
  %2584 = vmatprep.subr.mxu0 0.0
  %2585 = vmatpush1.msra.mxu0 0.0
  %2586 = vmatprep.subr.mxu0 0.0
  %2587 = vmatpush1.msra.mxu0 0.0
  %2588 = vmatprep.subr.mxu0 0.0
  %2589 = vmatpush1.msra.mxu0 0.0
  %2590 = vmatprep.subr.mxu0 0.0
  %2591 = vmatpush1.msra.mxu0 0.0
  %2592 = vmatprep.subr.mxu0 0.0
  %2593 = vmatpush1.msra.mxu0 0.0
  %2594 = vmatprep.subr.mxu0 0.0
  %2595 = vmatpush1.msra.mxu0 0.0
  %2596 = vmatprep.subr.mxu0 0.0
  %2597 = vmatpush1.msra.mxu0 0.0
  %2598 = vmatprep.subr.mxu0 0.0
  %2599 = vmatpush1.msra.mxu0 0.0
  %2600 = vmatprep.subr.mxu0 0.0
  %2601 = vmatpush1.msra.mxu0 0.0
  %2602 = vmatprep.subr.mxu0 0.0
  %2603 = vmatpush1.msra.mxu0 0.0
  %2604 = vmatprep.subr.mxu0 0.0
  %2605 = vmatpush1.msra.mxu0 0.0
  %2606 = vmatprep.subr.mxu0 0.0
  %2607 = vmatpush1.msra.mxu0 0.0
  %2608 = vmatprep.subr.mxu0 0.0
  %2609 = vmatpush1.msra.mxu0 0.0
  %2610 = vmatprep.subr.mxu0 0.0
  %2611 = vmatpush1.msra.mxu0 0.0
  %2612 = vmatprep.mubr.f32.mxu0 0.0
  %2613 = vmatmul.mubr.f32.gmra.mrb[0].mxu0 %v2537
  %v2614 = vpop.f32.mrb[0].mxu0
  %v2615 = vadd.f32 0.0, %v2614
  %v2616 = vpop.f32.mrb[0].mxu0
  %2617 = vmatprep.mubr.f32.mxu0 0.0
  %2618 = vmatmul.mubr.f32.gmra.mrb[0].mxu0 %v2540
  %v2619 = vpop.f32.mrb[0].mxu0
  %v2620 = vadd.f32 0.0, %v2619
  %v2621 = vpop.f32.mrb[0].mxu0
  %2622 = vmatprep.mubr.f32.mxu0 0.0
  %2623 = vmatmul.mubr.f32.gmra.mrb[0].mxu0 %v2543
  %v2624 = vpop.f32.mrb[0].mxu0
  %v2625 = vadd.f32 0.0, %v2624
  %v2626 = vpop.f32.mrb[0].mxu0
  %2627 = vmatprep.mubr.f32.mxu0 0.0
  %2628 = vmatmul.mubr.f32.gmra.mrb[0].mxu0 %v2546
  %v2629 = vpop.f32.mrb[0].mxu0
  %v2630 = vadd.f32 0.0, %v2629
  %v2631 = vpop.f32.mrb[0].mxu0
  %2632 = vdwg.mxu0
  %2633 = vmatprep.subr.mxu0 0.0
  %2634 = vmatpush1.msra.mxu0 %v2514
  %2635 = vmatprep.subr.mxu0 0.0
  %2636 = vmatpush1.msra.mxu0 %v2515
  %2637 = vmatprep.subr.mxu0 0.0
  %2638 = vmatpush1.msra.mxu0 %v2516
  %2639 = vmatprep.subr.mxu0 0.0
  %2640 = vmatpush1.msra.mxu0 %v2517
  %2641 = vmatprep.subr.mxu0 0.0
  %2642 = vmatpush1.msra.mxu0 0.0
  %2643 = vmatprep.subr.mxu0 0.0
  %2644 = vmatpush1.msra.mxu0 0.0
  %2645 = vmatprep.subr.mxu0 0.0
  %2646 = vmatpush1.msra.mxu0 0.0
  %2647 = vmatprep.subr.mxu0 0.0
  %2648 = vmatpush1.msra.mxu0 0.0
  %2649 = vmatprep.subr.mxu0 0.0
  %2650 = vmatpush1.msra.mxu0 0.0
  %2651 = vmatprep.subr.mxu0 0.0
  %2652 = vmatpush1.msra.mxu0 0.0
  %2653 = vmatprep.subr.mxu0 0.0
  %2654 = vmatpush1.msra.mxu0 0.0
  %2655 = vmatprep.subr.mxu0 0.0
  %2656 = vmatpush1.msra.mxu0 0.0
  %2657 = vmatprep.subr.mxu0 0.0
  %2658 = vmatpush1.msra.mxu0 0.0
  %2659 = vmatprep.subr.mxu0 0.0
  %2660 = vmatpush1.msra.mxu0 0.0
  %2661 = vmatprep.subr.mxu0 0.0
  %2662 = vmatpush1.msra.mxu0 0.0
  %2663 = vmatprep.subr.mxu0 0.0
  %2664 = vmatpush1.msra.mxu0 0.0
  %2665 = vmatprep.subr.mxu0 0.0
  %2666 = vmatpush1.msra.mxu0 0.0
  %2667 = vmatprep.subr.mxu0 0.0
  %2668 = vmatpush1.msra.mxu0 0.0
  %2669 = vmatprep.subr.mxu0 0.0
  %2670 = vmatpush1.msra.mxu0 0.0
  %2671 = vmatprep.subr.mxu0 0.0
  %2672 = vmatpush1.msra.mxu0 0.0
  %2673 = vmatprep.subr.mxu0 0.0
  %2674 = vmatpush1.msra.mxu0 0.0
  %2675 = vmatprep.subr.mxu0 0.0
  %2676 = vmatpush1.msra.mxu0 0.0
  %2677 = vmatprep.subr.mxu0 0.0
  %2678 = vmatpush1.msra.mxu0 0.0
  %2679 = vmatprep.subr.mxu0 0.0
  %2680 = vmatpush1.msra.mxu0 0.0
  %2681 = vmatprep.subr.mxu0 0.0
  %2682 = vmatpush1.msra.mxu0 0.0
  %2683 = vmatprep.subr.mxu0 0.0
  %2684 = vmatpush1.msra.mxu0 0.0
  %2685 = vmatprep.subr.mxu0 0.0
  %2686 = vmatpush1.msra.mxu0 0.0
  %2687 = vmatprep.subr.mxu0 0.0
  %2688 = vmatpush1.msra.mxu0 0.0
  %2689 = vmatprep.subr.mxu0 0.0
  %2690 = vmatpush1.msra.mxu0 0.0
  %2691 = vmatprep.subr.mxu0 0.0
  %2692 = vmatpush1.msra.mxu0 0.0
  %2693 = vmatprep.subr.mxu0 0.0
  %2694 = vmatpush1.msra.mxu0 0.0
  %2695 = vmatprep.subr.mxu0 0.0
  %2696 = vmatpush1.msra.mxu0 0.0
  %2697 = vmatprep.mubr.f32.mxu0 0.0
  %2698 = vmatmul.mubr.f32.gmra.mrb[0].mxu0 %v2537
  %v2699 = vpop.f32.mrb[0].mxu0
  %v2700 = vadd.f32 0.0, %v2699
  %v2701 = vpop.f32.mrb[0].mxu0
  %2702 = vmatprep.mubr.f32.mxu0 0.0
  %2703 = vmatmul.mubr.f32.gmra.mrb[0].mxu0 %v2540
  %v2704 = vpop.f32.mrb[0].mxu0
  %v2705 = vadd.f32 0.0, %v2704
  %v2706 = vpop.f32.mrb[0].mxu0
  %2707 = vmatprep.mubr.f32.mxu0 0.0
  %2708 = vmatmul.mubr.f32.gmra.mrb[0].mxu0 %v2543
  %v2709 = vpop.f32.mrb[0].mxu0
  %v2710 = vadd.f32 0.0, %v2709
  %v2711 = vpop.f32.mrb[0].mxu0
  %2712 = vmatprep.mubr.f32.mxu0 0.0
  %2713 = vmatmul.mubr.f32.gmra.mrb[0].mxu0 %v2546
  %v2714 = vpop.f32.mrb[0].mxu0
  %v2715 = vadd.f32 0.0, %v2714
  %v2716 = vpop.f32.mrb[0].mxu0
  %2717 = vdwg.mxu0
  %2718 = vmatprep.subr.mxu0 0.0
  %2719 = vmatpush1.msra.mxu0 %v2518
  %2720 = vmatprep.subr.mxu0 0.0
  %2721 = vmatpush1.msra.mxu0 %v2519
  %2722 = vmatprep.subr.mxu0 0.0
  %2723 = vmatpush1.msra.mxu0 %v2520
  %2724 = vmatprep.subr.mxu0 0.0
  %2725 = vmatpush1.msra.mxu0 %v2521
  %2726 = vmatprep.subr.mxu0 0.0
  %2727 = vmatpush1.msra.mxu0 0.0
  %2728 = vmatprep.subr.mxu0 0.0
  %2729 = vmatpush1.msra.mxu0 0.0
  %2730 = vmatprep.subr.mxu0 0.0
  %2731 = vmatpush1.msra.mxu0 0.0
  %2732 = vmatprep.subr.mxu0 0.0
  %2733 = vmatpush1.msra.mxu0 0.0
  %2734 = vmatprep.subr.mxu0 0.0
  %2735 = vmatpush1.msra.mxu0 0.0
  %2736 = vmatprep.subr.mxu0 0.0
  %2737 = vmatpush1.msra.mxu0 0.0
  %2738 = vmatprep.subr.mxu0 0.0
  %2739 = vmatpush1.msra.mxu0 0.0
  %2740 = vmatprep.subr.mxu0 0.0
  %2741 = vmatpush1.msra.mxu0 0.0
  %2742 = vmatprep.subr.mxu0 0.0
  %2743 = vmatpush1.msra.mxu0 0.0
  %2744 = vmatprep.subr.mxu0 0.0
  %2745 = vmatpush1.msra.mxu0 0.0
  %2746 = vmatprep.subr.mxu0 0.0
  %2747 = vmatpush1.msra.mxu0 0.0
  %2748 = vmatprep.subr.mxu0 0.0
  %2749 = vmatpush1.msra.mxu0 0.0
  %2750 = vmatprep.subr.mxu0 0.0
  %2751 = vmatpush1.msra.mxu0 0.0
  %2752 = vmatprep.subr.mxu0 0.0
  %2753 = vmatpush1.msra.mxu0 0.0
  %2754 = vmatprep.subr.mxu0 0.0
  %2755 = vmatpush1.msra.mxu0 0.0
  %2756 = vmatprep.subr.mxu0 0.0
  %2757 = vmatpush1.msra.mxu0 0.0
  %2758 = vmatprep.subr.mxu0 0.0
  %2759 = vmatpush1.msra.mxu0 0.0
  %2760 = vmatprep.subr.mxu0 0.0
  %2761 = vmatpush1.msra.mxu0 0.0
  %2762 = vmatprep.subr.mxu0 0.0
  %2763 = vmatpush1.msra.mxu0 0.0
  %2764 = vmatprep.subr.mxu0 0.0
  %2765 = vmatpush1.msra.mxu0 0.0
  %2766 = vmatprep.subr.mxu0 0.0
  %2767 = vmatpush1.msra.mxu0 0.0
  %2768 = vmatprep.subr.mxu0 0.0
  %2769 = vmatpush1.msra.mxu0 0.0
  %2770 = vmatprep.subr.mxu0 0.0
  %2771 = vmatpush1.msra.mxu0 0.0
  %2772 = vmatprep.subr.mxu0 0.0
  %2773 = vmatpush1.msra.mxu0 0.0
  %2774 = vmatprep.subr.mxu0 0.0
  %2775 = vmatpush1.msra.mxu0 0.0
  %2776 = vmatprep.subr.mxu0 0.0
  %2777 = vmatpush1.msra.mxu0 0.0
  %2778 = vmatprep.subr.mxu0 0.0
  %2779 = vmatpush1.msra.mxu0 0.0
  %2780 = vmatprep.subr.mxu0 0.0
  %2781 = vmatpush1.msra.mxu0 0.0
  %2782 = vmatprep.mubr.f32.mxu0 0.0
  %2783 = vmatmul.mubr.f32.gmra.mrb[0].mxu0 %v2537
  %v2784 = vpop.f32.mrb[0].mxu0
  %v2785 = vadd.f32 0.0, %v2784
  %v2786 = vpop.f32.mrb[0].mxu0
  %2787 = vmatprep.mubr.f32.mxu0 0.0
  %2788 = vmatmul.mubr.f32.gmra.mrb[0].mxu0 %v2540
  %v2789 = vpop.f32.mrb[0].mxu0
  %v2790 = vadd.f32 0.0, %v2789
  %v2791 = vpop.f32.mrb[0].mxu0
  %2792 = vmatprep.mubr.f32.mxu0 0.0
  %2793 = vmatmul.mubr.f32.gmra.mrb[0].mxu0 %v2543
  %v2794 = vpop.f32.mrb[0].mxu0
  %v2795 = vadd.f32 0.0, %v2794
  %v2796 = vpop.f32.mrb[0].mxu0
  %2797 = vmatprep.mubr.f32.mxu0 0.0
  %2798 = vmatmul.mubr.f32.gmra.mrb[0].mxu0 %v2546
  %v2799 = vpop.f32.mrb[0].mxu0
  %v2800 = vadd.f32 0.0, %v2799
  %v2801 = vpop.f32.mrb[0].mxu0
  %2802 = vdwg.mxu0
  %2803 = vmatprep.subr.mxu0 0.0
  %2804 = vmatpush1.msra.mxu0 %v2522
  %2805 = vmatprep.subr.mxu0 0.0
  %2806 = vmatpush1.msra.mxu0 %v2523
  %2807 = vmatprep.subr.mxu0 0.0
  %2808 = vmatpush1.msra.mxu0 %v2524
  %2809 = vmatprep.subr.mxu0 0.0
  %2810 = vmatpush1.msra.mxu0 %v2525
  %2811 = vmatprep.subr.mxu0 0.0
  %2812 = vmatpush1.msra.mxu0 0.0
  %2813 = vmatprep.subr.mxu0 0.0
  %2814 = vmatpush1.msra.mxu0 0.0
  %2815 = vmatprep.subr.mxu0 0.0
  %2816 = vmatpush1.msra.mxu0 0.0
  %2817 = vmatprep.subr.mxu0 0.0
  %2818 = vmatpush1.msra.mxu0 0.0
  %2819 = vmatprep.subr.mxu0 0.0
  %2820 = vmatpush1.msra.mxu0 0.0
  %2821 = vmatprep.subr.mxu0 0.0
  %2822 = vmatpush1.msra.mxu0 0.0
  %2823 = vmatprep.subr.mxu0 0.0
  %2824 = vmatpush1.msra.mxu0 0.0
  %2825 = vmatprep.subr.mxu0 0.0
  %2826 = vmatpush1.msra.mxu0 0.0
  %2827 = vmatprep.subr.mxu0 0.0
  %2828 = vmatpush1.msra.mxu0 0.0
  %2829 = vmatprep.subr.mxu0 0.0
  %2830 = vmatpush1.msra.mxu0 0.0
  %2831 = vmatprep.subr.mxu0 0.0
  %2832 = vmatpush1.msra.mxu0 0.0
  %2833 = vmatprep.subr.mxu0 0.0
  %2834 = vmatpush1.msra.mxu0 0.0
  %2835 = vmatprep.subr.mxu0 0.0
  %2836 = vmatpush1.msra.mxu0 0.0
  %2837 = vmatprep.subr.mxu0 0.0
  %2838 = vmatpush1.msra.mxu0 0.0
  %2839 = vmatprep.subr.mxu0 0.0
  %2840 = vmatpush1.msra.mxu0 0.0
  %2841 = vmatprep.subr.mxu0 0.0
  %2842 = vmatpush1.msra.mxu0 0.0
  %2843 = vmatprep.subr.mxu0 0.0
  %2844 = vmatpush1.msra.mxu0 0.0
  %2845 = vmatprep.subr.mxu0 0.0
  %2846 = vmatpush1.msra.mxu0 0.0
  %2847 = vmatprep.subr.mxu0 0.0
  %2848 = vmatpush1.msra.mxu0 0.0
  %2849 = vmatprep.subr.mxu0 0.0
  %2850 = vmatpush1.msra.mxu0 0.0
  %2851 = vmatprep.subr.mxu0 0.0
  %2852 = vmatpush1.msra.mxu0 0.0
  %2853 = vmatprep.subr.mxu0 0.0
  %2854 = vmatpush1.msra.mxu0 0.0
  %2855 = vmatprep.subr.mxu0 0.0
  %2856 = vmatpush1.msra.mxu0 0.0
  %2857 = vmatprep.subr.mxu0 0.0
  %2858 = vmatpush1.msra.mxu0 0.0
  %2859 = vmatprep.subr.mxu0 0.0
  %2860 = vmatpush1.msra.mxu0 0.0
  %2861 = vmatprep.subr.mxu0 0.0
  %2862 = vmatpush1.msra.mxu0 0.0
  %2863 = vmatprep.subr.mxu0 0.0
  %2864 = vmatpush1.msra.mxu0 0.0
  %2865 = vmatprep.subr.mxu0 0.0
  %2866 = vmatpush1.msra.mxu0 0.0
  %2867 = vmatprep.mubr.f32.mxu0 0.0
  %2868 = vmatmul.mubr.f32.gmra.mrb[0].mxu0 %v2537
  %v2869 = vpop.f32.mrb[0].mxu0
  %v2870 = vadd.f32 0.0, %v2869
  %v2871 = vpop.f32.mrb[0].mxu0
  %2872 = vmatprep.mubr.f32.mxu0 0.0
  %2873 = vmatmul.mubr.f32.gmra.mrb[0].mxu0 %v2540
  %v2874 = vpop.f32.mrb[0].mxu0
  %v2875 = vadd.f32 0.0, %v2874
  %v2876 = vpop.f32.mrb[0].mxu0
  %2877 = vmatprep.mubr.f32.mxu0 0.0
  %2878 = vmatmul.mubr.f32.gmra.mrb[0].mxu0 %v2543
  %v2879 = vpop.f32.mrb[0].mxu0
  %v2880 = vadd.f32 0.0, %v2879
  %v2881 = vpop.f32.mrb[0].mxu0
  %2882 = vmatprep.mubr.f32.mxu0 0.0
  %2883 = vmatmul.mubr.f32.gmra.mrb[0].mxu0 %v2546
  %v2884 = vpop.f32.mrb[0].mxu0
  %v2885 = vadd.f32 0.0, %v2884
  %v2886 = vpop.f32.mrb[0].mxu0
  %2887 = vdwg.mxu0
  %v2889 = vsel %vm439, %v2530, 0
  %2891 = vmatprep.subr.mxu0 0.0
  %2892 = vmatpush1.msra.mxu0 %v2615
  %2893 = vmatprep.subr.mxu0 0.0
  %2894 = vmatpush1.msra.mxu0 %v2620
  %2895 = vmatprep.subr.mxu0 0.0
  %2896 = vmatpush1.msra.mxu0 %v2625
  %2897 = vmatprep.subr.mxu0 0.0
  %2898 = vmatpush1.msra.mxu0 %v2630
  %2899 = vmatprep.subr.mxu0 0.0
  %2900 = vmatpush1.msra.mxu0 0.0
  %2901 = vmatprep.subr.mxu0 0.0
  %2902 = vmatpush1.msra.mxu0 0.0
  %2903 = vmatprep.subr.mxu0 0.0
  %2904 = vmatpush1.msra.mxu0 0.0
  %2905 = vmatprep.subr.mxu0 0.0
  %2906 = vmatpush1.msra.mxu0 0.0
  %2907 = vmatprep.subr.mxu0 0.0
  %2908 = vmatpush1.msra.mxu0 0.0
  %2909 = vmatprep.subr.mxu0 0.0
  %2910 = vmatpush1.msra.mxu0 0.0
  %2911 = vmatprep.subr.mxu0 0.0
  %2912 = vmatpush1.msra.mxu0 0.0
  %2913 = vmatprep.subr.mxu0 0.0
  %2914 = vmatpush1.msra.mxu0 0.0
  %2915 = vmatprep.subr.mxu0 0.0
  %2916 = vmatpush1.msra.mxu0 0.0
  %2917 = vmatprep.subr.mxu0 0.0
  %2918 = vmatpush1.msra.mxu0 0.0
  %2919 = vmatprep.subr.mxu0 0.0
  %2920 = vmatpush1.msra.mxu0 0.0
  %2921 = vmatprep.subr.mxu0 0.0
  %2922 = vmatpush1.msra.mxu0 0.0
  %2923 = vmatprep.subr.mxu0 0.0
  %2924 = vmatpush1.msra.mxu0 0.0
  %2925 = vmatprep.subr.mxu0 0.0
  %2926 = vmatpush1.msra.mxu0 0.0
  %2927 = vmatprep.subr.mxu0 0.0
  %2928 = vmatpush1.msra.mxu0 0.0
  %2929 = vmatprep.subr.mxu0 0.0
  %2930 = vmatpush1.msra.mxu0 0.0
  %2931 = vmatprep.subr.mxu0 0.0
  %2932 = vmatpush1.msra.mxu0 0.0
  %2933 = vmatprep.subr.mxu0 0.0
  %2934 = vmatpush1.msra.mxu0 0.0
  %2935 = vmatprep.subr.mxu0 0.0
  %2936 = vmatpush1.msra.mxu0 0.0
  %2937 = vmatprep.subr.mxu0 0.0
  %2938 = vmatpush1.msra.mxu0 0.0
  %2939 = vmatprep.subr.mxu0 0.0
  %2940 = vmatpush1.msra.mxu0 0.0
  %2941 = vmatprep.subr.mxu0 0.0
  %2942 = vmatpush1.msra.mxu0 0.0
  %2943 = vmatprep.subr.mxu0 0.0
  %2944 = vmatpush1.msra.mxu0 0.0
  %2945 = vmatprep.subr.mxu0 0.0
  %2946 = vmatpush1.msra.mxu0 0.0
  %2947 = vmatprep.subr.mxu0 0.0
  %2948 = vmatpush1.msra.mxu0 0.0
  %2949 = vmatprep.subr.mxu0 0.0
  %2950 = vmatpush1.msra.mxu0 0.0
  %2951 = vmatprep.subr.mxu0 0.0
  %2952 = vmatpush1.msra.mxu0 0.0
  %2953 = vmatprep.subr.mxu0 0.0
  %2954 = vmatpush1.msra.mxu0 0.0
  %2955 = vmatprep.mubr.f32.mxu0 0.0
  %2956 = vmatmul.mubr.f32.gmra.mrb[0].mxu0 %v2889
  %v2957 = vpop.f32.mrb[0].mxu0
  %v2958 = vadd.f32 0.0, %v2957
  %v2959 = vpop.f32.mrb[0].mxu0
  %2960 = vdwg.mxu0
  %2961 = vmatprep.subr.mxu0 0.0
  %2962 = vmatpush1.msra.mxu0 %v2700
  %2963 = vmatprep.subr.mxu0 0.0
  %2964 = vmatpush1.msra.mxu0 %v2705
  %2965 = vmatprep.subr.mxu0 0.0
  %2966 = vmatpush1.msra.mxu0 %v2710
  %2967 = vmatprep.subr.mxu0 0.0
  %2968 = vmatpush1.msra.mxu0 %v2715
  %2969 = vmatprep.subr.mxu0 0.0
  %2970 = vmatpush1.msra.mxu0 0.0
  %2971 = vmatprep.subr.mxu0 0.0
  %2972 = vmatpush1.msra.mxu0 0.0
  %2973 = vmatprep.subr.mxu0 0.0
  %2974 = vmatpush1.msra.mxu0 0.0
  %2975 = vmatprep.subr.mxu0 0.0
  %2976 = vmatpush1.msra.mxu0 0.0
  %2977 = vmatprep.subr.mxu0 0.0
  %2978 = vmatpush1.msra.mxu0 0.0
  %2979 = vmatprep.subr.mxu0 0.0
  %2980 = vmatpush1.msra.mxu0 0.0
  %2981 = vmatprep.subr.mxu0 0.0
  %2982 = vmatpush1.msra.mxu0 0.0
  %2983 = vmatprep.subr.mxu0 0.0
  %2984 = vmatpush1.msra.mxu0 0.0
  %2985 = vmatprep.subr.mxu0 0.0
  %2986 = vmatpush1.msra.mxu0 0.0
  %2987 = vmatprep.subr.mxu0 0.0
  %2988 = vmatpush1.msra.mxu0 0.0
  %2989 = vmatprep.subr.mxu0 0.0
  %2990 = vmatpush1.msra.mxu0 0.0
  %2991 = vmatprep.subr.mxu0 0.0
  %2992 = vmatpush1.msra.mxu0 0.0
  %2993 = vmatprep.subr.mxu0 0.0
  %2994 = vmatpush1.msra.mxu0 0.0
  %2995 = vmatprep.subr.mxu0 0.0
  %2996 = vmatpush1.msra.mxu0 0.0
  %2997 = vmatprep.subr.mxu0 0.0
  %2998 = vmatpush1.msra.mxu0 0.0
  %2999 = vmatprep.subr.mxu0 0.0
  %3000 = vmatpush1.msra.mxu0 0.0
  %3001 = vmatprep.subr.mxu0 0.0
  %3002 = vmatpush1.msra.mxu0 0.0
  %3003 = vmatprep.subr.mxu0 0.0
  %3004 = vmatpush1.msra.mxu0 0.0
  %3005 = vmatprep.subr.mxu0 0.0
  %3006 = vmatpush1.msra.mxu0 0.0
  %3007 = vmatprep.subr.mxu0 0.0
  %3008 = vmatpush1.msra.mxu0 0.0
  %3009 = vmatprep.subr.mxu0 0.0
  %3010 = vmatpush1.msra.mxu0 0.0
  %3011 = vmatprep.subr.mxu0 0.0
  %3012 = vmatpush1.msra.mxu0 0.0
  %3013 = vmatprep.subr.mxu0 0.0
  %3014 = vmatpush1.msra.mxu0 0.0
  %3015 = vmatprep.subr.mxu0 0.0
  %3016 = vmatpush1.msra.mxu0 0.0
  %3017 = vmatprep.subr.mxu0 0.0
  %3018 = vmatpush1.msra.mxu0 0.0
  %3019 = vmatprep.subr.mxu0 0.0
  %3020 = vmatpush1.msra.mxu0 0.0
  %3021 = vmatprep.subr.mxu0 0.0
  %3022 = vmatpush1.msra.mxu0 0.0
  %3023 = vmatprep.subr.mxu0 0.0
  %3024 = vmatpush1.msra.mxu0 0.0
  %3025 = vmatprep.mubr.f32.mxu0 0.0
  %3026 = vmatmul.mubr.f32.gmra.mrb[0].mxu0 %v2889
  %v3027 = vpop.f32.mrb[0].mxu0
  %v3028 = vadd.f32 0.0, %v3027
  %v3029 = vpop.f32.mrb[0].mxu0
  %3030 = vdwg.mxu0
  %3031 = vmatprep.subr.mxu0 0.0
  %3032 = vmatpush1.msra.mxu0 %v2785
  %3033 = vmatprep.subr.mxu0 0.0
  %3034 = vmatpush1.msra.mxu0 %v2790
  %3035 = vmatprep.subr.mxu0 0.0
  %3036 = vmatpush1.msra.mxu0 %v2795
  %3037 = vmatprep.subr.mxu0 0.0
  %3038 = vmatpush1.msra.mxu0 %v2800
  %3039 = vmatprep.subr.mxu0 0.0
  %3040 = vmatpush1.msra.mxu0 0.0
  %3041 = vmatprep.subr.mxu0 0.0
  %3042 = vmatpush1.msra.mxu0 0.0
  %3043 = vmatprep.subr.mxu0 0.0
  %3044 = vmatpush1.msra.mxu0 0.0
  %3045 = vmatprep.subr.mxu0 0.0
  %3046 = vmatpush1.msra.mxu0 0.0
  %3047 = vmatprep.subr.mxu0 0.0
  %3048 = vmatpush1.msra.mxu0 0.0
  %3049 = vmatprep.subr.mxu0 0.0
  %3050 = vmatpush1.msra.mxu0 0.0
  %3051 = vmatprep.subr.mxu0 0.0
  %3052 = vmatpush1.msra.mxu0 0.0
  %3053 = vmatprep.subr.mxu0 0.0
  %3054 = vmatpush1.msra.mxu0 0.0
  %3055 = vmatprep.subr.mxu0 0.0
  %3056 = vmatpush1.msra.mxu0 0.0
  %3057 = vmatprep.subr.mxu0 0.0
  %3058 = vmatpush1.msra.mxu0 0.0
  %3059 = vmatprep.subr.mxu0 0.0
  %3060 = vmatpush1.msra.mxu0 0.0
  %3061 = vmatprep.subr.mxu0 0.0
  %3062 = vmatpush1.msra.mxu0 0.0
  %3063 = vmatprep.subr.mxu0 0.0
  %3064 = vmatpush1.msra.mxu0 0.0
  %3065 = vmatprep.subr.mxu0 0.0
  %3066 = vmatpush1.msra.mxu0 0.0
  %3067 = vmatprep.subr.mxu0 0.0
  %3068 = vmatpush1.msra.mxu0 0.0
  %3069 = vmatprep.subr.mxu0 0.0
  %3070 = vmatpush1.msra.mxu0 0.0
  %3071 = vmatprep.subr.mxu0 0.0
  %3072 = vmatpush1.msra.mxu0 0.0
  %3073 = vmatprep.subr.mxu0 0.0
  %3074 = vmatpush1.msra.mxu0 0.0
  %3075 = vmatprep.subr.mxu0 0.0
  %3076 = vmatpush1.msra.mxu0 0.0
  %3077 = vmatprep.subr.mxu0 0.0
  %3078 = vmatpush1.msra.mxu0 0.0
  %3079 = vmatprep.subr.mxu0 0.0
  %3080 = vmatpush1.msra.mxu0 0.0
  %3081 = vmatprep.subr.mxu0 0.0
  %3082 = vmatpush1.msra.mxu0 0.0
  %3083 = vmatprep.subr.mxu0 0.0
  %3084 = vmatpush1.msra.mxu0 0.0
  %3085 = vmatprep.subr.mxu0 0.0
  %3086 = vmatpush1.msra.mxu0 0.0
  %3087 = vmatprep.subr.mxu0 0.0
  %3088 = vmatpush1.msra.mxu0 0.0
  %3089 = vmatprep.subr.mxu0 0.0
  %3090 = vmatpush1.msra.mxu0 0.0
  %3091 = vmatprep.subr.mxu0 0.0
  %3092 = vmatpush1.msra.mxu0 0.0
  %3093 = vmatprep.subr.mxu0 0.0
  %3094 = vmatpush1.msra.mxu0 0.0
  %3095 = vmatprep.mubr.f32.mxu0 0.0
  %3096 = vmatmul.mubr.f32.gmra.mrb[0].mxu0 %v2889
  %v3097 = vpop.f32.mrb[0].mxu0
  %v3098 = vadd.f32 0.0, %v3097
  %v3099 = vpop.f32.mrb[0].mxu0
  %3100 = vdwg.mxu0
  %3101 = vmatprep.subr.mxu0 0.0
  %3102 = vmatpush1.msra.mxu0 %v2870
  %3103 = vmatprep.subr.mxu0 0.0
  %3104 = vmatpush1.msra.mxu0 %v2875
  %3105 = vmatprep.subr.mxu0 0.0
  %3106 = vmatpush1.msra.mxu0 %v2880
  %3107 = vmatprep.subr.mxu0 0.0
  %3108 = vmatpush1.msra.mxu0 %v2885
  %3109 = vmatprep.subr.mxu0 0.0
  %3110 = vmatpush1.msra.mxu0 0.0
  %3111 = vmatprep.subr.mxu0 0.0
  %3112 = vmatpush1.msra.mxu0 0.0
  %3113 = vmatprep.subr.mxu0 0.0
  %3114 = vmatpush1.msra.mxu0 0.0
  %3115 = vmatprep.subr.mxu0 0.0
  %3116 = vmatpush1.msra.mxu0 0.0
  %3117 = vmatprep.subr.mxu0 0.0
  %3118 = vmatpush1.msra.mxu0 0.0
  %3119 = vmatprep.subr.mxu0 0.0
  %3120 = vmatpush1.msra.mxu0 0.0
  %3121 = vmatprep.subr.mxu0 0.0
  %3122 = vmatpush1.msra.mxu0 0.0
  %3123 = vmatprep.subr.mxu0 0.0
  %3124 = vmatpush1.msra.mxu0 0.0
  %3125 = vmatprep.subr.mxu0 0.0
  %3126 = vmatpush1.msra.mxu0 0.0
  %3127 = vmatprep.subr.mxu0 0.0
  %3128 = vmatpush1.msra.mxu0 0.0
  %3129 = vmatprep.subr.mxu0 0.0
  %3130 = vmatpush1.msra.mxu0 0.0
  %3131 = vmatprep.subr.mxu0 0.0
  %3132 = vmatpush1.msra.mxu0 0.0
  %3133 = vmatprep.subr.mxu0 0.0
  %3134 = vmatpush1.msra.mxu0 0.0
  %3135 = vmatprep.subr.mxu0 0.0
  %3136 = vmatpush1.msra.mxu0 0.0
  %3137 = vmatprep.subr.mxu0 0.0
  %3138 = vmatpush1.msra.mxu0 0.0
  %3139 = vmatprep.subr.mxu0 0.0
  %3140 = vmatpush1.msra.mxu0 0.0
  %3141 = vmatprep.subr.mxu0 0.0
  %3142 = vmatpush1.msra.mxu0 0.0
  %3143 = vmatprep.subr.mxu0 0.0
  %3144 = vmatpush1.msra.mxu0 0.0
  %3145 = vmatprep.subr.mxu0 0.0
  %3146 = vmatpush1.msra.mxu0 0.0
  %3147 = vmatprep.subr.mxu0 0.0
  %3148 = vmatpush1.msra.mxu0 0.0
  %3149 = vmatprep.subr.mxu0 0.0
  %3150 = vmatpush1.msra.mxu0 0.0
  %3151 = vmatprep.subr.mxu0 0.0
  %3152 = vmatpush1.msra.mxu0 0.0
  %3153 = vmatprep.subr.mxu0 0.0
  %3154 = vmatpush1.msra.mxu0 0.0
  %3155 = vmatprep.subr.mxu0 0.0
  %3156 = vmatpush1.msra.mxu0 0.0
  %3157 = vmatprep.subr.mxu0 0.0
  %3158 = vmatpush1.msra.mxu0 0.0
  %3159 = vmatprep.subr.mxu0 0.0
  %3160 = vmatpush1.msra.mxu0 0.0
  %3161 = vmatprep.subr.mxu0 0.0
  %3162 = vmatpush1.msra.mxu0 0.0
  %3163 = vmatprep.subr.mxu0 0.0
  %3164 = vmatpush1.msra.mxu0 0.0
  %3165 = vmatprep.mubr.f32.mxu0 0.0
  %3166 = vmatmul.mubr.f32.gmra.mrb[0].mxu0 %v2889
  %v3167 = vpop.f32.mrb[0].mxu0
  %v3168 = vadd.f32 0.0, %v3167
  %v3169 = vpop.f32.mrb[0].mxu0
  %3170 = vdwg.mxu0
  %v3172 = vsel %vm439, %v2531, 0
  %3174 = vmatprep.subr.mxu0 0.0
  %3175 = vmatpush1.msra.mxu0 %v2615
  %3176 = vmatprep.subr.mxu0 0.0
  %3177 = vmatpush1.msra.mxu0 %v2620
  %3178 = vmatprep.subr.mxu0 0.0
  %3179 = vmatpush1.msra.mxu0 %v2625
  %3180 = vmatprep.subr.mxu0 0.0
  %3181 = vmatpush1.msra.mxu0 %v2630
  %3182 = vmatprep.subr.mxu0 0.0
  %3183 = vmatpush1.msra.mxu0 0.0
  %3184 = vmatprep.subr.mxu0 0.0
  %3185 = vmatpush1.msra.mxu0 0.0
  %3186 = vmatprep.subr.mxu0 0.0
  %3187 = vmatpush1.msra.mxu0 0.0
  %3188 = vmatprep.subr.mxu0 0.0
  %3189 = vmatpush1.msra.mxu0 0.0
  %3190 = vmatprep.subr.mxu0 0.0
  %3191 = vmatpush1.msra.mxu0 0.0
  %3192 = vmatprep.subr.mxu0 0.0
  %3193 = vmatpush1.msra.mxu0 0.0
  %3194 = vmatprep.subr.mxu0 0.0
  %3195 = vmatpush1.msra.mxu0 0.0
  %3196 = vmatprep.subr.mxu0 0.0
  %3197 = vmatpush1.msra.mxu0 0.0
  %3198 = vmatprep.subr.mxu0 0.0
  %3199 = vmatpush1.msra.mxu0 0.0
  %3200 = vmatprep.subr.mxu0 0.0
  %3201 = vmatpush1.msra.mxu0 0.0
  %3202 = vmatprep.subr.mxu0 0.0
  %3203 = vmatpush1.msra.mxu0 0.0
  %3204 = vmatprep.subr.mxu0 0.0
  %3205 = vmatpush1.msra.mxu0 0.0
  %3206 = vmatprep.subr.mxu0 0.0
  %3207 = vmatpush1.msra.mxu0 0.0
  %3208 = vmatprep.subr.mxu0 0.0
  %3209 = vmatpush1.msra.mxu0 0.0
  %3210 = vmatprep.subr.mxu0 0.0
  %3211 = vmatpush1.msra.mxu0 0.0
  %3212 = vmatprep.subr.mxu0 0.0
  %3213 = vmatpush1.msra.mxu0 0.0
  %3214 = vmatprep.subr.mxu0 0.0
  %3215 = vmatpush1.msra.mxu0 0.0
  %3216 = vmatprep.subr.mxu0 0.0
  %3217 = vmatpush1.msra.mxu0 0.0
  %3218 = vmatprep.subr.mxu0 0.0
  %3219 = vmatpush1.msra.mxu0 0.0
  %3220 = vmatprep.subr.mxu0 0.0
  %3221 = vmatpush1.msra.mxu0 0.0
  %3222 = vmatprep.subr.mxu0 0.0
  %3223 = vmatpush1.msra.mxu0 0.0
  %3224 = vmatprep.subr.mxu0 0.0
  %3225 = vmatpush1.msra.mxu0 0.0
  %3226 = vmatprep.subr.mxu0 0.0
  %3227 = vmatpush1.msra.mxu0 0.0
  %3228 = vmatprep.subr.mxu0 0.0
  %3229 = vmatpush1.msra.mxu0 0.0
  %3230 = vmatprep.subr.mxu0 0.0
  %3231 = vmatpush1.msra.mxu0 0.0
  %3232 = vmatprep.subr.mxu0 0.0
  %3233 = vmatpush1.msra.mxu0 0.0
  %3234 = vmatprep.subr.mxu0 0.0
  %3235 = vmatpush1.msra.mxu0 0.0
  %3236 = vmatprep.subr.mxu0 0.0
  %3237 = vmatpush1.msra.mxu0 0.0
  %3238 = vmatprep.mubr.f32.mxu0 0.0
  %3239 = vmatmul.mubr.f32.gmra.mrb[0].mxu0 %v3172
  %v3240 = vpop.f32.mrb[0].mxu0
  %v3241 = vadd.f32 0.0, %v3240
  %v3242 = vpop.f32.mrb[0].mxu0
  %3243 = vdwg.mxu0
  %3244 = vmatprep.subr.mxu0 0.0
  %3245 = vmatpush1.msra.mxu0 %v2700
  %3246 = vmatprep.subr.mxu0 0.0
  %3247 = vmatpush1.msra.mxu0 %v2705
  %3248 = vmatprep.subr.mxu0 0.0
  %3249 = vmatpush1.msra.mxu0 %v2710
  %3250 = vmatprep.subr.mxu0 0.0
  %3251 = vmatpush1.msra.mxu0 %v2715
  %3252 = vmatprep.subr.mxu0 0.0
  %3253 = vmatpush1.msra.mxu0 0.0
  %3254 = vmatprep.subr.mxu0 0.0
  %3255 = vmatpush1.msra.mxu0 0.0
  %3256 = vmatprep.subr.mxu0 0.0
  %3257 = vmatpush1.msra.mxu0 0.0
  %3258 = vmatprep.subr.mxu0 0.0
  %3259 = vmatpush1.msra.mxu0 0.0
  %3260 = vmatprep.subr.mxu0 0.0
  %3261 = vmatpush1.msra.mxu0 0.0
  %3262 = vmatprep.subr.mxu0 0.0
  %3263 = vmatpush1.msra.mxu0 0.0
  %3264 = vmatprep.subr.mxu0 0.0
  %3265 = vmatpush1.msra.mxu0 0.0
  %3266 = vmatprep.subr.mxu0 0.0
  %3267 = vmatpush1.msra.mxu0 0.0
  %3268 = vmatprep.subr.mxu0 0.0
  %3269 = vmatpush1.msra.mxu0 0.0
  %3270 = vmatprep.subr.mxu0 0.0
  %3271 = vmatpush1.msra.mxu0 0.0
  %3272 = vmatprep.subr.mxu0 0.0
  %3273 = vmatpush1.msra.mxu0 0.0
  %3274 = vmatprep.subr.mxu0 0.0
  %3275 = vmatpush1.msra.mxu0 0.0
  %3276 = vmatprep.subr.mxu0 0.0
  %3277 = vmatpush1.msra.mxu0 0.0
  %3278 = vmatprep.subr.mxu0 0.0
  %3279 = vmatpush1.msra.mxu0 0.0
  %3280 = vmatprep.subr.mxu0 0.0
  %3281 = vmatpush1.msra.mxu0 0.0
  %3282 = vmatprep.subr.mxu0 0.0
  %3283 = vmatpush1.msra.mxu0 0.0
  %3284 = vmatprep.subr.mxu0 0.0
  %3285 = vmatpush1.msra.mxu0 0.0
  %3286 = vmatprep.subr.mxu0 0.0
  %3287 = vmatpush1.msra.mxu0 0.0
  %3288 = vmatprep.subr.mxu0 0.0
  %3289 = vmatpush1.msra.mxu0 0.0
  %3290 = vmatprep.subr.mxu0 0.0
  %3291 = vmatpush1.msra.mxu0 0.0
  %3292 = vmatprep.subr.mxu0 0.0
  %3293 = vmatpush1.msra.mxu0 0.0
  %3294 = vmatprep.subr.mxu0 0.0
  %3295 = vmatpush1.msra.mxu0 0.0
  %3296 = vmatprep.subr.mxu0 0.0
  %3297 = vmatpush1.msra.mxu0 0.0
  %3298 = vmatprep.subr.mxu0 0.0
  %3299 = vmatpush1.msra.mxu0 0.0
  %3300 = vmatprep.subr.mxu0 0.0
  %3301 = vmatpush1.msra.mxu0 0.0
  %3302 = vmatprep.subr.mxu0 0.0
  %3303 = vmatpush1.msra.mxu0 0.0
  %3304 = vmatprep.subr.mxu0 0.0
  %3305 = vmatpush1.msra.mxu0 0.0
  %3306 = vmatprep.subr.mxu0 0.0
  %3307 = vmatpush1.msra.mxu0 0.0
  %3308 = vmatprep.mubr.f32.mxu0 0.0
  %3309 = vmatmul.mubr.f32.gmra.mrb[0].mxu0 %v3172
  %v3310 = vpop.f32.mrb[0].mxu0
  %v3311 = vadd.f32 0.0, %v3310
  %v3312 = vpop.f32.mrb[0].mxu0
  %3313 = vdwg.mxu0
  %3314 = vmatprep.subr.mxu0 0.0
  %3315 = vmatpush1.msra.mxu0 %v2785
  %3316 = vmatprep.subr.mxu0 0.0
  %3317 = vmatpush1.msra.mxu0 %v2790
  %3318 = vmatprep.subr.mxu0 0.0
  %3319 = vmatpush1.msra.mxu0 %v2795
  %3320 = vmatprep.subr.mxu0 0.0
  %3321 = vmatpush1.msra.mxu0 %v2800
  %3322 = vmatprep.subr.mxu0 0.0
  %3323 = vmatpush1.msra.mxu0 0.0
  %3324 = vmatprep.subr.mxu0 0.0
  %3325 = vmatpush1.msra.mxu0 0.0
  %3326 = vmatprep.subr.mxu0 0.0
  %3327 = vmatpush1.msra.mxu0 0.0
  %3328 = vmatprep.subr.mxu0 0.0
  %3329 = vmatpush1.msra.mxu0 0.0
  %3330 = vmatprep.subr.mxu0 0.0
  %3331 = vmatpush1.msra.mxu0 0.0
  %3332 = vmatprep.subr.mxu0 0.0
  %3333 = vmatpush1.msra.mxu0 0.0
  %3334 = vmatprep.subr.mxu0 0.0
  %3335 = vmatpush1.msra.mxu0 0.0
  %3336 = vmatprep.subr.mxu0 0.0
  %3337 = vmatpush1.msra.mxu0 0.0
  %3338 = vmatprep.subr.mxu0 0.0
  %3339 = vmatpush1.msra.mxu0 0.0
  %3340 = vmatprep.subr.mxu0 0.0
  %3341 = vmatpush1.msra.mxu0 0.0
  %3342 = vmatprep.subr.mxu0 0.0
  %3343 = vmatpush1.msra.mxu0 0.0
  %3344 = vmatprep.subr.mxu0 0.0
  %3345 = vmatpush1.msra.mxu0 0.0
  %3346 = vmatprep.subr.mxu0 0.0
  %3347 = vmatpush1.msra.mxu0 0.0
  %3348 = vmatprep.subr.mxu0 0.0
  %3349 = vmatpush1.msra.mxu0 0.0
  %3350 = vmatprep.subr.mxu0 0.0
  %3351 = vmatpush1.msra.mxu0 0.0
  %3352 = vmatprep.subr.mxu0 0.0
  %3353 = vmatpush1.msra.mxu0 0.0
  %3354 = vmatprep.subr.mxu0 0.0
  %3355 = vmatpush1.msra.mxu0 0.0
  %3356 = vmatprep.subr.mxu0 0.0
  %3357 = vmatpush1.msra.mxu0 0.0
  %3358 = vmatprep.subr.mxu0 0.0
  %3359 = vmatpush1.msra.mxu0 0.0
  %3360 = vmatprep.subr.mxu0 0.0
  %3361 = vmatpush1.msra.mxu0 0.0
  %3362 = vmatprep.subr.mxu0 0.0
  %3363 = vmatpush1.msra.mxu0 0.0
  %3364 = vmatprep.subr.mxu0 0.0
  %3365 = vmatpush1.msra.mxu0 0.0
  %3366 = vmatprep.subr.mxu0 0.0
  %3367 = vmatpush1.msra.mxu0 0.0
  %3368 = vmatprep.subr.mxu0 0.0
  %3369 = vmatpush1.msra.mxu0 0.0
  %3370 = vmatprep.subr.mxu0 0.0
  %3371 = vmatpush1.msra.mxu0 0.0
  %3372 = vmatprep.subr.mxu0 0.0
  %3373 = vmatpush1.msra.mxu0 0.0
  %3374 = vmatprep.subr.mxu0 0.0
  %3375 = vmatpush1.msra.mxu0 0.0
  %3376 = vmatprep.subr.mxu0 0.0
  %3377 = vmatpush1.msra.mxu0 0.0
  %3378 = vmatprep.mubr.f32.mxu0 0.0
  %3379 = vmatmul.mubr.f32.gmra.mrb[0].mxu0 %v3172
  %v3380 = vpop.f32.mrb[0].mxu0
  %v3381 = vadd.f32 0.0, %v3380
  %v3382 = vpop.f32.mrb[0].mxu0
  %3383 = vdwg.mxu0
  %3384 = vmatprep.subr.mxu0 0.0
  %3385 = vmatpush1.msra.mxu0 %v2870
  %3386 = vmatprep.subr.mxu0 0.0
  %3387 = vmatpush1.msra.mxu0 %v2875
  %3388 = vmatprep.subr.mxu0 0.0
  %3389 = vmatpush1.msra.mxu0 %v2880
  %3390 = vmatprep.subr.mxu0 0.0
  %3391 = vmatpush1.msra.mxu0 %v2885
  %3392 = vmatprep.subr.mxu0 0.0
  %3393 = vmatpush1.msra.mxu0 0.0
  %3394 = vmatprep.subr.mxu0 0.0
  %3395 = vmatpush1.msra.mxu0 0.0
  %3396 = vmatprep.subr.mxu0 0.0
  %3397 = vmatpush1.msra.mxu0 0.0
  %3398 = vmatprep.subr.mxu0 0.0
  %3399 = vmatpush1.msra.mxu0 0.0
  %3400 = vmatprep.subr.mxu0 0.0
  %3401 = vmatpush1.msra.mxu0 0.0
  %3402 = vmatprep.subr.mxu0 0.0
  %3403 = vmatpush1.msra.mxu0 0.0
  %3404 = vmatprep.subr.mxu0 0.0
  %3405 = vmatpush1.msra.mxu0 0.0
  %3406 = vmatprep.subr.mxu0 0.0
  %3407 = vmatpush1.msra.mxu0 0.0
  %3408 = vmatprep.subr.mxu0 0.0
  %3409 = vmatpush1.msra.mxu0 0.0
  %3410 = vmatprep.subr.mxu0 0.0
  %3411 = vmatpush1.msra.mxu0 0.0
  %3412 = vmatprep.subr.mxu0 0.0
  %3413 = vmatpush1.msra.mxu0 0.0
  %3414 = vmatprep.subr.mxu0 0.0
  %3415 = vmatpush1.msra.mxu0 0.0
  %3416 = vmatprep.subr.mxu0 0.0
  %3417 = vmatpush1.msra.mxu0 0.0
  %3418 = vmatprep.subr.mxu0 0.0
  %3419 = vmatpush1.msra.mxu0 0.0
  %3420 = vmatprep.subr.mxu0 0.0
  %3421 = vmatpush1.msra.mxu0 0.0
  %3422 = vmatprep.subr.mxu0 0.0
  %3423 = vmatpush1.msra.mxu0 0.0
  %3424 = vmatprep.subr.mxu0 0.0
  %3425 = vmatpush1.msra.mxu0 0.0
  %3426 = vmatprep.subr.mxu0 0.0
  %3427 = vmatpush1.msra.mxu0 0.0
  %3428 = vmatprep.subr.mxu0 0.0
  %3429 = vmatpush1.msra.mxu0 0.0
  %3430 = vmatprep.subr.mxu0 0.0
  %3431 = vmatpush1.msra.mxu0 0.0
  %3432 = vmatprep.subr.mxu0 0.0
  %3433 = vmatpush1.msra.mxu0 0.0
  %3434 = vmatprep.subr.mxu0 0.0
  %3435 = vmatpush1.msra.mxu0 0.0
  %3436 = vmatprep.subr.mxu0 0.0
  %3437 = vmatpush1.msra.mxu0 0.0
  %3438 = vmatprep.subr.mxu0 0.0
  %3439 = vmatpush1.msra.mxu0 0.0
  %3440 = vmatprep.subr.mxu0 0.0
  %3441 = vmatpush1.msra.mxu0 0.0
  %3442 = vmatprep.subr.mxu0 0.0
  %3443 = vmatpush1.msra.mxu0 0.0
  %3444 = vmatprep.subr.mxu0 0.0
  %3445 = vmatpush1.msra.mxu0 0.0
  %3446 = vmatprep.subr.mxu0 0.0
  %3447 = vmatpush1.msra.mxu0 0.0
  %3448 = vmatprep.mubr.f32.mxu0 0.0
  %3449 = vmatmul.mubr.f32.gmra.mrb[0].mxu0 %v3172
  %v3450 = vpop.f32.mrb[0].mxu0
  %v3451 = vadd.f32 0.0, %v3450
  %v3452 = vpop.f32.mrb[0].mxu0
  %3453 = vdwg.mxu0
  %v3454 = vadd.f32 %v3241, %v3028
  %vm3455 = vcmp.gt.f32.partialorder %v3454, 0.0
  %v3456 = vmul.f32 %v3454, 0.2
  %v3457 = vsel %vm3455, %v3454, %v3456
  %v3458 = vadd.f32 %v3241, %v3098
  %vm3459 = vcmp.gt.f32.partialorder %v3458, 0.0
  %v3460 = vmul.f32 %v3458, 0.2
  %v3461 = vsel %vm3459, %v3458, %v3460
  %v3462 = vadd.f32 %v3241, %v3168
  %vm3463 = vcmp.gt.f32.partialorder %v3462, 0.0
  %v3464 = vmul.f32 %v3462, 0.2
  %v3465 = vsel %vm3463, %v3462, %v3464
  %v3466 = vmax.f32 %v3457, %v3461
  %v3467 = vmax.f32 %v3466, %v3465
  %v3468 = vsub.f32 %v3457, %v3467
  %v3469 = vmul.f32 %v3468, 1.442695
  %v3470 = vpow.pop %v3469
  %v3471 = vsub.f32 %v3461, %v3467
  %v3472 = vmul.f32 %v3471, 1.442695
  %v3473 = vpow.pop %v3472
  %v3474 = vsub.f32 %v3465, %v3467
  %v3475 = vmul.f32 %v3474, 1.442695
  %v3476 = vpow.pop %v3475
  %v3477 = vadd.f32 %v3470, %v3473
  %v3478 = vadd.f32 %v3477, %v3476
  %v3479 = vrcp.pop %v3478
  %v3480 = vmul.f32 %v3470, %v3479
  %v3481 = vlaneseq
  %v3482 = vshrl.u32 %v3481, 7
  %v3483 = vsub.s32 0, %v3482
  %v3484 = vrot.slane %v3480, %v3483
  %v3485 = vmul.f32 %v3484, %v2700
  %v3486 = vmul.f32 %v3484, %v2705
  %v3487 = vmul.f32 %v3484, %v2710
  %v3488 = vmul.f32 %v3484, %v2715
  %v3489 = vmul.f32 %v3473, %v3479
  %v3490 = vlaneseq
  %v3491 = vshrl.u32 %v3490, 7
  %v3492 = vsub.s32 0, %v3491
  %v3493 = vrot.slane %v3489, %v3492
  %v3494 = vmul.f32 %v3493, %v2785
  %v3495 = vmul.f32 %v3493, %v2790
  %v3496 = vmul.f32 %v3493, %v2795
  %v3497 = vmul.f32 %v3493, %v2800
  %v3498 = vadd.f32 %v3485, %v3494
  %v3499 = vadd.f32 %v3486, %v3495
  %v3500 = vadd.f32 %v3487, %v3496
  %v3501 = vadd.f32 %v3488, %v3497
  %v3502 = vmul.f32 %v3476, %v3479
  %v3503 = vlaneseq
  %v3504 = vshrl.u32 %v3503, 7
  %v3505 = vsub.s32 0, %v3504
  %v3506 = vrot.slane %v3502, %v3505
  %v3507 = vmul.f32 %v3506, %v2870
  %v3508 = vmul.f32 %v3506, %v2875
  %v3509 = vmul.f32 %v3506, %v2880
  %v3510 = vmul.f32 %v3506, %v2885
  %v3511 = vadd.f32 %v3498, %v3507
  %v3512 = vadd.f32 %v3499, %v3508
  %v3513 = vadd.f32 %v3500, %v3509
  %v3514 = vadd.f32 %v3501, %v3510
  %3516 = vset.pattern.permute.xlu0 0
  %3517 = vperm.xlu0 %3516, %v2532
  %v3518 = vpop.permute.xlu0 %3517
  %3521 = vset.pattern.permute.xlu0 0
  %3522 = vperm.xlu0 %3521, %v2533
  %v3523 = vpop.permute.xlu0 %3522
  %3526 = vset.pattern.permute.xlu0 0
  %3527 = vperm.xlu0 %3526, %v2534
  %v3528 = vpop.permute.xlu0 %3527
  %3531 = vset.pattern.permute.xlu0 0
  %3532 = vperm.xlu0 %3531, %v2535
  %v3533 = vpop.permute.xlu0 %3532
  %v3535 = vadd.f32 %v3511, %v3518
  %v3536 = vadd.f32 %v3512, %v3523
  %v3537 = vadd.f32 %v3513, %v3528
  %v3538 = vadd.f32 %v3514, %v3533
  %v3539 = vadd.f32 %v3311, %v2958
  %vm3540 = vcmp.gt.f32.partialorder %v3539, 0.0
  %v3541 = vmul.f32 %v3539, 0.2
  %v3542 = vsel %vm3540, %v3539, %v3541
  %v3543 = vadd.f32 %v3311, %v3098
  %vm3544 = vcmp.gt.f32.partialorder %v3543, 0.0
  %v3545 = vmul.f32 %v3543, 0.2
  %v3546 = vsel %vm3544, %v3543, %v3545
  %v3547 = vadd.f32 %v3311, %v3168
  %vm3548 = vcmp.gt.f32.partialorder %v3547, 0.0
  %v3549 = vmul.f32 %v3547, 0.2
  %v3550 = vsel %vm3548, %v3547, %v3549
  %v3551 = vmax.f32 %v3542, %v3546
  %v3552 = vmax.f32 %v3551, %v3550
  %v3553 = vsub.f32 %v3542, %v3552
  %v3554 = vmul.f32 %v3553, 1.442695
  %v3555 = vpow.pop %v3554
  %v3556 = vsub.f32 %v3546, %v3552
  %v3557 = vmul.f32 %v3556, 1.442695
  %v3558 = vpow.pop %v3557
  %v3559 = vsub.f32 %v3550, %v3552
  %v3560 = vmul.f32 %v3559, 1.442695
  %v3561 = vpow.pop %v3560
  %v3562 = vadd.f32 %v3555, %v3558
  %v3563 = vadd.f32 %v3562, %v3561
  %v3564 = vrcp.pop %v3563
  %v3565 = vmul.f32 %v3555, %v3564
  %v3566 = vlaneseq
  %v3567 = vshrl.u32 %v3566, 7
  %v3568 = vsub.s32 0, %v3567
  %v3569 = vrot.slane %v3565, %v3568
  %v3570 = vmul.f32 %v3569, %v2615
  %v3571 = vmul.f32 %v3569, %v2620
  %v3572 = vmul.f32 %v3569, %v2625
  %v3573 = vmul.f32 %v3569, %v2630
  %v3574 = vmul.f32 %v3558, %v3564
  %v3575 = vlaneseq
  %v3576 = vshrl.u32 %v3575, 7
  %v3577 = vsub.s32 0, %v3576
  %v3578 = vrot.slane %v3574, %v3577
  %v3579 = vmul.f32 %v3578, %v2785
  %v3580 = vmul.f32 %v3578, %v2790
  %v3581 = vmul.f32 %v3578, %v2795
  %v3582 = vmul.f32 %v3578, %v2800
  %v3583 = vadd.f32 %v3570, %v3579
  %v3584 = vadd.f32 %v3571, %v3580
  %v3585 = vadd.f32 %v3572, %v3581
  %v3586 = vadd.f32 %v3573, %v3582
  %v3587 = vmul.f32 %v3561, %v3564
  %v3588 = vlaneseq
  %v3589 = vshrl.u32 %v3588, 7
  %v3590 = vsub.s32 0, %v3589
  %v3591 = vrot.slane %v3587, %v3590
  %v3592 = vmul.f32 %v3591, %v2870
  %v3593 = vmul.f32 %v3591, %v2875
  %v3594 = vmul.f32 %v3591, %v2880
  %v3595 = vmul.f32 %v3591, %v2885
  %v3596 = vadd.f32 %v3583, %v3592
  %v3597 = vadd.f32 %v3584, %v3593
  %v3598 = vadd.f32 %v3585, %v3594
  %v3599 = vadd.f32 %v3586, %v3595
  %v3600 = vadd.f32 %v3596, %v3518
  %v3601 = vadd.f32 %v3597, %v3523
  %v3602 = vadd.f32 %v3598, %v3528
  %v3603 = vadd.f32 %v3599, %v3533
  %v3604 = vadd.f32 %v3381, %v2958
  %vm3605 = vcmp.gt.f32.partialorder %v3604, 0.0
  %v3606 = vmul.f32 %v3604, 0.2
  %v3607 = vsel %vm3605, %v3604, %v3606
  %v3608 = vadd.f32 %v3381, %v3028
  %vm3609 = vcmp.gt.f32.partialorder %v3608, 0.0
  %v3610 = vmul.f32 %v3608, 0.2
  %v3611 = vsel %vm3609, %v3608, %v3610
  %v3612 = vadd.f32 %v3381, %v3168
  %vm3613 = vcmp.gt.f32.partialorder %v3612, 0.0
  %v3614 = vmul.f32 %v3612, 0.2
  %v3615 = vsel %vm3613, %v3612, %v3614
  %v3616 = vmax.f32 %v3607, %v3611
  %v3617 = vmax.f32 %v3616, %v3615
  %v3618 = vsub.f32 %v3607, %v3617
  %v3619 = vmul.f32 %v3618, 1.442695
  %v3620 = vpow.pop %v3619
  %v3621 = vsub.f32 %v3611, %v3617
  %v3622 = vmul.f32 %v3621, 1.442695
  %v3623 = vpow.pop %v3622
  %v3624 = vsub.f32 %v3615, %v3617
  %v3625 = vmul.f32 %v3624, 1.442695
  %v3626 = vpow.pop %v3625
  %v3627 = vadd.f32 %v3620, %v3623
  %v3628 = vadd.f32 %v3627, %v3626
  %v3629 = vrcp.pop %v3628
  %v3630 = vmul.f32 %v3620, %v3629
  %v3631 = vlaneseq
  %v3632 = vshrl.u32 %v3631, 7
  %v3633 = vsub.s32 0, %v3632
  %v3634 = vrot.slane %v3630, %v3633
  %v3635 = vmul.f32 %v3634, %v2615
  %v3636 = vmul.f32 %v3634, %v2620
  %v3637 = vmul.f32 %v3634, %v2625
  %v3638 = vmul.f32 %v3634, %v2630
  %v3639 = vmul.f32 %v3623, %v3629
  %v3640 = vlaneseq
  %v3641 = vshrl.u32 %v3640, 7
  %v3642 = vsub.s32 0, %v3641
  %v3643 = vrot.slane %v3639, %v3642
  %v3644 = vmul.f32 %v3643, %v2700
  %v3645 = vmul.f32 %v3643, %v2705
  %v3646 = vmul.f32 %v3643, %v2710
  %v3647 = vmul.f32 %v3643, %v2715
  %v3648 = vadd.f32 %v3635, %v3644
  %v3649 = vadd.f32 %v3636, %v3645
  %v3650 = vadd.f32 %v3637, %v3646
  %v3651 = vadd.f32 %v3638, %v3647
  %v3652 = vmul.f32 %v3626, %v3629
  %v3653 = vlaneseq
  %v3654 = vshrl.u32 %v3653, 7
  %v3655 = vsub.s32 0, %v3654
  %v3656 = vrot.slane %v3652, %v3655
  %v3657 = vmul.f32 %v3656, %v2870
  %v3658 = vmul.f32 %v3656, %v2875
  %v3659 = vmul.f32 %v3656, %v2880
  %v3660 = vmul.f32 %v3656, %v2885
  %v3661 = vadd.f32 %v3648, %v3657
  %v3662 = vadd.f32 %v3649, %v3658
  %v3663 = vadd.f32 %v3650, %v3659
  %v3664 = vadd.f32 %v3651, %v3660
  %v3665 = vadd.f32 %v3661, %v3518
  %v3666 = vadd.f32 %v3662, %v3523
  %v3667 = vadd.f32 %v3663, %v3528
  %v3668 = vadd.f32 %v3664, %v3533
  %v3669 = vadd.f32 %v3451, %v2958
  %vm3670 = vcmp.gt.f32.partialorder %v3669, 0.0
  %v3671 = vmul.f32 %v3669, 0.2
  %v3672 = vsel %vm3670, %v3669, %v3671
  %v3673 = vadd.f32 %v3451, %v3028
  %vm3674 = vcmp.gt.f32.partialorder %v3673, 0.0
  %v3675 = vmul.f32 %v3673, 0.2
  %v3676 = vsel %vm3674, %v3673, %v3675
  %v3677 = vadd.f32 %v3451, %v3098
  %vm3678 = vcmp.gt.f32.partialorder %v3677, 0.0
  %v3679 = vmul.f32 %v3677, 0.2
  %v3680 = vsel %vm3678, %v3677, %v3679
  %v3681 = vmax.f32 %v3672, %v3676
  %v3682 = vmax.f32 %v3681, %v3680
  %v3683 = vsub.f32 %v3672, %v3682
  %v3684 = vmul.f32 %v3683, 1.442695
  %v3685 = vpow.pop %v3684
  %v3686 = vsub.f32 %v3676, %v3682
  %v3687 = vmul.f32 %v3686, 1.442695
  %v3688 = vpow.pop %v3687
  %v3689 = vsub.f32 %v3680, %v3682
  %v3690 = vmul.f32 %v3689, 1.442695
  %v3691 = vpow.pop %v3690
  %v3692 = vadd.f32 %v3685, %v3688
  %v3693 = vadd.f32 %v3692, %v3691
  %v3694 = vrcp.pop %v3693
  %v3695 = vmul.f32 %v3685, %v3694
  %v3696 = vlaneseq
  %v3697 = vshrl.u32 %v3696, 7
  %v3698 = vsub.s32 0, %v3697
  %v3699 = vrot.slane %v3695, %v3698
  %v3700 = vmul.f32 %v3699, %v2615
  %v3701 = vmul.f32 %v3699, %v2620
  %v3702 = vmul.f32 %v3699, %v2625
  %v3703 = vmul.f32 %v3699, %v2630
  %v3704 = vmul.f32 %v3688, %v3694
  %v3705 = vlaneseq
  %v3706 = vshrl.u32 %v3705, 7
  %v3707 = vsub.s32 0, %v3706
  %v3708 = vrot.slane %v3704, %v3707
  %v3709 = vmul.f32 %v3708, %v2700
  %v3710 = vmul.f32 %v3708, %v2705
  %v3711 = vmul.f32 %v3708, %v2710
  %v3712 = vmul.f32 %v3708, %v2715
  %v3713 = vadd.f32 %v3700, %v3709
  %v3714 = vadd.f32 %v3701, %v3710
  %v3715 = vadd.f32 %v3702, %v3711
  %v3716 = vadd.f32 %v3703, %v3712
  %v3717 = vmul.f32 %v3691, %v3694
  %v3718 = vlaneseq
  %v3719 = vshrl.u32 %v3718, 7
  %v3720 = vsub.s32 0, %v3719
  %v3721 = vrot.slane %v3717, %v3720
  %v3722 = vmul.f32 %v3721, %v2785
  %v3723 = vmul.f32 %v3721, %v2790
  %v3724 = vmul.f32 %v3721, %v2795
  %v3725 = vmul.f32 %v3721, %v2800
  %v3726 = vadd.f32 %v3713, %v3722
  %v3727 = vadd.f32 %v3714, %v3723
  %v3728 = vadd.f32 %v3715, %v3724
  %v3729 = vadd.f32 %v3716, %v3725
  %v3730 = vadd.f32 %v3726, %v3518
  %v3731 = vadd.f32 %v3727, %v3523
  %v3732 = vadd.f32 %v3728, %v3528
  %v3733 = vadd.f32 %v3729, %v3533
  %v3734 = vmax.f32 %v3535, 0.0
  %v3735 = vmax.f32 %v3536, 0.0
  %v3736 = vmax.f32 %v3537, 0.0
  %v3737 = vmax.f32 %v3538, 0.0
  %v3738 = vmax.f32 %v3600, 0.0
  %v3739 = vmax.f32 %v3601, 0.0
  %v3740 = vmax.f32 %v3602, 0.0
  %v3741 = vmax.f32 %v3603, 0.0
  %v3742 = vmax.f32 %v3665, 0.0
  %v3743 = vmax.f32 %v3666, 0.0
  %v3744 = vmax.f32 %v3667, 0.0
  %v3745 = vmax.f32 %v3668, 0.0
  %v3746 = vmax.f32 %v3730, 0.0
  %v3747 = vmax.f32 %v3731, 0.0
  %v3748 = vmax.f32 %v3732, 0.0
  %v3749 = vmax.f32 %v3733, 0.0
  %v3750 = vld [vmem:[%s13] sm:$0xff]
  %v3751 = vld [vmem:[%s13 + $0x8] sm:$0xff]
  %v3752 = vld [vmem:[%s13 + $0x10] sm:$0xff]
  %v3753 = vld [vmem:[%s13 + $0x18] sm:$0xff]
  %v3754 = vld [vmem:[%s14] sm:$0xff]
  %v3755 = vld [vmem:[%s14 + $0x8] sm:$0xff]
  %v3756 = vld [vmem:[%s14 + $0x10] sm:$0xff]
  %v3757 = vld [vmem:[%s14 + $0x18] sm:$0xff]
  %v3758 = vld [vmem:[%s15] sm:$0xff]
  %v3759 = vld [vmem:[%s15 + $0x8] sm:$0x1]
  %v3760 = vld [vmem:[%s16] sm:$0xff]
  %v3761 = vld [vmem:[%s16 + $0x8] sm:$0x1]
  %3763 = vset.pattern.permute.xlu0 0
  %3764 = vperm.xlu0 %3763, %v3754
  %v3765 = vpop.permute.xlu0 %3764
  %3768 = vset.pattern.permute.xlu0 0
  %3769 = vperm.xlu0 %3768, %v3755
  %v3770 = vpop.permute.xlu0 %3769
  %3773 = vset.pattern.permute.xlu0 0
  %3774 = vperm.xlu0 %3773, %v3756
  %v3775 = vpop.permute.xlu0 %3774
  %3778 = vset.pattern.permute.xlu0 0
  %3779 = vperm.xlu0 %3778, %v3757
  %v3780 = vpop.permute.xlu0 %3779
  %v3783 = vsel %vm439, %v3750, 0
  %v3786 = vsel %vm439, %v3751, 0
  %v3789 = vsel %vm439, %v3752, 0
  %v3792 = vsel %vm439, %v3753, 0
  %3794 = vmatprep.subr.mxu0 0.0
  %3795 = vmatpush1.msra.mxu0 %v3734
  %3796 = vmatprep.subr.mxu0 0.0
  %3797 = vmatpush1.msra.mxu0 %v3735
  %3798 = vmatprep.subr.mxu0 0.0
  %3799 = vmatpush1.msra.mxu0 %v3736
  %3800 = vmatprep.subr.mxu0 0.0
  %3801 = vmatpush1.msra.mxu0 %v3737
  %3802 = vmatprep.subr.mxu0 0.0
  %3803 = vmatpush1.msra.mxu0 0.0
  %3804 = vmatprep.subr.mxu0 0.0
  %3805 = vmatpush1.msra.mxu0 0.0
  %3806 = vmatprep.subr.mxu0 0.0
  %3807 = vmatpush1.msra.mxu0 0.0
  %3808 = vmatprep.subr.mxu0 0.0
  %3809 = vmatpush1.msra.mxu0 0.0
  %3810 = vmatprep.subr.mxu0 0.0
  %3811 = vmatpush1.msra.mxu0 0.0
  %3812 = vmatprep.subr.mxu0 0.0
  %3813 = vmatpush1.msra.mxu0 0.0
  %3814 = vmatprep.subr.mxu0 0.0
  %3815 = vmatpush1.msra.mxu0 0.0
  %3816 = vmatprep.subr.mxu0 0.0
  %3817 = vmatpush1.msra.mxu0 0.0
  %3818 = vmatprep.subr.mxu0 0.0
  %3819 = vmatpush1.msra.mxu0 0.0
  %3820 = vmatprep.subr.mxu0 0.0
  %3821 = vmatpush1.msra.mxu0 0.0
  %3822 = vmatprep.subr.mxu0 0.0
  %3823 = vmatpush1.msra.mxu0 0.0
  %3824 = vmatprep.subr.mxu0 0.0
  %3825 = vmatpush1.msra.mxu0 0.0
  %3826 = vmatprep.subr.mxu0 0.0
  %3827 = vmatpush1.msra.mxu0 0.0
  %3828 = vmatprep.subr.mxu0 0.0
  %3829 = vmatpush1.msra.mxu0 0.0
  %3830 = vmatprep.subr.mxu0 0.0
  %3831 = vmatpush1.msra.mxu0 0.0
  %3832 = vmatprep.subr.mxu0 0.0
  %3833 = vmatpush1.msra.mxu0 0.0
  %3834 = vmatprep.subr.mxu0 0.0
  %3835 = vmatpush1.msra.mxu0 0.0
  %3836 = vmatprep.subr.mxu0 0.0
  %3837 = vmatpush1.msra.mxu0 0.0
  %3838 = vmatprep.subr.mxu0 0.0
  %3839 = vmatpush1.msra.mxu0 0.0
  %3840 = vmatprep.subr.mxu0 0.0
  %3841 = vmatpush1.msra.mxu0 0.0
  %3842 = vmatprep.subr.mxu0 0.0
  %3843 = vmatpush1.msra.mxu0 0.0
  %3844 = vmatprep.subr.mxu0 0.0
  %3845 = vmatpush1.msra.mxu0 0.0
  %3846 = vmatprep.subr.mxu0 0.0
  %3847 = vmatpush1.msra.mxu0 0.0
  %3848 = vmatprep.subr.mxu0 0.0
  %3849 = vmatpush1.msra.mxu0 0.0
  %3850 = vmatprep.subr.mxu0 0.0
  %3851 = vmatpush1.msra.mxu0 0.0
  %3852 = vmatprep.subr.mxu0 0.0
  %3853 = vmatpush1.msra.mxu0 0.0
  %3854 = vmatprep.subr.mxu0 0.0
  %3855 = vmatpush1.msra.mxu0 0.0
  %3856 = vmatprep.subr.mxu0 0.0
  %3857 = vmatpush1.msra.mxu0 0.0
  %3858 = vmatprep.mubr.f32.mxu0 0.0
  %3859 = vmatmul.mubr.f32.gmra.mrb[0].mxu0 %v3783
  %v3860 = vpop.f32.mrb[0].mxu0
  %v3861 = vadd.f32 %v3765, %v3860
  %v3862 = vpop.f32.mrb[0].mxu0
  %3863 = vmatprep.mubr.f32.mxu0 0.0
  %3864 = vmatmul.mubr.f32.gmra.mrb[0].mxu0 %v3786
  %v3865 = vpop.f32.mrb[0].mxu0
  %v3866 = vadd.f32 %v3770, %v3865
  %v3867 = vpop.f32.mrb[0].mxu0
  %3868 = vmatprep.mubr.f32.mxu0 0.0
  %3869 = vmatmul.mubr.f32.gmra.mrb[0].mxu0 %v3789
  %v3870 = vpop.f32.mrb[0].mxu0
  %v3871 = vadd.f32 %v3775, %v3870
  %v3872 = vpop.f32.mrb[0].mxu0
  %3873 = vmatprep.mubr.f32.mxu0 0.0
  %3874 = vmatmul.mubr.f32.gmra.mrb[0].mxu0 %v3792
  %v3875 = vpop.f32.mrb[0].mxu0
  %v3876 = vadd.f32 %v3780, %v3875
  %v3877 = vpop.f32.mrb[0].mxu0
  %3878 = vdwg.mxu0
  %v3879 = vmax.f32 %v3861, 0.0
  %v3880 = vmax.f32 %v3866, 0.0
  %v3881 = vmax.f32 %v3871, 0.0
  %v3882 = vmax.f32 %v3876, 0.0
  %3884 = vset.pattern.permute.xlu0 0
  %3885 = vperm.xlu0 %3884, %v3760
  %v3886 = vpop.permute.xlu0 %3885
  %3889 = vset.pattern.permute.xlu0 0
  %3890 = vperm.xlu0 %3889, %v3761
  %v3891 = vpop.permute.xlu0 %3890
  %v3894 = vsel %vm439, %v3758, 0
  %v3897 = vsel %vm439, %v3759, 0
  %3899 = vmatprep.subr.mxu0 0.0
  %3900 = vmatpush1.msra.mxu0 %v3879
  %3901 = vmatprep.subr.mxu0 0.0
  %3902 = vmatpush1.msra.mxu0 %v3880
  %3903 = vmatprep.subr.mxu0 0.0
  %3904 = vmatpush1.msra.mxu0 %v3881
  %3905 = vmatprep.subr.mxu0 0.0
  %3906 = vmatpush1.msra.mxu0 %v3882
  %3907 = vmatprep.subr.mxu0 0.0
  %3908 = vmatpush1.msra.mxu0 0.0
  %3909 = vmatprep.subr.mxu0 0.0
  %3910 = vmatpush1.msra.mxu0 0.0
  %3911 = vmatprep.subr.mxu0 0.0
  %3912 = vmatpush1.msra.mxu0 0.0
  %3913 = vmatprep.subr.mxu0 0.0
  %3914 = vmatpush1.msra.mxu0 0.0
  %3915 = vmatprep.subr.mxu0 0.0
  %3916 = vmatpush1.msra.mxu0 0.0
  %3917 = vmatprep.subr.mxu0 0.0
  %3918 = vmatpush1.msra.mxu0 0.0
  %3919 = vmatprep.subr.mxu0 0.0
  %3920 = vmatpush1.msra.mxu0 0.0
  %3921 = vmatprep.subr.mxu0 0.0
  %3922 = vmatpush1.msra.mxu0 0.0
  %3923 = vmatprep.subr.mxu0 0.0
  %3924 = vmatpush1.msra.mxu0 0.0
  %3925 = vmatprep.subr.mxu0 0.0
  %3926 = vmatpush1.msra.mxu0 0.0
  %3927 = vmatprep.subr.mxu0 0.0
  %3928 = vmatpush1.msra.mxu0 0.0
  %3929 = vmatprep.subr.mxu0 0.0
  %3930 = vmatpush1.msra.mxu0 0.0
  %3931 = vmatprep.subr.mxu0 0.0
  %3932 = vmatpush1.msra.mxu0 0.0
  %3933 = vmatprep.subr.mxu0 0.0
  %3934 = vmatpush1.msra.mxu0 0.0
  %3935 = vmatprep.subr.mxu0 0.0
  %3936 = vmatpush1.msra.mxu0 0.0
  %3937 = vmatprep.subr.mxu0 0.0
  %3938 = vmatpush1.msra.mxu0 0.0
  %3939 = vmatprep.subr.mxu0 0.0
  %3940 = vmatpush1.msra.mxu0 0.0
  %3941 = vmatprep.subr.mxu0 0.0
  %3942 = vmatpush1.msra.mxu0 0.0
  %3943 = vmatprep.subr.mxu0 0.0
  %3944 = vmatpush1.msra.mxu0 0.0
  %3945 = vmatprep.subr.mxu0 0.0
  %3946 = vmatpush1.msra.mxu0 0.0
  %3947 = vmatprep.subr.mxu0 0.0
  %3948 = vmatpush1.msra.mxu0 0.0
  %3949 = vmatprep.subr.mxu0 0.0
  %3950 = vmatpush1.msra.mxu0 0.0
  %3951 = vmatprep.subr.mxu0 0.0
  %3952 = vmatpush1.msra.mxu0 0.0
  %3953 = vmatprep.subr.mxu0 0.0
  %3954 = vmatpush1.msra.mxu0 0.0
  %3955 = vmatprep.subr.mxu0 0.0
  %3956 = vmatpush1.msra.mxu0 0.0
  %3957 = vmatprep.subr.mxu0 0.0
  %3958 = vmatpush1.msra.mxu0 0.0
  %3959 = vmatprep.subr.mxu0 0.0
  %3960 = vmatpush1.msra.mxu0 0.0
  %3961 = vmatprep.subr.mxu0 0.0
  %3962 = vmatpush1.msra.mxu0 0.0
  %3963 = vmatprep.mubr.f32.mxu0 0.0
  %3964 = vmatmul.mubr.f32.gmra.mrb[0].mxu0 %v3894
  %v3965 = vpop.f32.mrb[0].mxu0
  %v3966 = vadd.f32 %v3886, %v3965
  %v3967 = vpop.f32.mrb[0].mxu0
  %3968 = vmatprep.mubr.f32.mxu0 0.0
  %3969 = vmatmul.mubr.f32.gmra.mrb[0].mxu0 %v3897
  %v3970 = vpop.f32.mrb[0].mxu0
  %v3971 = vadd.f32 %v3891, %v3970
  %v3972 = vpop.f32.mrb[0].mxu0
  %3973 = vdwg.mxu0
  %3974 = vst [vmem:[%s17] sm:$0xff] %v3966
  %3975 = vst [vmem:[%s17 + $0x8] sm:$0x1] %v3971
  %3976 = vmatprep.subr.mxu0 0.0
  %3977 = vmatpush1.msra.mxu0 %v3738
  %3978 = vmatprep.subr.mxu0 0.0
  %3979 = vmatpush1.msra.mxu0 %v3739
  %3980 = vmatprep.subr.mxu0 0.0
  %3981 = vmatpush1.msra.mxu0 %v3740
  %3982 = vmatprep.subr.mxu0 0.0
  %3983 = vmatpush1.msra.mxu0 %v3741
  %3984 = vmatprep.subr.mxu0 0.0
  %3985 = vmatpush1.msra.mxu0 0.0
  %3986 = vmatprep.subr.mxu0 0.0
  %3987 = vmatpush1.msra.mxu0 0.0
  %3988 = vmatprep.subr.mxu0 0.0
  %3989 = vmatpush1.msra.mxu0 0.0
  %3990 = vmatprep.subr.mxu0 0.0
  %3991 = vmatpush1.msra.mxu0 0.0
  %3992 = vmatprep.subr.mxu0 0.0
  %3993 = vmatpush1.msra.mxu0 0.0
  %3994 = vmatprep.subr.mxu0 0.0
  %3995 = vmatpush1.msra.mxu0 0.0
  %3996 = vmatprep.subr.mxu0 0.0
  %3997 = vmatpush1.msra.mxu0 0.0
  %3998 = vmatprep.subr.mxu0 0.0
  %3999 = vmatpush1.msra.mxu0 0.0
  %4000 = vmatprep.subr.mxu0 0.0
  %4001 = vmatpush1.msra.mxu0 0.0
  %4002 = vmatprep.subr.mxu0 0.0
  %4003 = vmatpush1.msra.mxu0 0.0
  %4004 = vmatprep.subr.mxu0 0.0
  %4005 = vmatpush1.msra.mxu0 0.0
  %4006 = vmatprep.subr.mxu0 0.0
  %4007 = vmatpush1.msra.mxu0 0.0
  %4008 = vmatprep.subr.mxu0 0.0
  %4009 = vmatpush1.msra.mxu0 0.0
  %4010 = vmatprep.subr.mxu0 0.0
  %4011 = vmatpush1.msra.mxu0 0.0
  %4012 = vmatprep.subr.mxu0 0.0
  %4013 = vmatpush1.msra.mxu0 0.0
  %4014 = vmatprep.subr.mxu0 0.0
  %4015 = vmatpush1.msra.mxu0 0.0
  %4016 = vmatprep.subr.mxu0 0.0
  %4017 = vmatpush1.msra.mxu0 0.0
  %4018 = vmatprep.subr.mxu0 0.0
  %4019 = vmatpush1.msra.mxu0 0.0
  %4020 = vmatprep.subr.mxu0 0.0
  %4021 = vmatpush1.msra.mxu0 0.0
  %4022 = vmatprep.subr.mxu0 0.0
  %4023 = vmatpush1.msra.mxu0 0.0
  %4024 = vmatprep.subr.mxu0 0.0
  %4025 = vmatpush1.msra.mxu0 0.0
  %4026 = vmatprep.subr.mxu0 0.0
  %4027 = vmatpush1.msra.mxu0 0.0
  %4028 = vmatprep.subr.mxu0 0.0
  %4029 = vmatpush1.msra.mxu0 0.0
  %4030 = vmatprep.subr.mxu0 0.0
  %4031 = vmatpush1.msra.mxu0 0.0
  %4032 = vmatprep.subr.mxu0 0.0
  %4033 = vmatpush1.msra.mxu0 0.0
  %4034 = vmatprep.subr.mxu0 0.0
  %4035 = vmatpush1.msra.mxu0 0.0
  %4036 = vmatprep.subr.mxu0 0.0
  %4037 = vmatpush1.msra.mxu0 0.0
  %4038 = vmatprep.subr.mxu0 0.0
  %4039 = vmatpush1.msra.mxu0 0.0
  %4040 = vmatprep.mubr.f32.mxu0 0.0
  %4041 = vmatmul.mubr.f32.gmra.mrb[0].mxu0 %v3783
  %v4042 = vpop.f32.mrb[0].mxu0
  %v4043 = vadd.f32 %v3765, %v4042
  %v4044 = vpop.f32.mrb[0].mxu0
  %4045 = vmatprep.mubr.f32.mxu0 0.0
  %4046 = vmatmul.mubr.f32.gmra.mrb[0].mxu0 %v3786
  %v4047 = vpop.f32.mrb[0].mxu0
  %v4048 = vadd.f32 %v3770, %v4047
  %v4049 = vpop.f32.mrb[0].mxu0
  %4050 = vmatprep.mubr.f32.mxu0 0.0
  %4051 = vmatmul.mubr.f32.gmra.mrb[0].mxu0 %v3789
  %v4052 = vpop.f32.mrb[0].mxu0
  %v4053 = vadd.f32 %v3775, %v4052
  %v4054 = vpop.f32.mrb[0].mxu0
  %4055 = vmatprep.mubr.f32.mxu0 0.0
  %4056 = vmatmul.mubr.f32.gmra.mrb[0].mxu0 %v3792
  %v4057 = vpop.f32.mrb[0].mxu0
  %v4058 = vadd.f32 %v3780, %v4057
  %v4059 = vpop.f32.mrb[0].mxu0
  %4060 = vdwg.mxu0
  %v4061 = vmax.f32 %v4043, 0.0
  %v4062 = vmax.f32 %v4048, 0.0
  %v4063 = vmax.f32 %v4053, 0.0
  %v4064 = vmax.f32 %v4058, 0.0
  %4065 = vmatprep.subr.mxu0 0.0
  %4066 = vmatpush1.msra.mxu0 %v4061
  %4067 = vmatprep.subr.mxu0 0.0
  %4068 = vmatpush1.msra.mxu0 %v4062
  %4069 = vmatprep.subr.mxu0 0.0
  %4070 = vmatpush1.msra.mxu0 %v4063
  %4071 = vmatprep.subr.mxu0 0.0
  %4072 = vmatpush1.msra.mxu0 %v4064
  %4073 = vmatprep.subr.mxu0 0.0
  %4074 = vmatpush1.msra.mxu0 0.0
  %4075 = vmatprep.subr.mxu0 0.0
  %4076 = vmatpush1.msra.mxu0 0.0
  %4077 = vmatprep.subr.mxu0 0.0
  %4078 = vmatpush1.msra.mxu0 0.0
  %4079 = vmatprep.subr.mxu0 0.0
  %4080 = vmatpush1.msra.mxu0 0.0
  %4081 = vmatprep.subr.mxu0 0.0
  %4082 = vmatpush1.msra.mxu0 0.0
  %4083 = vmatprep.subr.mxu0 0.0
  %4084 = vmatpush1.msra.mxu0 0.0
  %4085 = vmatprep.subr.mxu0 0.0
  %4086 = vmatpush1.msra.mxu0 0.0
  %4087 = vmatprep.subr.mxu0 0.0
  %4088 = vmatpush1.msra.mxu0 0.0
  %4089 = vmatprep.subr.mxu0 0.0
  %4090 = vmatpush1.msra.mxu0 0.0
  %4091 = vmatprep.subr.mxu0 0.0
  %4092 = vmatpush1.msra.mxu0 0.0
  %4093 = vmatprep.subr.mxu0 0.0
  %4094 = vmatpush1.msra.mxu0 0.0
  %4095 = vmatprep.subr.mxu0 0.0
  %4096 = vmatpush1.msra.mxu0 0.0
  %4097 = vmatprep.subr.mxu0 0.0
  %4098 = vmatpush1.msra.mxu0 0.0
  %4099 = vmatprep.subr.mxu0 0.0
  %4100 = vmatpush1.msra.mxu0 0.0
  %4101 = vmatprep.subr.mxu0 0.0
  %4102 = vmatpush1.msra.mxu0 0.0
  %4103 = vmatprep.subr.mxu0 0.0
  %4104 = vmatpush1.msra.mxu0 0.0
  %4105 = vmatprep.subr.mxu0 0.0
  %4106 = vmatpush1.msra.mxu0 0.0
  %4107 = vmatprep.subr.mxu0 0.0
  %4108 = vmatpush1.msra.mxu0 0.0
  %4109 = vmatprep.subr.mxu0 0.0
  %4110 = vmatpush1.msra.mxu0 0.0
  %4111 = vmatprep.subr.mxu0 0.0
  %4112 = vmatpush1.msra.mxu0 0.0
  %4113 = vmatprep.subr.mxu0 0.0
  %4114 = vmatpush1.msra.mxu0 0.0
  %4115 = vmatprep.subr.mxu0 0.0
  %4116 = vmatpush1.msra.mxu0 0.0
  %4117 = vmatprep.subr.mxu0 0.0
  %4118 = vmatpush1.msra.mxu0 0.0
  %4119 = vmatprep.subr.mxu0 0.0
  %4120 = vmatpush1.msra.mxu0 0.0
  %4121 = vmatprep.subr.mxu0 0.0
  %4122 = vmatpush1.msra.mxu0 0.0
  %4123 = vmatprep.subr.mxu0 0.0
  %4124 = vmatpush1.msra.mxu0 0.0
  %4125 = vmatprep.subr.mxu0 0.0
  %4126 = vmatpush1.msra.mxu0 0.0
  %4127 = vmatprep.subr.mxu0 0.0
  %4128 = vmatpush1.msra.mxu0 0.0
  %4129 = vmatprep.mubr.f32.mxu0 0.0
  %4130 = vmatmul.mubr.f32.gmra.mrb[0].mxu0 %v3894
  %v4131 = vpop.f32.mrb[0].mxu0
  %v4132 = vadd.f32 %v3886, %v4131
  %v4133 = vpop.f32.mrb[0].mxu0
  %4134 = vmatprep.mubr.f32.mxu0 0.0
  %4135 = vmatmul.mubr.f32.gmra.mrb[0].mxu0 %v3897
  %v4136 = vpop.f32.mrb[0].mxu0
  %v4137 = vadd.f32 %v3891, %v4136
  %v4138 = vpop.f32.mrb[0].mxu0
  %4139 = vdwg.mxu0
  %s4140 = scalar_lea.vmem %s17, 16
  %4141 = vst [vmem:[%s4140] sm:$0xff] %v4132
  %4142 = vst [vmem:[%s4140 + $0x8] sm:$0x1] %v4137
  %4143 = vmatprep.subr.mxu0 0.0
  %4144 = vmatpush1.msra.mxu0 %v3742
  %4145 = vmatprep.subr.mxu0 0.0
  %4146 = vmatpush1.msra.mxu0 %v3743
  %4147 = vmatprep.subr.mxu0 0.0
  %4148 = vmatpush1.msra.mxu0 %v3744
  %4149 = vmatprep.subr.mxu0 0.0
  %4150 = vmatpush1.msra.mxu0 %v3745
  %4151 = vmatprep.subr.mxu0 0.0
  %4152 = vmatpush1.msra.mxu0 0.0
  %4153 = vmatprep.subr.mxu0 0.0
  %4154 = vmatpush1.msra.mxu0 0.0
  %4155 = vmatprep.subr.mxu0 0.0
  %4156 = vmatpush1.msra.mxu0 0.0
  %4157 = vmatprep.subr.mxu0 0.0
  %4158 = vmatpush1.msra.mxu0 0.0
  %4159 = vmatprep.subr.mxu0 0.0
  %4160 = vmatpush1.msra.mxu0 0.0
  %4161 = vmatprep.subr.mxu0 0.0
  %4162 = vmatpush1.msra.mxu0 0.0
  %4163 = vmatprep.subr.mxu0 0.0
  %4164 = vmatpush1.msra.mxu0 0.0
  %4165 = vmatprep.subr.mxu0 0.0
  %4166 = vmatpush1.msra.mxu0 0.0
  %4167 = vmatprep.subr.mxu0 0.0
  %4168 = vmatpush1.msra.mxu0 0.0
  %4169 = vmatprep.subr.mxu0 0.0
  %4170 = vmatpush1.msra.mxu0 0.0
  %4171 = vmatprep.subr.mxu0 0.0
  %4172 = vmatpush1.msra.mxu0 0.0
  %4173 = vmatprep.subr.mxu0 0.0
  %4174 = vmatpush1.msra.mxu0 0.0
  %4175 = vmatprep.subr.mxu0 0.0
  %4176 = vmatpush1.msra.mxu0 0.0
  %4177 = vmatprep.subr.mxu0 0.0
  %4178 = vmatpush1.msra.mxu0 0.0
  %4179 = vmatprep.subr.mxu0 0.0
  %4180 = vmatpush1.msra.mxu0 0.0
  %4181 = vmatprep.subr.mxu0 0.0
  %4182 = vmatpush1.msra.mxu0 0.0
  %4183 = vmatprep.subr.mxu0 0.0
  %4184 = vmatpush1.msra.mxu0 0.0
  %4185 = vmatprep.subr.mxu0 0.0
  %4186 = vmatpush1.msra.mxu0 0.0
  %4187 = vmatprep.subr.mxu0 0.0
  %4188 = vmatpush1.msra.mxu0 0.0
  %4189 = vmatprep.subr.mxu0 0.0
  %4190 = vmatpush1.msra.mxu0 0.0
  %4191 = vmatprep.subr.mxu0 0.0
  %4192 = vmatpush1.msra.mxu0 0.0
  %4193 = vmatprep.subr.mxu0 0.0
  %4194 = vmatpush1.msra.mxu0 0.0
  %4195 = vmatprep.subr.mxu0 0.0
  %4196 = vmatpush1.msra.mxu0 0.0
  %4197 = vmatprep.subr.mxu0 0.0
  %4198 = vmatpush1.msra.mxu0 0.0
  %4199 = vmatprep.subr.mxu0 0.0
  %4200 = vmatpush1.msra.mxu0 0.0
  %4201 = vmatprep.subr.mxu0 0.0
  %4202 = vmatpush1.msra.mxu0 0.0
  %4203 = vmatprep.subr.mxu0 0.0
  %4204 = vmatpush1.msra.mxu0 0.0
  %4205 = vmatprep.subr.mxu0 0.0
  %4206 = vmatpush1.msra.mxu0 0.0
  %4207 = vmatprep.mubr.f32.mxu0 0.0
  %4208 = vmatmul.mubr.f32.gmra.mrb[0].mxu0 %v3783
  %v4209 = vpop.f32.mrb[0].mxu0
  %v4210 = vadd.f32 %v3765, %v4209
  %v4211 = vpop.f32.mrb[0].mxu0
  %4212 = vmatprep.mubr.f32.mxu0 0.0
  %4213 = vmatmul.mubr.f32.gmra.mrb[0].mxu0 %v3786
  %v4214 = vpop.f32.mrb[0].mxu0
  %v4215 = vadd.f32 %v3770, %v4214
  %v4216 = vpop.f32.mrb[0].mxu0
  %4217 = vmatprep.mubr.f32.mxu0 0.0
  %4218 = vmatmul.mubr.f32.gmra.mrb[0].mxu0 %v3789
  %v4219 = vpop.f32.mrb[0].mxu0
  %v4220 = vadd.f32 %v3775, %v4219
  %v4221 = vpop.f32.mrb[0].mxu0
  %4222 = vmatprep.mubr.f32.mxu0 0.0
  %4223 = vmatmul.mubr.f32.gmra.mrb[0].mxu0 %v3792
  %v4224 = vpop.f32.mrb[0].mxu0
  %v4225 = vadd.f32 %v3780, %v4224
  %v4226 = vpop.f32.mrb[0].mxu0
  %4227 = vdwg.mxu0
  %v4228 = vmax.f32 %v4210, 0.0
  %v4229 = vmax.f32 %v4215, 0.0
  %v4230 = vmax.f32 %v4220, 0.0
  %v4231 = vmax.f32 %v4225, 0.0
  %4232 = vmatprep.subr.mxu0 0.0
  %4233 = vmatpush1.msra.mxu0 %v4228
  %4234 = vmatprep.subr.mxu0 0.0
  %4235 = vmatpush1.msra.mxu0 %v4229
  %4236 = vmatprep.subr.mxu0 0.0
  %4237 = vmatpush1.msra.mxu0 %v4230
  %4238 = vmatprep.subr.mxu0 0.0
  %4239 = vmatpush1.msra.mxu0 %v4231
  %4240 = vmatprep.subr.mxu0 0.0
  %4241 = vmatpush1.msra.mxu0 0.0
  %4242 = vmatprep.subr.mxu0 0.0
  %4243 = vmatpush1.msra.mxu0 0.0
  %4244 = vmatprep.subr.mxu0 0.0
  %4245 = vmatpush1.msra.mxu0 0.0
  %4246 = vmatprep.subr.mxu0 0.0
  %4247 = vmatpush1.msra.mxu0 0.0
  %4248 = vmatprep.subr.mxu0 0.0
  %4249 = vmatpush1.msra.mxu0 0.0
  %4250 = vmatprep.subr.mxu0 0.0
  %4251 = vmatpush1.msra.mxu0 0.0
  %4252 = vmatprep.subr.mxu0 0.0
  %4253 = vmatpush1.msra.mxu0 0.0
  %4254 = vmatprep.subr.mxu0 0.0
  %4255 = vmatpush1.msra.mxu0 0.0
  %4256 = vmatprep.subr.mxu0 0.0
  %4257 = vmatpush1.msra.mxu0 0.0
  %4258 = vmatprep.subr.mxu0 0.0
  %4259 = vmatpush1.msra.mxu0 0.0
  %4260 = vmatprep.subr.mxu0 0.0
  %4261 = vmatpush1.msra.mxu0 0.0
  %4262 = vmatprep.subr.mxu0 0.0
  %4263 = vmatpush1.msra.mxu0 0.0
  %4264 = vmatprep.subr.mxu0 0.0
  %4265 = vmatpush1.msra.mxu0 0.0
  %4266 = vmatprep.subr.mxu0 0.0
  %4267 = vmatpush1.msra.mxu0 0.0
  %4268 = vmatprep.subr.mxu0 0.0
  %4269 = vmatpush1.msra.mxu0 0.0
  %4270 = vmatprep.subr.mxu0 0.0
  %4271 = vmatpush1.msra.mxu0 0.0
  %4272 = vmatprep.subr.mxu0 0.0
  %4273 = vmatpush1.msra.mxu0 0.0
  %4274 = vmatprep.subr.mxu0 0.0
  %4275 = vmatpush1.msra.mxu0 0.0
  %4276 = vmatprep.subr.mxu0 0.0
  %4277 = vmatpush1.msra.mxu0 0.0
  %4278 = vmatprep.subr.mxu0 0.0
  %4279 = vmatpush1.msra.mxu0 0.0
  %4280 = vmatprep.subr.mxu0 0.0
  %4281 = vmatpush1.msra.mxu0 0.0
  %4282 = vmatprep.subr.mxu0 0.0
  %4283 = vmatpush1.msra.mxu0 0.0
  %4284 = vmatprep.subr.mxu0 0.0
  %4285 = vmatpush1.msra.mxu0 0.0
  %4286 = vmatprep.subr.mxu0 0.0
  %4287 = vmatpush1.msra.mxu0 0.0
  %4288 = vmatprep.subr.mxu0 0.0
  %4289 = vmatpush1.msra.mxu0 0.0
  %4290 = vmatprep.subr.mxu0 0.0
  %4291 = vmatpush1.msra.mxu0 0.0
  %4292 = vmatprep.subr.mxu0 0.0
  %4293 = vmatpush1.msra.mxu0 0.0
  %4294 = vmatprep.subr.mxu0 0.0
  %4295 = vmatpush1.msra.mxu0 0.0
  %4296 = vmatprep.mubr.f32.mxu0 0.0
  %4297 = vmatmul.mubr.f32.gmra.mrb[0].mxu0 %v3894
  %v4298 = vpop.f32.mrb[0].mxu0
  %v4299 = vadd.f32 %v3886, %v4298
  %v4300 = vpop.f32.mrb[0].mxu0
  %4301 = vmatprep.mubr.f32.mxu0 0.0
  %4302 = vmatmul.mubr.f32.gmra.mrb[0].mxu0 %v3897
  %v4303 = vpop.f32.mrb[0].mxu0
  %v4304 = vadd.f32 %v3891, %v4303
  %v4305 = vpop.f32.mrb[0].mxu0
  %4306 = vdwg.mxu0
  %s4307 = scalar_lea.vmem %s17, 32
  %4308 = vst [vmem:[%s4307] sm:$0xff] %v4299
  %4309 = vst [vmem:[%s4307 + $0x8] sm:$0x1] %v4304
  %4310 = vmatprep.subr.mxu0 0.0
  %4311 = vmatpush1.msra.mxu0 %v3746
  %4312 = vmatprep.subr.mxu0 0.0
  %4313 = vmatpush1.msra.mxu0 %v3747
  %4314 = vmatprep.subr.mxu0 0.0
  %4315 = vmatpush1.msra.mxu0 %v3748
  %4316 = vmatprep.subr.mxu0 0.0
  %4317 = vmatpush1.msra.mxu0 %v3749
  %4318 = vmatprep.subr.mxu0 0.0
  %4319 = vmatpush1.msra.mxu0 0.0
  %4320 = vmatprep.subr.mxu0 0.0
  %4321 = vmatpush1.msra.mxu0 0.0
  %4322 = vmatprep.subr.mxu0 0.0
  %4323 = vmatpush1.msra.mxu0 0.0
  %4324 = vmatprep.subr.mxu0 0.0
  %4325 = vmatpush1.msra.mxu0 0.0
  %4326 = vmatprep.subr.mxu0 0.0
  %4327 = vmatpush1.msra.mxu0 0.0
  %4328 = vmatprep.subr.mxu0 0.0
  %4329 = vmatpush1.msra.mxu0 0.0
  %4330 = vmatprep.subr.mxu0 0.0
  %4331 = vmatpush1.msra.mxu0 0.0
  %4332 = vmatprep.subr.mxu0 0.0
  %4333 = vmatpush1.msra.mxu0 0.0
  %4334 = vmatprep.subr.mxu0 0.0
  %4335 = vmatpush1.msra.mxu0 0.0
  %4336 = vmatprep.subr.mxu0 0.0
  %4337 = vmatpush1.msra.mxu0 0.0
  %4338 = vmatprep.subr.mxu0 0.0
  %4339 = vmatpush1.msra.mxu0 0.0
  %4340 = vmatprep.subr.mxu0 0.0
  %4341 = vmatpush1.msra.mxu0 0.0
  %4342 = vmatprep.subr.mxu0 0.0
  %4343 = vmatpush1.msra.mxu0 0.0
  %4344 = vmatprep.subr.mxu0 0.0
  %4345 = vmatpush1.msra.mxu0 0.0
  %4346 = vmatprep.subr.mxu0 0.0
  %4347 = vmatpush1.msra.mxu0 0.0
  %4348 = vmatprep.subr.mxu0 0.0
  %4349 = vmatpush1.msra.mxu0 0.0
  %4350 = vmatprep.subr.mxu0 0.0
  %4351 = vmatpush1.msra.mxu0 0.0
  %4352 = vmatprep.subr.mxu0 0.0
  %4353 = vmatpush1.msra.mxu0 0.0
  %4354 = vmatprep.subr.mxu0 0.0
  %4355 = vmatpush1.msra.mxu0 0.0
  %4356 = vmatprep.subr.mxu0 0.0
  %4357 = vmatpush1.msra.mxu0 0.0
  %4358 = vmatprep.subr.mxu0 0.0
  %4359 = vmatpush1.msra.mxu0 0.0
  %4360 = vmatprep.subr.mxu0 0.0
  %4361 = vmatpush1.msra.mxu0 0.0
  %4362 = vmatprep.subr.mxu0 0.0
  %4363 = vmatpush1.msra.mxu0 0.0
  %4364 = vmatprep.subr.mxu0 0.0
  %4365 = vmatpush1.msra.mxu0 0.0
  %4366 = vmatprep.subr.mxu0 0.0
  %4367 = vmatpush1.msra.mxu0 0.0
  %4368 = vmatprep.subr.mxu0 0.0
  %4369 = vmatpush1.msra.mxu0 0.0
  %4370 = vmatprep.subr.mxu0 0.0
  %4371 = vmatpush1.msra.mxu0 0.0
  %4372 = vmatprep.subr.mxu0 0.0
  %4373 = vmatpush1.msra.mxu0 0.0
  %4374 = vmatprep.mubr.f32.mxu0 0.0
  %4375 = vmatmul.mubr.f32.gmra.mrb[0].mxu0 %v3783
  %v4376 = vpop.f32.mrb[0].mxu0
  %v4377 = vadd.f32 %v3765, %v4376
  %v4378 = vpop.f32.mrb[0].mxu0
  %4379 = vmatprep.mubr.f32.mxu0 0.0
  %4380 = vmatmul.mubr.f32.gmra.mrb[0].mxu0 %v3786
  %v4381 = vpop.f32.mrb[0].mxu0
  %v4382 = vadd.f32 %v3770, %v4381
  %v4383 = vpop.f32.mrb[0].mxu0
  %4384 = vmatprep.mubr.f32.mxu0 0.0
  %4385 = vmatmul.mubr.f32.gmra.mrb[0].mxu0 %v3789
  %v4386 = vpop.f32.mrb[0].mxu0
  %v4387 = vadd.f32 %v3775, %v4386
  %v4388 = vpop.f32.mrb[0].mxu0
  %4389 = vmatprep.mubr.f32.mxu0 0.0
  %4390 = vmatmul.mubr.f32.gmra.mrb[0].mxu0 %v3792
  %v4391 = vpop.f32.mrb[0].mxu0
  %v4392 = vadd.f32 %v3780, %v4391
  %v4393 = vpop.f32.mrb[0].mxu0
  %4394 = vdwg.mxu0
  %v4395 = vmax.f32 %v4377, 0.0
  %v4396 = vmax.f32 %v4382, 0.0
  %v4397 = vmax.f32 %v4387, 0.0
  %v4398 = vmax.f32 %v4392, 0.0
  %4399 = vmatprep.subr.mxu0 0.0
  %4400 = vmatpush1.msra.mxu0 %v4395
  %4401 = vmatprep.subr.mxu0 0.0
  %4402 = vmatpush1.msra.mxu0 %v4396
  %4403 = vmatprep.subr.mxu0 0.0
  %4404 = vmatpush1.msra.mxu0 %v4397
  %4405 = vmatprep.subr.mxu0 0.0
  %4406 = vmatpush1.msra.mxu0 %v4398
  %4407 = vmatprep.subr.mxu0 0.0
  %4408 = vmatpush1.msra.mxu0 0.0
  %4409 = vmatprep.subr.mxu0 0.0
  %4410 = vmatpush1.msra.mxu0 0.0
  %4411 = vmatprep.subr.mxu0 0.0
  %4412 = vmatpush1.msra.mxu0 0.0
  %4413 = vmatprep.subr.mxu0 0.0
  %4414 = vmatpush1.msra.mxu0 0.0
  %4415 = vmatprep.subr.mxu0 0.0
  %4416 = vmatpush1.msra.mxu0 0.0
  %4417 = vmatprep.subr.mxu0 0.0
  %4418 = vmatpush1.msra.mxu0 0.0
  %4419 = vmatprep.subr.mxu0 0.0
  %4420 = vmatpush1.msra.mxu0 0.0
  %4421 = vmatprep.subr.mxu0 0.0
  %4422 = vmatpush1.msra.mxu0 0.0
  %4423 = vmatprep.subr.mxu0 0.0
  %4424 = vmatpush1.msra.mxu0 0.0
  %4425 = vmatprep.subr.mxu0 0.0
  %4426 = vmatpush1.msra.mxu0 0.0
  %4427 = vmatprep.subr.mxu0 0.0
  %4428 = vmatpush1.msra.mxu0 0.0
  %4429 = vmatprep.subr.mxu0 0.0
  %4430 = vmatpush1.msra.mxu0 0.0
  %4431 = vmatprep.subr.mxu0 0.0
  %4432 = vmatpush1.msra.mxu0 0.0
  %4433 = vmatprep.subr.mxu0 0.0
  %4434 = vmatpush1.msra.mxu0 0.0
  %4435 = vmatprep.subr.mxu0 0.0
  %4436 = vmatpush1.msra.mxu0 0.0
  %4437 = vmatprep.subr.mxu0 0.0
  %4438 = vmatpush1.msra.mxu0 0.0
  %4439 = vmatprep.subr.mxu0 0.0
  %4440 = vmatpush1.msra.mxu0 0.0
  %4441 = vmatprep.subr.mxu0 0.0
  %4442 = vmatpush1.msra.mxu0 0.0
  %4443 = vmatprep.subr.mxu0 0.0
  %4444 = vmatpush1.msra.mxu0 0.0
  %4445 = vmatprep.subr.mxu0 0.0
  %4446 = vmatpush1.msra.mxu0 0.0
  %4447 = vmatprep.subr.mxu0 0.0
  %4448 = vmatpush1.msra.mxu0 0.0
  %4449 = vmatprep.subr.mxu0 0.0
  %4450 = vmatpush1.msra.mxu0 0.0
  %4451 = vmatprep.subr.mxu0 0.0
  %4452 = vmatpush1.msra.mxu0 0.0
  %4453 = vmatprep.subr.mxu0 0.0
  %4454 = vmatpush1.msra.mxu0 0.0
  %4455 = vmatprep.subr.mxu0 0.0
  %4456 = vmatpush1.msra.mxu0 0.0
  %4457 = vmatprep.subr.mxu0 0.0
  %4458 = vmatpush1.msra.mxu0 0.0
  %4459 = vmatprep.subr.mxu0 0.0
  %4460 = vmatpush1.msra.mxu0 0.0
  %4461 = vmatprep.subr.mxu0 0.0
  %4462 = vmatpush1.msra.mxu0 0.0
  %4463 = vmatprep.mubr.f32.mxu0 0.0
  %4464 = vmatmul.mubr.f32.gmra.mrb[0].mxu0 %v3894
  %v4465 = vpop.f32.mrb[0].mxu0
  %v4466 = vadd.f32 %v3886, %v4465
  %v4467 = vpop.f32.mrb[0].mxu0
  %4468 = vmatprep.mubr.f32.mxu0 0.0
  %4469 = vmatmul.mubr.f32.gmra.mrb[0].mxu0 %v3897
  %v4470 = vpop.f32.mrb[0].mxu0
  %v4471 = vadd.f32 %v3891, %v4470
  %v4472 = vpop.f32.mrb[0].mxu0
  %4473 = vdwg.mxu0
  %s4474 = scalar_lea.vmem %s17, 48
  %4475 = vst [vmem:[%s4474] sm:$0xff] %v4466
  %4476 = vst [vmem:[%s4474 + $0x8] sm:$0x1] %v4471
  // Predicated region
  $region70: #{custom_gnn_forward.1} parent=0 // pred_check
    _
  $region71: #{custom_gnn_forward.1} parent=0 // pred_check_branch
    %4478 = sbr.rel (0) target = $region73
  $region72: #{custom_gnn_forward.1} parent=0 // pred_region
    _
  $region73: #{custom_gnn_forward.1} parent=0 // pred_fallthru
    _
  // Predicated region
  $region74: #{custom_gnn_forward.1} parent=0 // pred_check
    _
  $region75: #{custom_gnn_forward.1} parent=0 // pred_check_branch
    %4480 = sbr.rel (0) target = $region77
  $region76: #{custom_gnn_forward.1} parent=0 // pred_region
    _
  $region77: #{custom_gnn_forward.1} parent=0 // pred_fallthru
    _

</llo_original>
